<compile_context>
chip_gen: v6e
topology: v6e:2x2x1
jax: 0.10.0
libtpu: 0.0.40
codegen_flags: <defaults>
</compile_context>

<pallas_src>
import functools

import jax
import jax.numpy as jnp
from jax import lax
from jax.experimental import pallas as pl
from jax.experimental.pallas import tpu as pltpu


LANE = 128


def _round_up(x, m):
    return -(-x // m) * m


def _cpad(c):
    return _round_up(max(int(c), 1), LANE)


def _tpu_info():
    """(vmem_capacity_bytes, num_tensorcores); conservative fallback."""
    cap, cores = 64 << 20, 1
    try:
        info = pltpu.get_tpu_info()
        cap = int(info.vmem_capacity_bytes)
        for name in ("num_tensorcores", "tensorcore_count", "num_cores",
                     "core_count"):
            v = getattr(info, name, None)
            if v:
                try:
                    cores = max(1, int(v))
                    break
                except (TypeError, ValueError):
                    pass
    except Exception:
        pass
    return cap, cores


def _choose_row_tiling(n, ho, stride, p_ph, wc, wk, wo, cin, c1p, c2p, has_sc,
                       vmem_cap_bytes=None, num_cores=None):
    """Pick (tr, rb, vmem_limit): tr output rows per block, rb blocks/image."""
    cap, cores = _tpu_info()
    if vmem_cap_bytes is not None:
        cap = int(vmem_cap_bytes)
    if num_cores is not None:
        cores = int(num_cores)
    vmem_limit = min((cap * 3) // 4, 100 << 20)

    # Resident weights/biases (currently double-buffered by the pipeline).
    wbytes = 2 * ((cin * c1p + 9 * c1p * c1p + c1p * c2p
                   + (cin * c2p if has_sc else 0)) * 2
                  + (2 * c1p + c2p) * 4)
    budget = max(vmem_limit - wbytes - (4 << 20), 1 << 20)

    # Honest per-output-row estimate: pipelined I/O buffers + in-kernel temps.
    xrow = stride * p_ph * wc * cin * 2           # bf16 x rows per output row
    per_row = (2 * xrow                           # double-buffered x main blk
               + 2 * wo * c2p * 2                 # double-buffered bf16 out
               + xrow                             # xwin concat copy
               + stride * p_ph * wc * c1p * 6     # y1 (f32 + bf16)
               + 12 * wk * c1p * 2                # per-kh tap slices + concat
               + wk * c1p * 10                    # conv2 acc + y2 (f32+bf16)
               + 3 * wk * c2p * 4)                # y3 / residual / out (f32)
    max_tr = max(1, min(ho, budget // max(per_row, 1)))
    rb = -(-ho // max_tr)

    if cores > 1:
        # Multi-TensorCore chips: prefer >=4 blocks per core, but keep blocks
        # >= 8 output rows and bound the padding waste (<= ~15%).
        want = min(-(-4 * cores // max(n, 1)), max(1, ho // 8), ho)
        for r in range(rb + 1, want + 1):
            tr_r = -(-ho // r)
            if r * tr_r - ho <= max(1, (ho * 15) // 100):
                rb = r

    tr = -(-ho // rb)
    rb = -(-ho // tr)
    return tr, rb, vmem_limit


# ------------------------------ Pallas kernel -------------------------------

def _bottleneck_kernel(*refs, stride, tr, h, w_real, wk, wo, has_sc):
    """Fused bottleneck block on one (image, output-row-block) grid cell."""
    xm_ref, xb1_ref, xb2_ref, w1_ref, b1_ref, w2_ref, b2_ref, w3_ref = refs[:8]
    idx = 8
    wsc_ref = None
    if has_sc:
        wsc_ref = refs[idx]
        idx += 1
    bt_ref = refs[idx]
    o_ref = refs[idx + 1]

    trx = tr * stride
    r_all = trx + 2                       # haloed input rows in this block
    p_ph = xm_ref.shape[2]                # column phases (1 or 2)
    wc = xm_ref.shape[3]                  # padded columns per phase
    cin = xm_ref.shape[4]
    c1p = w1_ref.shape[1]
    c2p = w3_ref.shape[1]
    m2 = tr * wk

    # ---- sub_block1: 1x1 conv + BN1 + ReLU on the haloed row window --------
    xwin = jnp.concatenate([xm_ref[0], xb1_ref[0], xb2_ref[0]], axis=0)
    y1 = jnp.dot(xwin.reshape(r_all * p_ph * wc, cin), w1_ref[...],
                 preferred_element_type=jnp.float32) + b1_ref[...]
    y1 = jnp.maximum(y1, 0.0).reshape(r_all, p_ph, wc, c1p)

    # Zero the positions that are conv padding / row padding so the 3x3 conv
    # sees a correct zero halo (otherwise ReLU(bias) would leak in).
    ri = pl.program_id(1)
    row = ri * trx - 1 + lax.broadcasted_iota(jnp.int32, (r_all, p_ph, wc, 1), 0)
    col = (p_ph * lax.broadcasted_iota(jnp.int32, (r_all, p_ph, wc, 1), 2)
           + lax.broadcasted_iota(jnp.int32, (r_all, p_ph, wc, 1), 1))
    valid = (row >= 0) & (row < h) & (col >= 1) & (col <= w_real)
    y1 = jnp.where(valid, y1, 0.0).astype(jnp.bfloat16)

    def take_rows(a, start):
        # rows start, start+stride, ... (tr of them), as leading-dim ops only.
        sl = a[start:start + stride * tr]
        if stride == 1:
            return sl
        return sl.reshape((tr, stride) + a.shape[1:])[:, 0]

    # ---- sub_block2: 3x3 conv (stride) + BN2 --------------------------------
    # One deep matmul per kh (K = 3*c1p): kw taps concatenated on the K dim.
    acc = None
    for kh in range(3):
        t = take_rows(y1, kh)                       # (tr, p_ph, wc, c1p)
        if stride == 1:
            pieces = (t[:, 0, 0:wk], t[:, 0, 1:1 + wk], t[:, 0, 2:2 + wk])
        else:   # even/odd column phases: taps are aligned phase slices
            pieces = (t[:, 0, 0:wk], t[:, 1, 0:wk], t[:, 0, 1:1 + wk])
        xk = jnp.concatenate([q.reshape(m2, c1p) for q in pieces], axis=-1)
        d = jnp.dot(xk, w2_ref[kh], preferred_element_type=jnp.float32)
        acc = d if acc is None else acc + d
    y2 = (acc + b2_ref[...]).astype(jnp.bfloat16)

    # ---- sub_block3: 1x1 conv + BN3 -----------------------------------------
    y3 = jnp.dot(y2, w3_ref[...], preferred_element_type=jnp.float32)

    # ---- shortcut (projection conv + BN, or identity), add, ReLU -----------
    xr = take_rows(xwin, 1)                         # x rows at the out rows
    xs = xr[:, 0, 1:1 + wk] if stride == 1 else xr[:, 1, 0:wk]
    xs = xs.reshape(m2, cin)
    if has_sc:
        res = jnp.dot(xs, wsc_ref[...], preferred_element_type=jnp.float32)
    else:
        res = xs.astype(jnp.float32)                # identity: cin == c2p
    out = jnp.maximum(y3 + res + bt_ref[...], 0.0)
    o_ref[0] = out.reshape(tr, wk, c2p)[:, 0:wo, :].astype(o_ref.dtype)


# ------------------------------- glue (JAX) ---------------------------------

def fold_bn(gamma, beta, mean, var, conv_bias=None, eps=1e-5):
    scale = gamma / jnp.sqrt(var + eps)
    bias = beta - mean * scale
    if conv_bias is not None:
        bias = bias + conv_bias * scale
    return scale, bias


def residual_block2(x_nchw, p, stride, *, vmem_cap_bytes=None, num_cores=None):
    n, cin, h, w_sp = x_nchw.shape
    c1 = p["w1"].shape[0]
    c2 = p["w3"].shape[0]
    c1p, c2p = _cpad(c1), _cpad(c2)
    ho = (h - 1) // stride + 1
    wo = (w_sp - 1) // stride + 1
    p_ph = 1 if stride == 1 else 2                  # column phases
    wk = _round_up(w_sp if stride == 1 else wo, 8)  # conv2/conv3/out width
    wc = wk + 8                                     # y1 width incl. col halo
    wpad = p_ph * wc

    has_proj = "w_sc" in p
    if not has_proj:
        assert stride == 1 and cin == c2, (
            "identity shortcut requires stride == 1 and "
            "in_channels == out_channels2")
    # The kernel does a shortcut matmul either for the real projection or (for
    # channel counts below a lane) an identity embedding into c2p lanes.
    has_sc = has_proj or cin != c2p

    # ---- fold BN into the conv weights (f32), cast operands to bf16 --------
    s1, b1 = fold_bn(*p["bn1"])
    w1p = jnp.zeros((cin, c1p), jnp.float32).at[:, :c1].set(
        p["w1"][:, :, 0, 0].T * s1[None, :]).astype(jnp.bfloat16)
    b1p = jnp.zeros((1, c1p), jnp.float32).at[0, :c1].set(b1)

    s2, b2 = fold_bn(*p["bn2"])
    w2f = jnp.transpose(p["w2"], (2, 3, 1, 0)) * s2[None, None, None, :]
    w2p = jnp.zeros((3, 3, c1p, c1p), jnp.float32).at[:, :, :c1, :c1].set(w2f)
    w2p = w2p.reshape(3, 3 * c1p, c1p).astype(jnp.bfloat16)
    b2p = jnp.zeros((1, c1p), jnp.float32).at[0, :c1].set(b2)

    s3, b3 = fold_bn(*p["bn3"])
    w3p = jnp.zeros((c1p, c2p), jnp.float32).at[:c1, :c2].set(
        p["w3"][:, :, 0, 0].T * s3[None, :]).astype(jnp.bfloat16)
    btp = jnp.zeros((1, c2p), jnp.float32).at[0, :c2].set(b3)

    if has_proj:
        ssc, bsc = fold_bn(*p["bn_sc"], conv_bias=p["b_sc"])
        wscp = jnp.zeros((cin, c2p), jnp.float32).at[:, :c2].set(
            p["w_sc"][:, :, 0, 0].T * ssc[None, :]).astype(jnp.bfloat16)
        btp = btp.at[0, :c2].add(bsc)
    elif has_sc:
        wscp = jnp.zeros((cin, c2p), jnp.float32).at[:cin, :cin].set(
            jnp.eye(cin, dtype=jnp.float32)).astype(jnp.bfloat16)
    else:
        wscp = None

    # ---- generation-aware row tiling ----------------------------------------
    tr, rb, vmem_limit = _choose_row_tiling(
        n, ho, stride, p_ph, wc, wk, wo, cin, c1p, c2p, has_sc,
        vmem_cap_bytes, num_cores)
    trx = tr * stride
    hp2 = rb * trx + 2

    # ---- x: NCHW -> NHWC at TRUE channel width, with spatial halo padding ---
    x = jnp.transpose(x_nchw, (0, 2, 3, 1)).astype(jnp.bfloat16)
    x = jnp.pad(x, ((0, 0), (1, hp2 - 1 - h), (1, wpad - 1 - w_sp), (0, 0)))
    if stride == 2:
        # Even/odd column-phase split (single copy of x, true width) so the
        # strided 3x3 taps are aligned slices in the kernel.
        x = x.reshape(n, hp2, wc, 2, cin).transpose(0, 1, 3, 2, 4)
    else:
        x = x.reshape(n, hp2, 1, wc, cin)

    kernel = functools.partial(_bottleneck_kernel, stride=stride, tr=tr, h=h,
                               w_real=w_sp, wk=wk, wo=wo, has_sc=has_sc)

    def cmap(ni, ri):
        return (0, 0)

    in_specs = [
        # main rows of the halo window (orig rows [i*trx-1, i*trx+trx-1))
        pl.BlockSpec((1, trx, p_ph, wc, cin),
                     lambda ni, ri: (ni, ri, 0, 0, 0)),
        # the two bottom halo rows, as 1-row blocks (element == block index)
        pl.BlockSpec((1, 1, p_ph, wc, cin),
                     lambda ni, ri: (ni, ri * trx + trx, 0, 0, 0)),
        pl.BlockSpec((1, 1, p_ph, wc, cin),
                     lambda ni, ri: (ni, ri * trx + trx + 1, 0, 0, 0)),
        pl.BlockSpec((cin, c1p), cmap),
        pl.BlockSpec((1, c1p), cmap),
        pl.BlockSpec((3, 3 * c1p, c1p), lambda ni, ri: (0, 0, 0)),
        pl.BlockSpec((1, c1p), cmap),
        pl.BlockSpec((c1p, c2p), cmap),
    ]
    args = [x, x, x, w1p, b1p, w2p, b2p, w3p]
    if has_sc:
        in_specs.append(pl.BlockSpec((cin, c2p), cmap))
        args.append(wscp)
    in_specs.append(pl.BlockSpec((1, c2p), cmap))
    args.append(btp)

    out = pl.pallas_call(
        kernel,
        out_shape=jax.ShapeDtypeStruct((n, rb * tr, wo, c2p), jnp.bfloat16),
        grid_spec=pltpu.PrefetchScalarGridSpec(
            num_scalar_prefetch=0,
            grid=(n, rb),
            in_specs=in_specs,
            out_specs=pl.BlockSpec((1, tr, wo, c2p),
                                   lambda ni, ri: (ni, ri, 0, 0)),
        ),
        compiler_params=pltpu.CompilerParams(
            dimension_semantics=("parallel", "parallel"),
            vmem_limit_bytes=vmem_limit),
    )(*args)

    out = out[:, :ho, :, :c2]
    return jnp.transpose(out, (0, 3, 1, 2)).astype(x_nchw.dtype)


# ---------------------------- parameter setup --------------------------------

def bn_params(key, c):
    k1, k2, k3, k4 = jax.random.split(key, 4)
    gamma = 1.0 + 0.1 * jax.random.normal(k1, (c,), jnp.float32)
    beta = 0.1 * jax.random.normal(k2, (c,), jnp.float32)
    mean = 0.1 * jax.random.normal(k3, (c,), jnp.float32)
    var = 1.0 + 0.1 * jnp.abs(jax.random.normal(k4, (c,), jnp.float32))
    return (gamma, beta, mean, var)


def init_params(key, in_c, c1, c2, stride):
    ks = jax.random.split(key, 9)
    p = {
        "w1": 0.2 * jax.random.normal(ks[0], (c1, in_c, 1, 1), jnp.float32),
        "bn1": bn_params(ks[1], c1),
        "w2": 0.2 * jax.random.normal(ks[2], (c1, c1, 3, 3), jnp.float32),
        "bn2": bn_params(ks[3], c1),
        "w3": 0.2 * jax.random.normal(ks[4], (c2, c1, 1, 1), jnp.float32),
        "bn3": bn_params(ks[5], c2),
    }
    if stride != 1 or in_c != c2:
        p["w_sc"] = 0.2 * jax.random.normal(ks[6], (c2, in_c, 1, 1), jnp.float32)
        p["b_sc"] = 0.05 * jax.random.normal(ks[7], (c2,), jnp.float32)
        p["bn_sc"] = bn_params(ks[8], c2)
    return p


# ---------------------------- pure-JAX reference -----------------------------

def ref_forward(x, p, stride, eps=1e-5):
    def conv(x, w, s, pad):
        return lax.conv_general_dilated(
            x, w, window_strides=(s, s), padding=[(pad, pad), (pad, pad)],
            dimension_numbers=("NCHW", "OIHW", "NCHW"))

    def bn(x, bnp):
        g, b, m, v = (t.reshape(1, -1, 1, 1) for t in bnp)
        return (x - m) / jnp.sqrt(v + eps) * g + b

    y = jax.nn.relu(bn(conv(x, p["w1"], 1, 0), p["bn1"]))
    y = bn(conv(y, p["w2"], stride, 1), p["bn2"])
    y = bn(conv(y, p["w3"], 1, 0), p["bn3"])
    if "w_sc" in p:
        r = bn(conv(x, p["w_sc"], stride, 0) + p["b_sc"].reshape(1, -1, 1, 1),
               p["bn_sc"])
    else:
        r = x
    return jax.nn.relu(y + r)


# ---------------------------------- main -------------------------------------

if __name__ == "__main__":
    key = jax.random.PRNGKey(0)
    kx, kp, kx2, kp2 = jax.random.split(key, 4)

    # Test 1: projection shortcut (stride 2, channel expansion).
    N, Cin, H, W = 2, 4, 16, 16
    C1, C2, STRIDE = 8, 16, 2
    x = jax.random.normal(kx, (N, Cin, H, W), jnp.float32)
    params = init_params(kp, Cin, C1, C2, STRIDE)
    fwd = jax.jit(functools.partial(residual_block2, stride=STRIDE))
    out = fwd(x, params)
    jax.block_until_ready(out)
    ref = ref_forward(x, params, STRIDE)
    assert out.shape == ref.shape == (N, C2, H // STRIDE, W // STRIDE)
    err = float(jnp.max(jnp.abs(out - ref)))
    tol = 5e-2 * (1.0 + float(jnp.max(jnp.abs(ref))))   # bf16 operand rounding
    if err > tol:
        raise AssertionError(f"projection block mismatch: {err} > {tol}")

    # Test 2: identity shortcut (stride 1, in_channels == out_channels2).
    N2, C, H2, W2 = 2, 16, 16, 16
    x2 = jax.random.normal(kx2, (N2, C, H2, W2), jnp.float32)
    params2 = init_params(kp2, C, 8, C, 1)
    fwd2 = jax.jit(functools.partial(residual_block2, stride=1))
    out2 = fwd2(x2, params2)
    jax.block_until_ready(out2)
    ref2 = ref_forward(x2, params2, 1)
    assert out2.shape == ref2.shape == (N2, C, H2, W2)
    err2 = float(jnp.max(jnp.abs(out2 - ref2)))
    tol2 = 5e-2 * (1.0 + float(jnp.max(jnp.abs(ref2))))
    if err2 > tol2:
        raise AssertionError(f"identity block mismatch: {err2} > {tol2}")

    print("KERNEL_OK")
</pallas_src>

<mosaic_0001>
module attributes {stable_mosaic.version = 11 : i64} {
  func.func @_bottleneck_kernel(%arg0: i32, %arg1: i32, %arg2: memref<1x16x2x16x4xbf16, #tpu.memory_space<vmem>>, %arg3: memref<1x1x2x16x4xbf16, #tpu.memory_space<vmem>>, %arg4: memref<1x1x2x16x4xbf16, #tpu.memory_space<vmem>>, %arg5: memref<4x128xbf16, #tpu.memory_space<vmem>>, %arg6: memref<1x128xf32, #tpu.memory_space<vmem>>, %arg7: memref<3x384x128xbf16, #tpu.memory_space<vmem>>, %arg8: memref<1x128xf32, #tpu.memory_space<vmem>>, %arg9: memref<128x128xbf16, #tpu.memory_space<vmem>>, %arg10: memref<4x128xbf16, #tpu.memory_space<vmem>>, %arg11: memref<1x128xf32, #tpu.memory_space<vmem>>, %arg12: memref<1x8x8x128xbf16, #tpu.memory_space<vmem>>) attributes {dimension_semantics = [#tpu.dimension_semantics<parallel>, #tpu.dimension_semantics<parallel>], iteration_bounds = array<i64: 2, 1>, scalar_prefetch = 0 : i64, scratch_operands = 0 : i64, tpu.core_type = #tpu.core_type<tc>, window_params = [{transform_indices = @transform_0, window_bounds = array<i64: 1, 16, 2, 16, 4>}, {transform_indices = @transform_1, window_bounds = array<i64: 1, 1, 2, 16, 4>}, {transform_indices = @transform_2, window_bounds = array<i64: 1, 1, 2, 16, 4>}, {pipeline_mode = #tpu.pipeline_mode<synchronous>, transform_indices = @transform_3, window_bounds = array<i64: 4, 128>}, {pipeline_mode = #tpu.pipeline_mode<synchronous>, transform_indices = @transform_4, window_bounds = array<i64: 1, 128>}, {pipeline_mode = #tpu.pipeline_mode<synchronous>, transform_indices = @transform_5, window_bounds = array<i64: 3, 384, 128>}, {pipeline_mode = #tpu.pipeline_mode<synchronous>, transform_indices = @transform_6, window_bounds = array<i64: 1, 128>}, {pipeline_mode = #tpu.pipeline_mode<synchronous>, transform_indices = @transform_7, window_bounds = array<i64: 128, 128>}, {pipeline_mode = #tpu.pipeline_mode<synchronous>, transform_indices = @transform_8, window_bounds = array<i64: 4, 128>}, {pipeline_mode = #tpu.pipeline_mode<synchronous>, transform_indices = @transform_9, window_bounds = array<i64: 1, 128>}, {transform_indices = @transform_10, window_bounds = array<i64: 1, 8, 8, 128>}]} {
    %c0 = arith.constant 0 : index
    %c0_0 = arith.constant 0 : index
    %c0_1 = arith.constant 0 : index
    %c0_2 = arith.constant 0 : index
    %c0_3 = arith.constant 0 : index
    %0 = vector.load %arg2[%c0, %c0_0, %c0_1, %c0_2, %c0_3] : memref<1x16x2x16x4xbf16, #tpu.memory_space<vmem>>, vector<1x16x2x16x4xbf16>
    %1 = vector.shape_cast %0 : vector<1x16x2x16x4xbf16> to vector<16x2x16x4xbf16>
    %c0_4 = arith.constant 0 : index
    %c0_5 = arith.constant 0 : index
    %c0_6 = arith.constant 0 : index
    %c0_7 = arith.constant 0 : index
    %c0_8 = arith.constant 0 : index
    %2 = vector.load %arg3[%c0_4, %c0_5, %c0_6, %c0_7, %c0_8] : memref<1x1x2x16x4xbf16, #tpu.memory_space<vmem>>, vector<1x1x2x16x4xbf16>
    %3 = vector.shape_cast %2 : vector<1x1x2x16x4xbf16> to vector<1x2x16x4xbf16>
    %c0_9 = arith.constant 0 : index
    %c0_10 = arith.constant 0 : index
    %c0_11 = arith.constant 0 : index
    %c0_12 = arith.constant 0 : index
    %c0_13 = arith.constant 0 : index
    %4 = vector.load %arg4[%c0_9, %c0_10, %c0_11, %c0_12, %c0_13] : memref<1x1x2x16x4xbf16, #tpu.memory_space<vmem>>, vector<1x1x2x16x4xbf16>
    %5 = vector.shape_cast %4 : vector<1x1x2x16x4xbf16> to vector<1x2x16x4xbf16>
    %6 = tpu.concatenate %1, %3, %5 in 0 : vector<16x2x16x4xbf16>, vector<1x2x16x4xbf16>, vector<1x2x16x4xbf16> -> vector<18x2x16x4xbf16>
    %7 = vector.shape_cast %6 : vector<18x2x16x4xbf16> to vector<576x4xbf16>
    %c0_14 = arith.constant 0 : index
    %c0_15 = arith.constant 0 : index
    %8 = vector.load %arg5[%c0_14, %c0_15] : memref<4x128xbf16, #tpu.memory_space<vmem>>, vector<4x128xbf16>
    %cst = arith.constant dense<0.000000e+00> : vector<576x128xf32>
    %9 = tpu.matmul %7, %8, %cst {dimension_numbers = #tpu.dot_dimension_numbers<[1], [0], [0], [1], [0, 0, 1, 1], [], []>} : vector<576x4xbf16>, vector<4x128xbf16>, vector<576x128xf32> -> vector<576x128xf32>
    %c0_16 = arith.constant 0 : index
    %c0_17 = arith.constant 0 : index
    %10 = vector.load %arg6[%c0_16, %c0_17] : memref<1x128xf32, #tpu.memory_space<vmem>>, vector<1x128xf32>
    %11 = vector.broadcast %10 : vector<1x128xf32> to vector<576x128xf32>
    %12 = arith.addf %9, %11 : vector<576x128xf32>
    %cst_18 = arith.constant 0.000000e+00 : f32
    %13 = vector.broadcast %cst_18 : f32 to vector<576x128xf32>
    %14 = arith.maximumf %12, %13 : vector<576x128xf32>
    %15 = vector.shape_cast %14 : vector<576x128xf32> to vector<18x2x16x128xf32>
    %c16_i32 = arith.constant 16 : i32
    %16 = arith.muli %arg1, %c16_i32 : i32
    %c1_i32 = arith.constant 1 : i32
    %17 = arith.subi %16, %c1_i32 : i32
    %18 = tpu.iota {dimensions = array<i32: 0>} : vector<18x2x16x1xi32>
    %19 = vector.broadcast %17 : i32 to vector<18x2x16x1xi32>
    %20 = arith.addi %19, %18 : vector<18x2x16x1xi32>
    %21 = tpu.iota {dimensions = array<i32: 2>} : vector<18x2x16x1xi32>
    %c2_i32 = arith.constant 2 : i32
    %22 = vector.broadcast %c2_i32 : i32 to vector<18x2x16x1xi32>
    %23 = arith.muli %22, %21 : vector<18x2x16x1xi32>
    %24 = tpu.iota {dimensions = array<i32: 1>} : vector<18x2x16x1xi32>
    %25 = arith.addi %23, %24 : vector<18x2x16x1xi32>
    %c0_i32 = arith.constant 0 : i32
    %26 = vector.broadcast %c0_i32 : i32 to vector<18x2x16x1xi32>
    %27 = arith.cmpi sge, %20, %26 : vector<18x2x16x1xi32>
    %c16_i32_19 = arith.constant 16 : i32
    %28 = vector.broadcast %c16_i32_19 : i32 to vector<18x2x16x1xi32>
    %29 = arith.cmpi slt, %20, %28 : vector<18x2x16x1xi32>
    %30 = arith.andi %27, %29 : vector<18x2x16x1xi1>
    %c1_i32_20 = arith.constant 1 : i32
    %31 = vector.broadcast %c1_i32_20 : i32 to vector<18x2x16x1xi32>
    %32 = arith.cmpi sge, %25, %31 : vector<18x2x16x1xi32>
    %33 = arith.andi %30, %32 : vector<18x2x16x1xi1>
    %c16_i32_21 = arith.constant 16 : i32
    %34 = vector.broadcast %c16_i32_21 : i32 to vector<18x2x16x1xi32>
    %35 = arith.cmpi sle, %25, %34 : vector<18x2x16x1xi32>
    %36 = arith.andi %33, %35 : vector<18x2x16x1xi1>
    %cst_22 = arith.constant 0.000000e+00 : f32
    %37 = vector.shape_cast %36 : vector<18x2x16x1xi1> to vector<18x2x16x1xi1>
    %38 = vector.broadcast %37 : vector<18x2x16x1xi1> to vector<18x2x16x128xi1>
    %39 = vector.broadcast %cst_22 : f32 to vector<18x2x16x128xf32>
    %40 = arith.select %38, %15, %39 : vector<18x2x16x128xi1>, vector<18x2x16x128xf32>
    %41 = arith.truncf %40 : vector<18x2x16x128xf32> to vector<18x2x16x128xbf16>
    %42 = vector.extract_strided_slice %41 {offsets = [0, 0, 0, 0], sizes = [16, 2, 16, 128], strides = [1, 1, 1, 1]} : vector<18x2x16x128xbf16> to vector<16x2x16x128xbf16>
    %43 = vector.shape_cast %42 : vector<16x2x16x128xbf16> to vector<8x2x2x16x128xbf16>
    %44 = vector.extract_strided_slice %43 {offsets = [0, 0, 0, 0, 0], sizes = [8, 1, 2, 16, 128], strides = [1, 1, 1, 1, 1]} : vector<8x2x2x16x128xbf16> to vector<8x1x2x16x128xbf16>
    %45 = vector.shape_cast %44 : vector<8x1x2x16x128xbf16> to vector<8x2x16x128xbf16>
    %46 = vector.extract_strided_slice %45 {offsets = [0, 0, 0, 0], sizes = [8, 1, 8, 128], strides = [1, 1, 1, 1]} : vector<8x2x16x128xbf16> to vector<8x1x8x128xbf16>
    %47 = vector.shape_cast %46 : vector<8x1x8x128xbf16> to vector<8x8x128xbf16>
    %48 = vector.extract_strided_slice %45 {offsets = [0, 1, 0, 0], sizes = [8, 1, 8, 128], strides = [1, 1, 1, 1]} : vector<8x2x16x128xbf16> to vector<8x1x8x128xbf16>
    %49 = vector.shape_cast %48 : vector<8x1x8x128xbf16> to vector<8x8x128xbf16>
    %50 = vector.extract_strided_slice %45 {offsets = [0, 0, 1, 0], sizes = [8, 1, 8, 128], strides = [1, 1, 1, 1]} : vector<8x2x16x128xbf16> to vector<8x1x8x128xbf16>
    %51 = vector.shape_cast %50 : vector<8x1x8x128xbf16> to vector<8x8x128xbf16>
    %52 = vector.shape_cast %47 : vector<8x8x128xbf16> to vector<64x128xbf16>
    %53 = vector.shape_cast %49 : vector<8x8x128xbf16> to vector<64x128xbf16>
    %54 = vector.shape_cast %51 : vector<8x8x128xbf16> to vector<64x128xbf16>
    %55 = tpu.concatenate %52, %53, %54 in 1 : vector<64x128xbf16>, vector<64x128xbf16>, vector<64x128xbf16> -> vector<64x384xbf16>
    %c0_23 = arith.constant 0 : index
    %c0_24 = arith.constant 0 : index
    %c0_25 = arith.constant 0 : index
    %56 = vector.load %arg7[%c0_23, %c0_24, %c0_25] : memref<3x384x128xbf16, #tpu.memory_space<vmem>>, vector<1x384x128xbf16>
    %57 = vector.shape_cast %56 : vector<1x384x128xbf16> to vector<384x128xbf16>
    %cst_26 = arith.constant dense<0.000000e+00> : vector<64x128xf32>
    %58 = tpu.matmul %55, %57, %cst_26 {dimension_numbers = #tpu.dot_dimension_numbers<[1], [0], [0], [1], [0, 0, 1, 1], [], []>} : vector<64x384xbf16>, vector<384x128xbf16>, vector<64x128xf32> -> vector<64x128xf32>
    %59 = vector.extract_strided_slice %41 {offsets = [1, 0, 0, 0], sizes = [16, 2, 16, 128], strides = [1, 1, 1, 1]} : vector<18x2x16x128xbf16> to vector<16x2x16x128xbf16>
    %60 = vector.shape_cast %59 : vector<16x2x16x128xbf16> to vector<8x2x2x16x128xbf16>
    %61 = vector.extract_strided_slice %60 {offsets = [0, 0, 0, 0, 0], sizes = [8, 1, 2, 16, 128], strides = [1, 1, 1, 1, 1]} : vector<8x2x2x16x128xbf16> to vector<8x1x2x16x128xbf16>
    %62 = vector.shape_cast %61 : vector<8x1x2x16x128xbf16> to vector<8x2x16x128xbf16>
    %63 = vector.extract_strided_slice %62 {offsets = [0, 0, 0, 0], sizes = [8, 1, 8, 128], strides = [1, 1, 1, 1]} : vector<8x2x16x128xbf16> to vector<8x1x8x128xbf16>
    %64 = vector.shape_cast %63 : vector<8x1x8x128xbf16> to vector<8x8x128xbf16>
    %65 = vector.extract_strided_slice %62 {offsets = [0, 1, 0, 0], sizes = [8, 1, 8, 128], strides = [1, 1, 1, 1]} : vector<8x2x16x128xbf16> to vector<8x1x8x128xbf16>
    %66 = vector.shape_cast %65 : vector<8x1x8x128xbf16> to vector<8x8x128xbf16>
    %67 = vector.extract_strided_slice %62 {offsets = [0, 0, 1, 0], sizes = [8, 1, 8, 128], strides = [1, 1, 1, 1]} : vector<8x2x16x128xbf16> to vector<8x1x8x128xbf16>
    %68 = vector.shape_cast %67 : vector<8x1x8x128xbf16> to vector<8x8x128xbf16>
    %69 = vector.shape_cast %64 : vector<8x8x128xbf16> to vector<64x128xbf16>
    %70 = vector.shape_cast %66 : vector<8x8x128xbf16> to vector<64x128xbf16>
    %71 = vector.shape_cast %68 : vector<8x8x128xbf16> to vector<64x128xbf16>
    %72 = tpu.concatenate %69, %70, %71 in 1 : vector<64x128xbf16>, vector<64x128xbf16>, vector<64x128xbf16> -> vector<64x384xbf16>
    %c1 = arith.constant 1 : index
    %c0_27 = arith.constant 0 : index
    %c0_28 = arith.constant 0 : index
    %73 = vector.load %arg7[%c1, %c0_27, %c0_28] : memref<3x384x128xbf16, #tpu.memory_space<vmem>>, vector<1x384x128xbf16>
    %74 = vector.shape_cast %73 : vector<1x384x128xbf16> to vector<384x128xbf16>
    %cst_29 = arith.constant dense<0.000000e+00> : vector<64x128xf32>
    %75 = tpu.matmul %72, %74, %cst_29 {dimension_numbers = #tpu.dot_dimension_numbers<[1], [0], [0], [1], [0, 0, 1, 1], [], []>} : vector<64x384xbf16>, vector<384x128xbf16>, vector<64x128xf32> -> vector<64x128xf32>
    %76 = arith.addf %58, %75 : vector<64x128xf32>
    %77 = vector.extract_strided_slice %41 {offsets = [2, 0, 0, 0], sizes = [16, 2, 16, 128], strides = [1, 1, 1, 1]} : vector<18x2x16x128xbf16> to vector<16x2x16x128xbf16>
    %78 = vector.shape_cast %77 : vector<16x2x16x128xbf16> to vector<8x2x2x16x128xbf16>
    %79 = vector.extract_strided_slice %78 {offsets = [0, 0, 0, 0, 0], sizes = [8, 1, 2, 16, 128], strides = [1, 1, 1, 1, 1]} : vector<8x2x2x16x128xbf16> to vector<8x1x2x16x128xbf16>
    %80 = vector.shape_cast %79 : vector<8x1x2x16x128xbf16> to vector<8x2x16x128xbf16>
    %81 = vector.extract_strided_slice %80 {offsets = [0, 0, 0, 0], sizes = [8, 1, 8, 128], strides = [1, 1, 1, 1]} : vector<8x2x16x128xbf16> to vector<8x1x8x128xbf16>
    %82 = vector.shape_cast %81 : vector<8x1x8x128xbf16> to vector<8x8x128xbf16>
    %83 = vector.extract_strided_slice %80 {offsets = [0, 1, 0, 0], sizes = [8, 1, 8, 128], strides = [1, 1, 1, 1]} : vector<8x2x16x128xbf16> to vector<8x1x8x128xbf16>
    %84 = vector.shape_cast %83 : vector<8x1x8x128xbf16> to vector<8x8x128xbf16>
    %85 = vector.extract_strided_slice %80 {offsets = [0, 0, 1, 0], sizes = [8, 1, 8, 128], strides = [1, 1, 1, 1]} : vector<8x2x16x128xbf16> to vector<8x1x8x128xbf16>
    %86 = vector.shape_cast %85 : vector<8x1x8x128xbf16> to vector<8x8x128xbf16>
    %87 = vector.shape_cast %82 : vector<8x8x128xbf16> to vector<64x128xbf16>
    %88 = vector.shape_cast %84 : vector<8x8x128xbf16> to vector<64x128xbf16>
    %89 = vector.shape_cast %86 : vector<8x8x128xbf16> to vector<64x128xbf16>
    %90 = tpu.concatenate %87, %88, %89 in 1 : vector<64x128xbf16>, vector<64x128xbf16>, vector<64x128xbf16> -> vector<64x384xbf16>
    %c2 = arith.constant 2 : index
    %c0_30 = arith.constant 0 : index
    %c0_31 = arith.constant 0 : index
    %91 = vector.load %arg7[%c2, %c0_30, %c0_31] : memref<3x384x128xbf16, #tpu.memory_space<vmem>>, vector<1x384x128xbf16>
    %92 = vector.shape_cast %91 : vector<1x384x128xbf16> to vector<384x128xbf16>
    %cst_32 = arith.constant dense<0.000000e+00> : vector<64x128xf32>
    %93 = tpu.matmul %90, %92, %cst_32 {dimension_numbers = #tpu.dot_dimension_numbers<[1], [0], [0], [1], [0, 0, 1, 1], [], []>} : vector<64x384xbf16>, vector<384x128xbf16>, vector<64x128xf32> -> vector<64x128xf32>
    %94 = arith.addf %76, %93 : vector<64x128xf32>
    %c0_33 = arith.constant 0 : index
    %c0_34 = arith.constant 0 : index
    %95 = vector.load %arg8[%c0_33, %c0_34] : memref<1x128xf32, #tpu.memory_space<vmem>>, vector<1x128xf32>
    %96 = vector.broadcast %95 : vector<1x128xf32> to vector<64x128xf32>
    %97 = arith.addf %94, %96 : vector<64x128xf32>
    %98 = arith.truncf %97 : vector<64x128xf32> to vector<64x128xbf16>
    %c0_35 = arith.constant 0 : index
    %c0_36 = arith.constant 0 : index
    %99 = vector.load %arg9[%c0_35, %c0_36] : memref<128x128xbf16, #tpu.memory_space<vmem>>, vector<128x128xbf16>
    %cst_37 = arith.constant dense<0.000000e+00> : vector<64x128xf32>
    %100 = tpu.matmul %98, %99, %cst_37 {dimension_numbers = #tpu.dot_dimension_numbers<[1], [0], [0], [1], [0, 0, 1, 1], [], []>} : vector<64x128xbf16>, vector<128x128xbf16>, vector<64x128xf32> -> vector<64x128xf32>
    %101 = vector.extract_strided_slice %6 {offsets = [1, 0, 0, 0], sizes = [16, 2, 16, 4], strides = [1, 1, 1, 1]} : vector<18x2x16x4xbf16> to vector<16x2x16x4xbf16>
    %102 = vector.shape_cast %101 : vector<16x2x16x4xbf16> to vector<8x2x2x16x4xbf16>
    %103 = vector.extract_strided_slice %102 {offsets = [0, 0, 0, 0, 0], sizes = [8, 1, 2, 16, 4], strides = [1, 1, 1, 1, 1]} : vector<8x2x2x16x4xbf16> to vector<8x1x2x16x4xbf16>
    %104 = vector.shape_cast %103 : vector<8x1x2x16x4xbf16> to vector<8x2x16x4xbf16>
    %105 = vector.extract_strided_slice %104 {offsets = [0, 1, 0, 0], sizes = [8, 1, 8, 4], strides = [1, 1, 1, 1]} : vector<8x2x16x4xbf16> to vector<8x1x8x4xbf16>
    %106 = vector.shape_cast %105 : vector<8x1x8x4xbf16> to vector<8x8x4xbf16>
    %107 = vector.shape_cast %106 : vector<8x8x4xbf16> to vector<64x4xbf16>
    %c0_38 = arith.constant 0 : index
    %c0_39 = arith.constant 0 : index
    %108 = vector.load %arg10[%c0_38, %c0_39] : memref<4x128xbf16, #tpu.memory_space<vmem>>, vector<4x128xbf16>
    %cst_40 = arith.constant dense<0.000000e+00> : vector<64x128xf32>
    %109 = tpu.matmul %107, %108, %cst_40 {dimension_numbers = #tpu.dot_dimension_numbers<[1], [0], [0], [1], [0, 0, 1, 1], [], []>} : vector<64x4xbf16>, vector<4x128xbf16>, vector<64x128xf32> -> vector<64x128xf32>
    %110 = arith.addf %100, %109 : vector<64x128xf32>
    %c0_41 = arith.constant 0 : index
    %c0_42 = arith.constant 0 : index
    %111 = vector.load %arg11[%c0_41, %c0_42] : memref<1x128xf32, #tpu.memory_space<vmem>>, vector<1x128xf32>
    %112 = vector.broadcast %111 : vector<1x128xf32> to vector<64x128xf32>
    %113 = arith.addf %110, %112 : vector<64x128xf32>
    %cst_43 = arith.constant 0.000000e+00 : f32
    %114 = vector.broadcast %cst_43 : f32 to vector<64x128xf32>
    %115 = arith.maximumf %113, %114 : vector<64x128xf32>
    %116 = vector.shape_cast %115 : vector<64x128xf32> to vector<8x8x128xf32>
    %117 = arith.truncf %116 : vector<8x8x128xf32> to vector<8x8x128xbf16>
    %c0_44 = arith.constant 0 : index
    %c0_45 = arith.constant 0 : index
    %c0_46 = arith.constant 0 : index
    %c0_47 = arith.constant 0 : index
    %118 = vector.load %arg12[%c0_44, %c0_45, %c0_46, %c0_47] : memref<1x8x8x128xbf16, #tpu.memory_space<vmem>>, vector<1x8x8x128xbf16>
    %119 = vector.shape_cast %118 : vector<1x8x8x128xbf16> to vector<8x8x128xbf16>
    %120 = vector.shape_cast %117 : vector<8x8x128xbf16> to vector<1x8x8x128xbf16>
    tpu.vector_store %arg12[%c0_44, %c0_45, %c0_46, %c0_47], %120 {strides = array<i32>} : memref<1x8x8x128xbf16, #tpu.memory_space<vmem>>, vector<1x8x8x128xbf16>,
    return
  }
  func.func @transform_0(%arg0: i32, %arg1: i32) -> (i32, i32, i32, i32, i32) {
    %c0_i32 = arith.constant 0 : i32
    %c0_i32_0 = arith.constant 0 : i32
    %c0_i32_1 = arith.constant 0 : i32
    %c0_i32_2 = arith.constant 0 : i32
    return %arg0, %arg1, %c0_i32, %c0_i32_0, %c0_i32_1 : i32, i32, i32, i32, i32
  }
  func.func @transform_1(%arg0: i32, %arg1: i32) -> (i32, i32, i32, i32, i32) {
    %c16_i32 = arith.constant 16 : i32
    %0 = arith.muli %arg1, %c16_i32 : i32
    %c16_i32_0 = arith.constant 16 : i32
    %1 = arith.addi %0, %c16_i32_0 : i32
    %c0_i32 = arith.constant 0 : i32
    %c0_i32_1 = arith.constant 0 : i32
    %c0_i32_2 = arith.constant 0 : i32
    %c0_i32_3 = arith.constant 0 : i32
    return %arg0, %1, %c0_i32, %c0_i32_1, %c0_i32_2 : i32, i32, i32, i32, i32
  }
  func.func @transform_2(%arg0: i32, %arg1: i32) -> (i32, i32, i32, i32, i32) {
    %c16_i32 = arith.constant 16 : i32
    %0 = arith.muli %arg1, %c16_i32 : i32
    %c16_i32_0 = arith.constant 16 : i32
    %1 = arith.addi %0, %c16_i32_0 : i32
    %c1_i32 = arith.constant 1 : i32
    %2 = arith.addi %1, %c1_i32 : i32
    %c0_i32 = arith.constant 0 : i32
    %c0_i32_1 = arith.constant 0 : i32
    %c0_i32_2 = arith.constant 0 : i32
    %c0_i32_3 = arith.constant 0 : i32
    return %arg0, %2, %c0_i32, %c0_i32_1, %c0_i32_2 : i32, i32, i32, i32, i32
  }
  func.func @transform_3(%arg0: i32, %arg1: i32) -> (i32, i32) {
    %c0_i32 = arith.constant 0 : i32
    %c0_i32_0 = arith.constant 0 : i32
    %c0_i32_1 = arith.constant 0 : i32
    return %c0_i32, %c0_i32_0 : i32, i32
  }
  func.func @transform_4(%arg0: i32, %arg1: i32) -> (i32, i32) {
    %c0_i32 = arith.constant 0 : i32
    %c0_i32_0 = arith.constant 0 : i32
    %c0_i32_1 = arith.constant 0 : i32
    return %c0_i32, %c0_i32_0 : i32, i32
  }
  func.func @transform_5(%arg0: i32, %arg1: i32) -> (i32, i32, i32) {
    %c0_i32 = arith.constant 0 : i32
    %c0_i32_0 = arith.constant 0 : i32
    %c0_i32_1 = arith.constant 0 : i32
    %c0_i32_2 = arith.constant 0 : i32
    return %c0_i32, %c0_i32_0, %c0_i32_1 : i32, i32, i32
  }
  func.func @transform_6(%arg0: i32, %arg1: i32) -> (i32, i32) {
    %c0_i32 = arith.constant 0 : i32
    %c0_i32_0 = arith.constant 0 : i32
    %c0_i32_1 = arith.constant 0 : i32
    return %c0_i32, %c0_i32_0 : i32, i32
  }
  func.func @transform_7(%arg0: i32, %arg1: i32) -> (i32, i32) {
    %c0_i32 = arith.constant 0 : i32
    %c0_i32_0 = arith.constant 0 : i32
    %c0_i32_1 = arith.constant 0 : i32
    return %c0_i32, %c0_i32_0 : i32, i32
  }
  func.func @transform_8(%arg0: i32, %arg1: i32) -> (i32, i32) {
    %c0_i32 = arith.constant 0 : i32
    %c0_i32_0 = arith.constant 0 : i32
    %c0_i32_1 = arith.constant 0 : i32
    return %c0_i32, %c0_i32_0 : i32, i32
  }
  func.func @transform_9(%arg0: i32, %arg1: i32) -> (i32, i32) {
    %c0_i32 = arith.constant 0 : i32
    %c0_i32_0 = arith.constant 0 : i32
    %c0_i32_1 = arith.constant 0 : i32
    return %c0_i32, %c0_i32_0 : i32, i32
  }
  func.func @transform_10(%arg0: i32, %arg1: i32) -> (i32, i32, i32, i32) {
    %c0_i32 = arith.constant 0 : i32
    %c0_i32_0 = arith.constant 0 : i32
    %c0_i32_1 = arith.constant 0 : i32
    return %arg0, %arg1, %c0_i32, %c0_i32_0 : i32, i32, i32, i32
  }
}

</mosaic_0001>

<llo_original>
// kernel: residual_block2.1
$region0: #{residual_block2.1}
  #allocation0 [shape = 'u32[]', space=smem, size = 0x4, offset = 0x4, fixed_abs, tag = 'smem constant byte address 0x4 - core index']
  #allocation1 [shape = 'u32[144,128]{1,0:T(1,128)}', space=vmem, size = 0x12000, scoped, tag = 'internal scratch']
  %s0 = inlined_call_operand.vmem [shape: bf16[2,18,2,16,4], index: 0, kind: input, shape index: {}, may-alias: {0,1,2}]
  %s1 = inlined_call_operand.vmem [shape: bf16[2,18,2,16,4], index: 1, kind: input, shape index: {}, may-alias: {0,1,2}]
  %s2 = inlined_call_operand.vmem [shape: bf16[2,18,2,16,4], index: 2, kind: input, shape index: {}, may-alias: {0,1,2}]
  %s3 = inlined_call_operand.vmem [shape: bf16[4,128], index: 3, kind: input, shape index: {}]
  %s4 = inlined_call_operand.vmem [shape: f32[1,128], index: 4, kind: input, shape index: {}]
  %s5 = inlined_call_operand.vmem [shape: bf16[3,384,128], index: 5, kind: input, shape index: {}]
  %s6 = inlined_call_operand.vmem [shape: f32[1,128], index: 6, kind: input, shape index: {}]
  %s7 = inlined_call_operand.vmem [shape: bf16[128,128], index: 7, kind: input, shape index: {}]
  %s8 = inlined_call_operand.vmem [shape: bf16[4,128], index: 8, kind: input, shape index: {}]
  %s9 = inlined_call_operand.vmem [shape: f32[1,128], index: 9, kind: input, shape index: {}]
  %s10 = inlined_call_operand.vmem [shape: bf16[2,8,8,128], index: 10, kind: output, shape index: {}]
  %s11 = sld [smem:[#allocation0]]
  $region73: #{residual_block2.1} parent=0
    _
  %s13 = ssub.s32 1, %s11
  %s14 = scalar_select 0, %s13, %s11
  loop: start=0, step=1, limit=4
  $region2: #{residual_block2.1} parent=0 // loop_pre_header
    _
  $region3: #{residual_block2.1} parent=0 // loop_header
    %s16 = sphi 0, %s20
    %p17 = scmp.ge.s32.totalorder %s16, 4
    %s23 = sphi 0, %s35
    %s24 = sphi 0, %s31
    %s25 = sphi 0, %s23
    %s26 = sphi 0, %s24
    %s27 = sphi 0, %s25
    %s28 = sphi 0, %s26
    %s40 = sphi 0, %s42
    %s43 = sphi 0, %s40
    %s44 = sphi 0, %s43
    %s60 = sphi 0, %s44
    %s72 = sphi 0, %s74
    %s75 = sphi 0, %s72
    %s76 = sphi 0, %s75
    %s92 = sphi 0, %s76
    %s104 = sphi 0, %s106
    %s107 = sphi 0, %s104
    %s108 = sphi 0, %s107
    %s124 = sphi 0, %s108
    %s128 = sphi 0, %s128
    %s130 = sphi 0, %s128
    %s131 = sphi 0, %s130
    %s145 = sphi 0, %s131
    %s149 = sphi 0, %s149
    %s151 = sphi 0, %s149
    %s152 = sphi 0, %s151
    %s166 = sphi 0, %s152
    %s170 = sphi 0, %s170
    %s172 = sphi 0, %s170
    %s173 = sphi 0, %s172
    %s187 = sphi 0, %s173
    %s191 = sphi 0, %s191
    %s193 = sphi 0, %s191
    %s194 = sphi 0, %s193
    %s208 = sphi 0, %s194
    %s212 = sphi 0, %s212
    %s214 = sphi 0, %s212
    %s215 = sphi 0, %s214
    %s229 = sphi 0, %s215
    %s233 = sphi 0, %s233
    %s235 = sphi 0, %s233
    %s236 = sphi 0, %s235
    %s250 = sphi 0, %s236
    %s254 = sphi 0, %s254
    %s256 = sphi 0, %s254
    %s257 = sphi 0, %s256
    %s271 = sphi 0, %s257
    %s279 = sphi 0, %s281
    %s282 = sphi 0, %s279
    %s283 = sphi 0, %s282
    %s299 = sphi 0, %s283
  $region4: #{residual_block2.1} parent=0 // loop_header_branch
    %19 = sbr.rel (%p17) target = $region8
  $region5: #{residual_block2.1} parent=0 // loop_body
    %s21 = ssub.s32 %s16, 1
    %s22 = ssub.s32 %s16, 2
    %s29 = sadd.s32 1, %s24
    %p30 = scmp.ge.s32.totalorder %s29, 1
    %s31 = scalar_select %p30, 0, %s29
    %s32 = sadd.s32 1, %s23
    %s33 = scalar_select %p30, %s32, %s23
    %p34 = scmp.ge.s32.totalorder %s33, 2
    %s35 = scalar_select %p34, 0, %s33
    %s36 = ssub.s32 %s23, %s35
    %s37 = ssub.s32 %s24, %s31
    %s38 = sor.u32 %s36, %s37
    %p39 = scmp.eq.s32.totalorder %s38, 0
    %s41 = sadd.s32 %s40, 1
    %s42 = scalar_select %p39, %s40, %s41
    %p45 = pneg %p39
    %p46 = scmp.eq.s32.totalorder %s16, 1
    %p47 = por %p45, %p46
    %p48 = scmp.ne.s32.totalorder %s40, %s43
    %p49 = scmp.eq.s32.totalorder %s16, 0
    %p50 = por %p48, %p49
    %p51 = scmp.ne.s32.totalorder %s40, %s43
    %p52 = scmp.eq.s32.totalorder %s21, 1
    %p53 = por %p51, %p52
    %p54 = scmp.ne.s32.totalorder %s43, %s44
    %p55 = scmp.eq.s32.totalorder %s21, 0
    %p56 = por %p54, %p55
    %p57 = scmp.ne.s32.totalorder %s43, %s44
    %p58 = scmp.eq.s32.totalorder %s22, 1
    %p59 = por %p57, %p58
    %p61 = scmp.ne.s32.totalorder %s44, %s60
    %p62 = scmp.eq.s32.totalorder %s22, 0
    %p63 = por %p61, %p62
    %s64 = smul.u32 %s24, 16
    %s65 = sadd.s32 %s64, 16
    %s66 = smul.u32 %s31, 16
    %s67 = sadd.s32 %s66, 16
    %s68 = ssub.s32 %s23, %s35
    %s69 = ssub.s32 %s65, %s67
    %s70 = sor.u32 %s68, %s69
    %p71 = scmp.eq.s32.totalorder %s70, 0
    %s73 = sadd.s32 %s72, 1
    %s74 = scalar_select %p71, %s72, %s73
    %p77 = pneg %p71
    %p78 = scmp.eq.s32.totalorder %s16, 1
    %p79 = por %p77, %p78
    %p80 = scmp.ne.s32.totalorder %s72, %s75
    %p81 = scmp.eq.s32.totalorder %s16, 0
    %p82 = por %p80, %p81
    %p83 = scmp.ne.s32.totalorder %s72, %s75
    %p84 = scmp.eq.s32.totalorder %s21, 1
    %p85 = por %p83, %p84
    %p86 = scmp.ne.s32.totalorder %s75, %s76
    %p87 = scmp.eq.s32.totalorder %s21, 0
    %p88 = por %p86, %p87
    %p89 = scmp.ne.s32.totalorder %s75, %s76
    %p90 = scmp.eq.s32.totalorder %s22, 1
    %p91 = por %p89, %p90
    %p93 = scmp.ne.s32.totalorder %s76, %s92
    %p94 = scmp.eq.s32.totalorder %s22, 0
    %p95 = por %p93, %p94
    %s96 = smul.u32 %s24, 16
    %s97 = sadd.s32 %s96, 17
    %s98 = smul.u32 %s31, 16
    %s99 = sadd.s32 %s98, 17
    %s100 = ssub.s32 %s23, %s35
    %s101 = ssub.s32 %s97, %s99
    %s102 = sor.u32 %s100, %s101
    %p103 = scmp.eq.s32.totalorder %s102, 0
    %s105 = sadd.s32 %s104, 1
    %s106 = scalar_select %p103, %s104, %s105
    %p109 = pneg %p103
    %p110 = scmp.eq.s32.totalorder %s16, 1
    %p111 = por %p109, %p110
    %p112 = scmp.ne.s32.totalorder %s104, %s107
    %p113 = scmp.eq.s32.totalorder %s16, 0
    %p114 = por %p112, %p113
    %p115 = scmp.ne.s32.totalorder %s104, %s107
    %p116 = scmp.eq.s32.totalorder %s21, 1
    %p117 = por %p115, %p116
    %p118 = scmp.ne.s32.totalorder %s107, %s108
    %p119 = scmp.eq.s32.totalorder %s21, 0
    %p120 = por %p118, %p119
    %p121 = scmp.ne.s32.totalorder %s107, %s108
    %p122 = scmp.eq.s32.totalorder %s22, 1
    %p123 = por %p121, %p122
    %p125 = scmp.ne.s32.totalorder %s108, %s124
    %p126 = scmp.eq.s32.totalorder %s22, 0
    %p127 = por %p125, %p126
    %s129 = sadd.s32 %s128, 1
    %p132 = scmp.eq.s32.totalorder %s16, 1
    %p133 = scmp.ne.s32.totalorder %s128, %s130
    %p134 = scmp.eq.s32.totalorder %s16, 0
    %p135 = por %p133, %p134
    %p136 = scmp.ne.s32.totalorder %s128, %s130
    %p137 = scmp.eq.s32.totalorder %s21, 1
    %p138 = por %p136, %p137
    %p139 = scmp.ne.s32.totalorder %s130, %s131
    %p140 = scmp.eq.s32.totalorder %s21, 0
    %p141 = por %p139, %p140
    %p142 = scmp.ne.s32.totalorder %s130, %s131
    %p143 = scmp.eq.s32.totalorder %s22, 1
    %p144 = por %p142, %p143
    %p146 = scmp.ne.s32.totalorder %s131, %s145
    %p147 = scmp.eq.s32.totalorder %s22, 0
    %p148 = por %p146, %p147
    %s150 = sadd.s32 %s149, 1
    %p153 = scmp.eq.s32.totalorder %s16, 1
    %p154 = scmp.ne.s32.totalorder %s149, %s151
    %p155 = scmp.eq.s32.totalorder %s16, 0
    %p156 = por %p154, %p155
    %p157 = scmp.ne.s32.totalorder %s149, %s151
    %p158 = scmp.eq.s32.totalorder %s21, 1
    %p159 = por %p157, %p158
    %p160 = scmp.ne.s32.totalorder %s151, %s152
    %p161 = scmp.eq.s32.totalorder %s21, 0
    %p162 = por %p160, %p161
    %p163 = scmp.ne.s32.totalorder %s151, %s152
    %p164 = scmp.eq.s32.totalorder %s22, 1
    %p165 = por %p163, %p164
    %p167 = scmp.ne.s32.totalorder %s152, %s166
    %p168 = scmp.eq.s32.totalorder %s22, 0
    %p169 = por %p167, %p168
    %s171 = sadd.s32 %s170, 1
    %p174 = scmp.eq.s32.totalorder %s16, 1
    %p175 = scmp.ne.s32.totalorder %s170, %s172
    %p176 = scmp.eq.s32.totalorder %s16, 0
    %p177 = por %p175, %p176
    %p178 = scmp.ne.s32.totalorder %s170, %s172
    %p179 = scmp.eq.s32.totalorder %s21, 1
    %p180 = por %p178, %p179
    %p181 = scmp.ne.s32.totalorder %s172, %s173
    %p182 = scmp.eq.s32.totalorder %s21, 0
    %p183 = por %p181, %p182
    %p184 = scmp.ne.s32.totalorder %s172, %s173
    %p185 = scmp.eq.s32.totalorder %s22, 1
    %p186 = por %p184, %p185
    %p188 = scmp.ne.s32.totalorder %s173, %s187
    %p189 = scmp.eq.s32.totalorder %s22, 0
    %p190 = por %p188, %p189
    %s192 = sadd.s32 %s191, 1
    %p195 = scmp.eq.s32.totalorder %s16, 1
    %p196 = scmp.ne.s32.totalorder %s191, %s193
    %p197 = scmp.eq.s32.totalorder %s16, 0
    %p198 = por %p196, %p197
    %p199 = scmp.ne.s32.totalorder %s191, %s193
    %p200 = scmp.eq.s32.totalorder %s21, 1
    %p201 = por %p199, %p200
    %p202 = scmp.ne.s32.totalorder %s193, %s194
    %p203 = scmp.eq.s32.totalorder %s21, 0
    %p204 = por %p202, %p203
    %p205 = scmp.ne.s32.totalorder %s193, %s194
    %p206 = scmp.eq.s32.totalorder %s22, 1
    %p207 = por %p205, %p206
    %p209 = scmp.ne.s32.totalorder %s194, %s208
    %p210 = scmp.eq.s32.totalorder %s22, 0
    %p211 = por %p209, %p210
    %s213 = sadd.s32 %s212, 1
    %p216 = scmp.eq.s32.totalorder %s16, 1
    %p217 = scmp.ne.s32.totalorder %s212, %s214
    %p218 = scmp.eq.s32.totalorder %s16, 0
    %p219 = por %p217, %p218
    %p220 = scmp.ne.s32.totalorder %s212, %s214
    %p221 = scmp.eq.s32.totalorder %s21, 1
    %p222 = por %p220, %p221
    %p223 = scmp.ne.s32.totalorder %s214, %s215
    %p224 = scmp.eq.s32.totalorder %s21, 0
    %p225 = por %p223, %p224
    %p226 = scmp.ne.s32.totalorder %s214, %s215
    %p227 = scmp.eq.s32.totalorder %s22, 1
    %p228 = por %p226, %p227
    %p230 = scmp.ne.s32.totalorder %s215, %s229
    %p231 = scmp.eq.s32.totalorder %s22, 0
    %p232 = por %p230, %p231
    %s234 = sadd.s32 %s233, 1
    %p237 = scmp.eq.s32.totalorder %s16, 1
    %p238 = scmp.ne.s32.totalorder %s233, %s235
    %p239 = scmp.eq.s32.totalorder %s16, 0
    %p240 = por %p238, %p239
    %p241 = scmp.ne.s32.totalorder %s233, %s235
    %p242 = scmp.eq.s32.totalorder %s21, 1
    %p243 = por %p241, %p242
    %p244 = scmp.ne.s32.totalorder %s235, %s236
    %p245 = scmp.eq.s32.totalorder %s21, 0
    %p246 = por %p244, %p245
    %p247 = scmp.ne.s32.totalorder %s235, %s236
    %p248 = scmp.eq.s32.totalorder %s22, 1
    %p249 = por %p247, %p248
    %p251 = scmp.ne.s32.totalorder %s236, %s250
    %p252 = scmp.eq.s32.totalorder %s22, 0
    %p253 = por %p251, %p252
    %s255 = sadd.s32 %s254, 1
    %p258 = scmp.eq.s32.totalorder %s16, 1
    %p259 = scmp.ne.s32.totalorder %s254, %s256
    %p260 = scmp.eq.s32.totalorder %s16, 0
    %p261 = por %p259, %p260
    %p262 = scmp.ne.s32.totalorder %s254, %s256
    %p263 = scmp.eq.s32.totalorder %s21, 1
    %p264 = por %p262, %p263
    %p265 = scmp.ne.s32.totalorder %s256, %s257
    %p266 = scmp.eq.s32.totalorder %s21, 0
    %p267 = por %p265, %p266
    %p268 = scmp.ne.s32.totalorder %s256, %s257
    %p269 = scmp.eq.s32.totalorder %s22, 1
    %p270 = por %p268, %p269
    %p272 = scmp.ne.s32.totalorder %s257, %s271
    %p273 = scmp.eq.s32.totalorder %s22, 0
    %p274 = por %p272, %p273
    %s275 = ssub.s32 %s23, %s35
    %s276 = ssub.s32 %s24, %s31
    %s277 = sor.u32 %s275, %s276
    %p278 = scmp.eq.s32.totalorder %s277, 0
    %s280 = sadd.s32 %s279, 1
    %s281 = scalar_select %p278, %s279, %s280
    %p284 = pneg %p278
    %p285 = scmp.eq.s32.totalorder %s16, 1
    %p286 = por %p284, %p285
    %p287 = scmp.ne.s32.totalorder %s279, %s282
    %p288 = scmp.eq.s32.totalorder %s16, 0
    %p289 = por %p287, %p288
    %p290 = scmp.ne.s32.totalorder %s279, %s282
    %p291 = scmp.eq.s32.totalorder %s21, 1
    %p292 = por %p290, %p291
    %p293 = scmp.ne.s32.totalorder %s282, %s283
    %p294 = scmp.eq.s32.totalorder %s21, 0
    %p295 = por %p293, %p294
    %p296 = scmp.ne.s32.totalorder %s282, %s283
    %p297 = scmp.eq.s32.totalorder %s22, 1
    %p298 = por %p296, %p297
    %p300 = scmp.ne.s32.totalorder %s283, %s299
    %p301 = scmp.eq.s32.totalorder %s22, 0
    %p302 = por %p300, %p301
    %p303 = scmp.le.s32.totalorder 1, %s16
    %p304 = scmp.lt.s32.totalorder %s16, 3
    %p305 = pnand %p303, %p304
    %p306 = pneg %p305
    // Predicated region
    $region9: #{residual_block2.1} parent=5 // pred_check
      _
    $region10: #{residual_block2.1} parent=5 // pred_check_branch
      %308 = sbr.rel (%p305) target = $region12
    $region11: #{residual_block2.1} parent=5 // pred_region
      %s309 = ssub.s32 %s16, 1
      // Predicated region
      $region13: #{residual_block2.1} parent=11 // pred_check
        %p310 = pneg %p141
      $region14: #{residual_block2.1} parent=11 // pred_check_branch
        %312 = sbr.rel (%p310) target = $region16
      $region15: #{residual_block2.1} parent=11 // pred_region
        _
      $region16: #{residual_block2.1} parent=11 // pred_fallthru
        _
      // Predicated region
      $region17: #{residual_block2.1} parent=11 // pred_check
        %p313 = pneg %p162
      $region18: #{residual_block2.1} parent=11 // pred_check_branch
        %315 = sbr.rel (%p313) target = $region20
      $region19: #{residual_block2.1} parent=11 // pred_region
        _
      $region20: #{residual_block2.1} parent=11 // pred_fallthru
        _
      // Predicated region
      $region21: #{residual_block2.1} parent=11 // pred_check
        %p316 = pneg %p183
      $region22: #{residual_block2.1} parent=11 // pred_check_branch
        %318 = sbr.rel (%p316) target = $region24
      $region23: #{residual_block2.1} parent=11 // pred_region
        _
      $region24: #{residual_block2.1} parent=11 // pred_fallthru
        _
      // Predicated region
      $region25: #{residual_block2.1} parent=11 // pred_check
        %p319 = pneg %p204
      $region26: #{residual_block2.1} parent=11 // pred_check_branch
        %321 = sbr.rel (%p319) target = $region28
      $region27: #{residual_block2.1} parent=11 // pred_region
        _
      $region28: #{residual_block2.1} parent=11 // pred_fallthru
        _
      // Predicated region
      $region29: #{residual_block2.1} parent=11 // pred_check
        %p322 = pneg %p225
      $region30: #{residual_block2.1} parent=11 // pred_check_branch
        %324 = sbr.rel (%p322) target = $region32
      $region31: #{residual_block2.1} parent=11 // pred_region
        _
      $region32: #{residual_block2.1} parent=11 // pred_fallthru
        _
      // Predicated region
      $region33: #{residual_block2.1} parent=11 // pred_check
        %p325 = pneg %p246
      $region34: #{residual_block2.1} parent=11 // pred_check_branch
        %327 = sbr.rel (%p325) target = $region36
      $region35: #{residual_block2.1} parent=11 // pred_region
        _
      $region36: #{residual_block2.1} parent=11 // pred_fallthru
        _
      // Predicated region
      $region37: #{residual_block2.1} parent=11 // pred_check
        %p328 = pneg %p267
      $region38: #{residual_block2.1} parent=11 // pred_check_branch
        %330 = sbr.rel (%p328) target = $region40
      $region39: #{residual_block2.1} parent=11 // pred_region
        _
      $region40: #{residual_block2.1} parent=11 // pred_fallthru
        _
    $region12: #{residual_block2.1} parent=5 // pred_fallthru
      _
    %p331 = scmp.lt.s32.totalorder %s16, 2
    // Predicated region
    $region41: #{residual_block2.1} parent=5 // pred_check
      %p332 = pneg %p331
    $region42: #{residual_block2.1} parent=5 // pred_check_branch
      %334 = sbr.rel (%p332) target = $region44
    $region43: #{residual_block2.1} parent=5 // pred_region
      // Predicated region
      $region45: #{residual_block2.1} parent=43 // pred_check
        %p335 = pneg %p50
      $region46: #{residual_block2.1} parent=43 // pred_check_branch
        %337 = sbr.rel (%p335) target = $region48
      $region47: #{residual_block2.1} parent=43 // pred_region
        %s338 = smul.u32 16, %s24
        %s339 = ssub.s32 18, %s338
        %p340 = scmp.lt.s32.totalorder %s339, 16
        %s341 = scalar_select %p340, %s339, 16
        %s342 = smul.u32 64, %s341
        %s343 = smul.u32 %s342, 2
        %s344 = smul.u32 %s343, 2
        %p345 = scmp.lt.s32.totalorder %s23, 1
        %s346 = scalar_select %p345, %s23, 1
        %p347 = scmp.lt.s32.totalorder %s338, 17
        %s348 = scalar_select %p347, %s338, 17
        %s349 = smul.addr %s348, 4
        %s350 = smul.addr %s346, 72
        %s351 = sadd.s32 %s349, %s350
        %s352 = smul.addr %s351, 4
        %s353 = scalar_lea.vmem %s0, %s352
        %s354 = smul.u32 16, %s24
        %s355 = ssub.s32 18, %s354
        %p356 = scmp.lt.s32.totalorder %s355, 16
        %s357 = scalar_select %p356, %s355, 16
        %s358 = smul.u32 64, %s357
        %s359 = smul.u32 %s358, 2
        %s360 = smul.u32 %s359, 2
      $region48: #{residual_block2.1} parent=43 // pred_fallthru
        _
      // Predicated region
      $region49: #{residual_block2.1} parent=43 // pred_check
        %p361 = pneg %p82
      $region50: #{residual_block2.1} parent=43 // pred_check_branch
        %363 = sbr.rel (%p361) target = $region52
      $region51: #{residual_block2.1} parent=43 // pred_region
        %s364 = smul.u32 %s24, 16
        %s365 = sadd.s32 %s364, 16
        %p366 = scmp.lt.s32.totalorder %s23, 1
        %s367 = scalar_select %p366, %s23, 1
        %p368 = scmp.lt.s32.totalorder %s365, 17
        %s369 = scalar_select %p368, %s365, 17
        %s370 = smul.addr %s369, 4
        %s371 = smul.addr %s367, 72
        %s372 = sadd.s32 %s370, %s371
        %s373 = smul.addr %s372, 4
        %s374 = scalar_lea.vmem %s1, %s373
        %s375 = smul.u32 %s24, 16
        %s376 = sadd.s32 %s375, 16
      $region52: #{residual_block2.1} parent=43 // pred_fallthru
        _
      // Predicated region
      $region53: #{residual_block2.1} parent=43 // pred_check
        %p377 = pneg %p114
      $region54: #{residual_block2.1} parent=43 // pred_check_branch
        %379 = sbr.rel (%p377) target = $region56
      $region55: #{residual_block2.1} parent=43 // pred_region
        %s380 = smul.u32 %s24, 16
        %s381 = sadd.s32 %s380, 17
        %p382 = scmp.lt.s32.totalorder %s23, 1
        %s383 = scalar_select %p382, %s23, 1
        %p384 = scmp.lt.s32.totalorder %s381, 17
        %s385 = scalar_select %p384, %s381, 17
        %s386 = smul.addr %s385, 4
        %s387 = smul.addr %s383, 72
        %s388 = sadd.s32 %s386, %s387
        %s389 = smul.addr %s388, 4
        %s390 = scalar_lea.vmem %s2, %s389
        %s391 = smul.u32 %s24, 16
        %s392 = sadd.s32 %s391, 17
      $region56: #{residual_block2.1} parent=43 // pred_fallthru
        _
    $region44: #{residual_block2.1} parent=5 // pred_fallthru
      _
    %p393 = scmp.le.s32.totalorder 1, %s16
    %p394 = scmp.lt.s32.totalorder %s16, 3
    %p395 = pnand %p393, %p394
    %p396 = pneg %p395
    // Predicated region
    $region57: #{residual_block2.1} parent=5 // pred_check
      _
    $region58: #{residual_block2.1} parent=5 // pred_check_branch
      %398 = sbr.rel (%p395) target = $region60
    $region59: #{residual_block2.1} parent=5 // pred_region
      %s399 = ssub.s32 %s16, 1
      %s400 = smul.u32 16, %s26
      %s401 = ssub.s32 18, %s400
      %p402 = scmp.lt.s32.totalorder %s401, 16
      %s403 = scalar_select %p402, %s401, 16
      %s404 = smul.u32 64, %s403
      %s405 = smul.u32 %s404, 2
      %s406 = smul.u32 %s405, 2
      %p407 = scmp.lt.s32.totalorder %s25, 1
      %s408 = scalar_select %p407, %s25, 1
      %p409 = scmp.lt.s32.totalorder %s400, 17
      %s410 = scalar_select %p409, %s400, 17
      %s411 = smul.addr %s410, 4
      %s412 = smul.addr %s408, 72
      %s413 = sadd.s32 %s411, %s412
      %s414 = smul.addr %s413, 4
      %s415 = scalar_lea.vmem %s0, %s414
      %p416 = pneg %p56
      %p417 = pneg %p53
      %s418 = smul.u32 %s26, 16
      %s419 = sadd.s32 %s418, 16
      %p420 = scmp.lt.s32.totalorder %s25, 1
      %s421 = scalar_select %p420, %s25, 1
      %p422 = scmp.lt.s32.totalorder %s419, 17
      %s423 = scalar_select %p422, %s419, 17
      %s424 = smul.addr %s423, 4
      %s425 = smul.addr %s421, 72
      %s426 = sadd.s32 %s424, %s425
      %s427 = smul.addr %s426, 4
      %s428 = scalar_lea.vmem %s1, %s427
      %p429 = pneg %p88
      %p430 = pneg %p85
      %s431 = smul.u32 %s26, 16
      %s432 = sadd.s32 %s431, 17
      %p433 = scmp.lt.s32.totalorder %s25, 1
      %s434 = scalar_select %p433, %s25, 1
      %p435 = scmp.lt.s32.totalorder %s432, 17
      %s436 = scalar_select %p435, %s432, 17
      %s437 = smul.addr %s436, 4
      %s438 = smul.addr %s434, 72
      %s439 = sadd.s32 %s437, %s438
      %s440 = smul.addr %s439, 4
      %s441 = scalar_lea.vmem %s2, %s440
      %p442 = pneg %p120
      %p443 = pneg %p117
      %p444 = pneg %p141
      %p445 = pneg %p138
      %p446 = pneg %p162
      %p447 = pneg %p159
      %p448 = pneg %p183
      %p449 = pneg %p180
      %p450 = pneg %p204
      %p451 = pneg %p201
      %p452 = pneg %p225
      %p453 = pneg %p222
      %p454 = pneg %p246
      %p455 = pneg %p243
      %p456 = pneg %p267
      %p457 = pneg %p264
      %p458 = pneg %p295
      %p459 = pneg %p292
      %s460 = smul.u32 8, %s26
      %p461 = scmp.lt.s32.totalorder %s25, 1
      %s462 = scalar_select %p461, %s25, 1
      %p463 = scmp.lt.s32.totalorder %s460, 7
      %s464 = scalar_select %p463, %s460, 7
      %s465 = smul.addr %s462, 8
      %s466 = sadd.s32 %s464, %s465
      %s467 = smul.addr %s466, 4
      %s468 = scalar_lea.vmem %s10, %s467
      %s469 = smul.u32 16, %s26
      %s470 = ssub.s32 18, %s469
      %p471 = scmp.lt.s32.totalorder %s470, 16
      %s472 = scalar_select %p471, %s470, 16
      %s473 = smul.u32 64, %s472
      %s474 = smul.u32 %s473, 2
      %s475 = smul.u32 %s474, 2
      %p476 = scmp.lt.s32.totalorder %s25, 1
      %s477 = scalar_select %p476, %s25, 1
      %p478 = scmp.lt.s32.totalorder %s469, 17
      %s479 = scalar_select %p478, %s469, 17
      %s480 = smul.addr %s479, 4
      %s481 = smul.addr %s477, 72
      %s482 = sadd.s32 %s480, %s481
      %s483 = smul.addr %s482, 4
      %s484 = scalar_lea.vmem %s0, %s483
      %s485 = smul.u32 16, %s26
      %s486 = ssub.s32 18, %s485
      %p487 = scmp.lt.s32.totalorder %s486, 16
      %s488 = scalar_select %p487, %s486, 16
      %s489 = smul.u32 64, %s488
      %s490 = smul.u32 %s489, 2
      %s491 = smul.u32 %s490, 2
      %s492 = smul.u32 %s26, 16
      %s493 = sadd.s32 %s492, 16
      %p494 = scmp.lt.s32.totalorder %s25, 1
      %s495 = scalar_select %p494, %s25, 1
      %p496 = scmp.lt.s32.totalorder %s493, 17
      %s497 = scalar_select %p496, %s493, 17
      %s498 = smul.addr %s497, 4
      %s499 = smul.addr %s495, 72
      %s500 = sadd.s32 %s498, %s499
      %s501 = smul.addr %s500, 4
      %s502 = scalar_lea.vmem %s1, %s501
      %s503 = smul.u32 %s26, 16
      %s504 = sadd.s32 %s503, 16
      %s505 = smul.u32 %s26, 16
      %s506 = sadd.s32 %s505, 17
      %p507 = scmp.lt.s32.totalorder %s25, 1
      %s508 = scalar_select %p507, %s25, 1
      %p509 = scmp.lt.s32.totalorder %s506, 17
      %s510 = scalar_select %p509, %s506, 17
      %s511 = smul.addr %s510, 4
      %s512 = smul.addr %s508, 72
      %s513 = sadd.s32 %s511, %s512
      %s514 = smul.addr %s513, 4
      %s515 = scalar_lea.vmem %s2, %s514
      %s516 = smul.u32 %s26, 16
      %s517 = sadd.s32 %s516, 17
      %s518 = smul.u32 8, %s26
      %p519 = scmp.lt.s32.totalorder %s25, 1
      %s520 = scalar_select %p519, %s25, 1
      %p521 = scmp.lt.s32.totalorder %s518, 7
      %s522 = scalar_select %p521, %s518, 7
      %s523 = smul.addr %s520, 8
      %s524 = sadd.s32 %s522, %s523
      %s525 = smul.addr %s524, 4
      %s526 = scalar_lea.vmem %s10, %s525
      %s527 = smul.u32 8, %s26
      %v529 = vld [vmem:[%s484] sm:$0xf]
      %v530 = vld [vmem:[%s484 + $0x4] sm:$0xf]
      %v531 = vld [vmem:[%s484 + $0x8] sm:$0xf]
      %v532 = vld [vmem:[%s484 + $0xc] sm:$0xf]
      %v533 = vld [vmem:[%s484 + $0x10] sm:$0xf]
      %v534 = vld [vmem:[%s484 + $0x14] sm:$0xf]
      %v535 = vld [vmem:[%s484 + $0x18] sm:$0xf]
      %v536 = vld [vmem:[%s484 + $0x1c] sm:$0xf]
      %v537 = vld [vmem:[%s484 + $0x20] sm:$0xf]
      %v538 = vld [vmem:[%s484 + $0x24] sm:$0xf]
      %v539 = vld [vmem:[%s484 + $0x28] sm:$0xf]
      %v540 = vld [vmem:[%s484 + $0x2c] sm:$0xf]
      %v541 = vld [vmem:[%s484 + $0x30] sm:$0xf]
      %v542 = vld [vmem:[%s484 + $0x34] sm:$0xf]
      %v543 = vld [vmem:[%s484 + $0x38] sm:$0xf]
      %v544 = vld [vmem:[%s484 + $0x3c] sm:$0xf]
      %v545 = vld [vmem:[%s484 + $0x40] sm:$0xf]
      %v546 = vld [vmem:[%s484 + $0x44] sm:$0xf]
      %v547 = vld [vmem:[%s484 + $0x48] sm:$0xf]
      %v548 = vld [vmem:[%s484 + $0x4c] sm:$0xf]
      %v549 = vld [vmem:[%s484 + $0x50] sm:$0xf]
      %v550 = vld [vmem:[%s484 + $0x54] sm:$0xf]
      %v551 = vld [vmem:[%s484 + $0x58] sm:$0xf]
      %v552 = vld [vmem:[%s484 + $0x5c] sm:$0xf]
      %v553 = vld [vmem:[%s484 + $0x60] sm:$0xf]
      %v554 = vld [vmem:[%s484 + $0x64] sm:$0xf]
      %v555 = vld [vmem:[%s484 + $0x68] sm:$0xf]
      %v556 = vld [vmem:[%s484 + $0x6c] sm:$0xf]
      %v557 = vld [vmem:[%s484 + $0x70] sm:$0xf]
      %v558 = vld [vmem:[%s484 + $0x74] sm:$0xf]
      %v559 = vld [vmem:[%s484 + $0x78] sm:$0xf]
      %v560 = vld [vmem:[%s484 + $0x7c] sm:$0xf]
      %v561 = vld [vmem:[%s484 + $0x80] sm:$0xf]
      %v562 = vld [vmem:[%s484 + $0x84] sm:$0xf]
      %v563 = vld [vmem:[%s484 + $0x88] sm:$0xf]
      %v564 = vld [vmem:[%s484 + $0x8c] sm:$0xf]
      %v565 = vld [vmem:[%s484 + $0x90] sm:$0xf]
      %v566 = vld [vmem:[%s484 + $0x94] sm:$0xf]
      %v567 = vld [vmem:[%s484 + $0x98] sm:$0xf]
      %v568 = vld [vmem:[%s484 + $0x9c] sm:$0xf]
      %v569 = vld [vmem:[%s484 + $0xa0] sm:$0xf]
      %v570 = vld [vmem:[%s484 + $0xa4] sm:$0xf]
      %v571 = vld [vmem:[%s484 + $0xa8] sm:$0xf]
      %v572 = vld [vmem:[%s484 + $0xac] sm:$0xf]
      %v573 = vld [vmem:[%s484 + $0xb0] sm:$0xf]
      %v574 = vld [vmem:[%s484 + $0xb4] sm:$0xf]
      %v575 = vld [vmem:[%s484 + $0xb8] sm:$0xf]
      %v576 = vld [vmem:[%s484 + $0xbc] sm:$0xf]
      %v577 = vld [vmem:[%s484 + $0xc0] sm:$0xf]
      %v578 = vld [vmem:[%s484 + $0xc4] sm:$0xf]
      %v579 = vld [vmem:[%s484 + $0xc8] sm:$0xf]
      %v580 = vld [vmem:[%s484 + $0xcc] sm:$0xf]
      %v581 = vld [vmem:[%s484 + $0xd0] sm:$0xf]
      %v582 = vld [vmem:[%s484 + $0xd4] sm:$0xf]
      %v583 = vld [vmem:[%s484 + $0xd8] sm:$0xf]
      %v584 = vld [vmem:[%s484 + $0xdc] sm:$0xf]
      %v585 = vld [vmem:[%s484 + $0xe0] sm:$0xf]
      %v586 = vld [vmem:[%s484 + $0xe4] sm:$0xf]
      %v587 = vld [vmem:[%s484 + $0xe8] sm:$0xf]
      %v588 = vld [vmem:[%s484 + $0xec] sm:$0xf]
      %v589 = vld [vmem:[%s484 + $0xf0] sm:$0xf]
      %v590 = vld [vmem:[%s484 + $0xf4] sm:$0xf]
      %v591 = vld [vmem:[%s484 + $0xf8] sm:$0xf]
      %v592 = vld [vmem:[%s484 + $0xfc] sm:$0xf]
      %v593 = vld [vmem:[%s502] sm:$0xf]
      %v594 = vld [vmem:[%s502 + $0x4] sm:$0xf]
      %v595 = vld [vmem:[%s502 + $0x8] sm:$0xf]
      %v596 = vld [vmem:[%s502 + $0xc] sm:$0xf]
      %v597 = vld [vmem:[%s515] sm:$0xf]
      %v598 = vld [vmem:[%s515 + $0x4] sm:$0xf]
      %v599 = vld [vmem:[%s515 + $0x8] sm:$0xf]
      %v600 = vld [vmem:[%s515 + $0xc] sm:$0xf]
      %v601 = vld [vmem:[%s3] sm:$0x3]
      %v602 = vld [vmem:[%s4] sm:$0x1]
      %v604 = vlaneseq
      %v605 = vshrl.u32 %v604, 7
      %v606 = vsub.s32 0, %v605
      %v607 = vrot.slane %v602, %v606
      %v681 = vunpack.c.l.b16 %v529
      %v682 = vunpack.c.l.b16 %v530
      %v683 = vunpack.c.l.b16 %v531
      %v684 = vunpack.c.l.b16 %v532
      %v685 = vunpack.c.l.b16 %v533
      %v686 = vunpack.c.l.b16 %v534
      %v687 = vunpack.c.l.b16 %v535
      %v688 = vunpack.c.l.b16 %v536
      %v689 = vunpack.c.l.b16 %v537
      %v690 = vunpack.c.l.b16 %v538
      %v691 = vunpack.c.l.b16 %v539
      %v692 = vunpack.c.l.b16 %v540
      %v693 = vunpack.c.l.b16 %v541
      %v694 = vunpack.c.l.b16 %v542
      %v695 = vunpack.c.l.b16 %v543
      %v696 = vunpack.c.l.b16 %v544
      %v697 = vunpack.c.l.b16 %v545
      %v698 = vunpack.c.l.b16 %v546
      %v699 = vunpack.c.l.b16 %v547
      %v700 = vunpack.c.l.b16 %v548
      %v701 = vunpack.c.l.b16 %v549
      %v702 = vunpack.c.l.b16 %v550
      %v703 = vunpack.c.l.b16 %v551
      %v704 = vunpack.c.l.b16 %v552
      %v705 = vunpack.c.l.b16 %v553
      %v706 = vunpack.c.l.b16 %v554
      %v707 = vunpack.c.l.b16 %v555
      %v708 = vunpack.c.l.b16 %v556
      %v709 = vunpack.c.l.b16 %v557
      %v710 = vunpack.c.l.b16 %v558
      %v711 = vunpack.c.l.b16 %v559
      %v712 = vunpack.c.l.b16 %v560
      %v713 = vunpack.c.l.b16 %v561
      %v714 = vunpack.c.l.b16 %v562
      %v715 = vunpack.c.l.b16 %v563
      %v716 = vunpack.c.l.b16 %v564
      %v717 = vunpack.c.l.b16 %v565
      %v718 = vunpack.c.l.b16 %v566
      %v719 = vunpack.c.l.b16 %v567
      %v720 = vunpack.c.l.b16 %v568
      %v721 = vunpack.c.l.b16 %v569
      %v722 = vunpack.c.l.b16 %v570
      %v723 = vunpack.c.l.b16 %v571
      %v724 = vunpack.c.l.b16 %v572
      %v725 = vunpack.c.l.b16 %v573
      %v726 = vunpack.c.l.b16 %v574
      %v727 = vunpack.c.l.b16 %v575
      %v728 = vunpack.c.l.b16 %v576
      %v729 = vunpack.c.l.b16 %v577
      %v730 = vunpack.c.l.b16 %v578
      %v731 = vunpack.c.l.b16 %v579
      %v732 = vunpack.c.l.b16 %v580
      %v733 = vunpack.c.l.b16 %v581
      %v734 = vunpack.c.l.b16 %v582
      %v735 = vunpack.c.l.b16 %v583
      %v736 = vunpack.c.l.b16 %v584
      %v737 = vunpack.c.l.b16 %v585
      %v738 = vunpack.c.l.b16 %v586
      %v739 = vunpack.c.l.b16 %v587
      %v740 = vunpack.c.l.b16 %v588
      %v741 = vunpack.c.l.b16 %v589
      %v742 = vunpack.c.l.b16 %v590
      %v743 = vunpack.c.l.b16 %v591
      %v744 = vunpack.c.l.b16 %v592
      %v745 = vunpack.c.l.b16 %v593
      %v746 = vunpack.c.l.b16 %v594
      %v747 = vunpack.c.l.b16 %v595
      %v748 = vunpack.c.l.b16 %v596
      %v749 = vunpack.c.l.b16 %v597
      %v750 = vunpack.c.l.b16 %v598
      %v751 = vunpack.c.l.b16 %v599
      %v752 = vunpack.c.l.b16 %v600
      %v753 = vpack.c.b16 %v682, %v681
      %v754 = vpack.c.b16 %v684, %v683
      %v755 = vpack.c.b16 %v686, %v685
      %v756 = vpack.c.b16 %v688, %v687
      %v757 = vpack.c.b16 %v690, %v689
      %v758 = vpack.c.b16 %v692, %v691
      %v759 = vpack.c.b16 %v694, %v693
      %v760 = vpack.c.b16 %v696, %v695
      %v761 = vpack.c.b16 %v698, %v697
      %v762 = vpack.c.b16 %v700, %v699
      %v763 = vpack.c.b16 %v702, %v701
      %v764 = vpack.c.b16 %v704, %v703
      %v765 = vpack.c.b16 %v706, %v705
      %v766 = vpack.c.b16 %v708, %v707
      %v767 = vpack.c.b16 %v710, %v709
      %v768 = vpack.c.b16 %v712, %v711
      %v769 = vpack.c.b16 %v714, %v713
      %v770 = vpack.c.b16 %v716, %v715
      %v771 = vpack.c.b16 %v718, %v717
      %v772 = vpack.c.b16 %v720, %v719
      %v773 = vpack.c.b16 %v722, %v721
      %v774 = vpack.c.b16 %v724, %v723
      %v775 = vpack.c.b16 %v726, %v725
      %v776 = vpack.c.b16 %v728, %v727
      %v777 = vpack.c.b16 %v730, %v729
      %v778 = vpack.c.b16 %v732, %v731
      %v779 = vpack.c.b16 %v734, %v733
      %v780 = vpack.c.b16 %v736, %v735
      %v781 = vpack.c.b16 %v738, %v737
      %v782 = vpack.c.b16 %v740, %v739
      %v783 = vpack.c.b16 %v742, %v741
      %v784 = vpack.c.b16 %v744, %v743
      %v785 = vpack.c.b16 %v746, %v745
      %v786 = vpack.c.b16 %v748, %v747
      %v787 = vpack.c.b16 %v750, %v749
      %v788 = vpack.c.b16 %v752, %v751
      %vm789 = vcmask 31744
      %v791 = vsel %vm789, %v753, 0
      %v794 = vsel %vm789, %v754, 0
      %v797 = vsel %vm789, %v755, 0
      %v800 = vsel %vm789, %v756, 0
      %v803 = vsel %vm789, %v757, 0
      %v806 = vsel %vm789, %v758, 0
      %v809 = vsel %vm789, %v759, 0
      %v812 = vsel %vm789, %v760, 0
      %v815 = vsel %vm789, %v761, 0
      %v818 = vsel %vm789, %v762, 0
      %v821 = vsel %vm789, %v763, 0
      %v824 = vsel %vm789, %v764, 0
      %v827 = vsel %vm789, %v765, 0
      %v830 = vsel %vm789, %v766, 0
      %v833 = vsel %vm789, %v767, 0
      %v836 = vsel %vm789, %v768, 0
      %v839 = vsel %vm789, %v769, 0
      %v842 = vsel %vm789, %v770, 0
      %v845 = vsel %vm789, %v771, 0
      %v848 = vsel %vm789, %v772, 0
      %v851 = vsel %vm789, %v773, 0
      %v854 = vsel %vm789, %v774, 0
      %v857 = vsel %vm789, %v775, 0
      %v860 = vsel %vm789, %v776, 0
      %v863 = vsel %vm789, %v777, 0
      %v866 = vsel %vm789, %v778, 0
      %v869 = vsel %vm789, %v779, 0
      %v872 = vsel %vm789, %v780, 0
      %v875 = vsel %vm789, %v781, 0
      %v878 = vsel %vm789, %v782, 0
      %v881 = vsel %vm789, %v783, 0
      %v884 = vsel %vm789, %v784, 0
      %v887 = vsel %vm789, %v785, 0
      %v890 = vsel %vm789, %v786, 0
      %v893 = vsel %vm789, %v787, 0
      %v896 = vsel %vm789, %v788, 0
      %vm898 = vcmask 1041408
      %v900 = vsel %vm898, %v601, 0
      %902 = vmatprep.subr.bf16.mxu0 0
      %903 = vmatpush1.bf16.msra.mxu0 0
      %904 = vmatprep.subr.bf16.mxu0 0
      %905 = vmatpush1.bf16.msra.mxu0 0
      %906 = vmatprep.subr.bf16.mxu0 0
      %907 = vmatpush1.bf16.msra.mxu0 0
      %908 = vmatprep.subr.bf16.mxu0 0
      %909 = vmatpush1.bf16.msra.mxu0 0
      %910 = vmatprep.subr.bf16.mxu0 0
      %911 = vmatpush1.bf16.msra.mxu0 0
      %912 = vmatprep.subr.bf16.mxu0 0
      %913 = vmatpush1.bf16.msra.mxu0 0
      %914 = vmatprep.subr.bf16.mxu0 0
      %915 = vmatpush1.bf16.msra.mxu0 0
      %916 = vmatprep.subr.bf16.mxu0 0
      %917 = vmatpush1.bf16.msra.mxu0 %v900
      %918 = vmatprep.subr.bf16.mxu0 0
      %919 = vmatpush2.bf16.msra.mxu0 0
      %920 = vmatprep.subr.bf16.mxu0 0
      %921 = vmatpush2.bf16.msra.mxu0 0
      %922 = vmatprep.subr.bf16.mxu0 0
      %923 = vmatpush2.bf16.msra.mxu0 0
      %924 = vmatprep.subr.bf16.mxu0 0
      %925 = vmatpush2.bf16.msra.mxu0 0
      %926 = vmatprep.subr.bf16.mxu0 0
      %927 = vmatpush2.bf16.msra.mxu0 0
      %928 = vmatprep.subr.bf16.mxu0 0
      %929 = vmatpush2.bf16.msra.mxu0 0
      %930 = vmatprep.subr.bf16.mxu0 0
      %931 = vmatpush2.bf16.msra.mxu0 0
      %932 = vmatprep.subr.bf16.mxu0 0
      %933 = vmatpush2.bf16.msra.mxu0 0
      %934 = vmatprep.mubr.bf16.mxu0 0
      %935 = vmatmul.mubr.bf16.gmra.mxu0 %v791
      %v936 = vpop.f32.mrf.mxu0
      %v937 = vadd.f32 %v607, %v936
      %v938 = vpop.f32.mrf.mxu0
      %v939 = vpop.f32.mrf.mxu0
      %v940 = vadd.f32 %v607, %v939
      %v941 = vpop.f32.mrf.mxu0
      %942 = vmatprep.mubr.bf16.mxu0 0
      %943 = vmatmul.mubr.bf16.gmra.mxu0 %v794
      %v944 = vpop.f32.mrf.mxu0
      %v945 = vadd.f32 %v607, %v944
      %v946 = vpop.f32.mrf.mxu0
      %v947 = vpop.f32.mrf.mxu0
      %v948 = vadd.f32 %v607, %v947
      %v949 = vpop.f32.mrf.mxu0
      %950 = vmatprep.mubr.bf16.mxu0 0
      %951 = vmatmul.mubr.bf16.gmra.mxu0 %v797
      %v952 = vpop.f32.mrf.mxu0
      %v953 = vadd.f32 %v607, %v952
      %v954 = vpop.f32.mrf.mxu0
      %v955 = vpop.f32.mrf.mxu0
      %v956 = vadd.f32 %v607, %v955
      %v957 = vpop.f32.mrf.mxu0
      %958 = vmatprep.mubr.bf16.mxu0 0
      %959 = vmatmul.mubr.bf16.gmra.mxu0 %v800
      %v960 = vpop.f32.mrf.mxu0
      %v961 = vadd.f32 %v607, %v960
      %v962 = vpop.f32.mrf.mxu0
      %v963 = vpop.f32.mrf.mxu0
      %v964 = vadd.f32 %v607, %v963
      %v965 = vpop.f32.mrf.mxu0
      %966 = vmatprep.mubr.bf16.mxu0 0
      %967 = vmatmul.mubr.bf16.gmra.mxu0 %v803
      %v968 = vpop.f32.mrf.mxu0
      %v969 = vadd.f32 %v607, %v968
      %v970 = vpop.f32.mrf.mxu0
      %v971 = vpop.f32.mrf.mxu0
      %v972 = vadd.f32 %v607, %v971
      %v973 = vpop.f32.mrf.mxu0
      %974 = vmatprep.mubr.bf16.mxu0 0
      %975 = vmatmul.mubr.bf16.gmra.mxu0 %v806
      %v976 = vpop.f32.mrf.mxu0
      %v977 = vadd.f32 %v607, %v976
      %v978 = vpop.f32.mrf.mxu0
      %v979 = vpop.f32.mrf.mxu0
      %v980 = vadd.f32 %v607, %v979
      %v981 = vpop.f32.mrf.mxu0
      %982 = vmatprep.mubr.bf16.mxu0 0
      %983 = vmatmul.mubr.bf16.gmra.mxu0 %v809
      %v984 = vpop.f32.mrf.mxu0
      %v985 = vadd.f32 %v607, %v984
      %v986 = vpop.f32.mrf.mxu0
      %v987 = vpop.f32.mrf.mxu0
      %v988 = vadd.f32 %v607, %v987
      %v989 = vpop.f32.mrf.mxu0
      %990 = vmatprep.mubr.bf16.mxu0 0
      %991 = vmatmul.mubr.bf16.gmra.mxu0 %v812
      %v992 = vpop.f32.mrf.mxu0
      %v993 = vadd.f32 %v607, %v992
      %v994 = vpop.f32.mrf.mxu0
      %v995 = vpop.f32.mrf.mxu0
      %v996 = vadd.f32 %v607, %v995
      %v997 = vpop.f32.mrf.mxu0
      %998 = vmatprep.mubr.bf16.mxu0 0
      %999 = vmatmul.mubr.bf16.gmra.mxu0 %v815
      %v1000 = vpop.f32.mrf.mxu0
      %v1001 = vadd.f32 %v607, %v1000
      %v1002 = vpop.f32.mrf.mxu0
      %v1003 = vpop.f32.mrf.mxu0
      %v1004 = vadd.f32 %v607, %v1003
      %v1005 = vpop.f32.mrf.mxu0
      %1006 = vmatprep.mubr.bf16.mxu0 0
      %1007 = vmatmul.mubr.bf16.gmra.mxu0 %v818
      %v1008 = vpop.f32.mrf.mxu0
      %v1009 = vadd.f32 %v607, %v1008
      %v1010 = vpop.f32.mrf.mxu0
      %v1011 = vpop.f32.mrf.mxu0
      %v1012 = vadd.f32 %v607, %v1011
      %v1013 = vpop.f32.mrf.mxu0
      %1014 = vmatprep.mubr.bf16.mxu0 0
      %1015 = vmatmul.mubr.bf16.gmra.mxu0 %v821
      %v1016 = vpop.f32.mrf.mxu0
      %v1017 = vadd.f32 %v607, %v1016
      %v1018 = vpop.f32.mrf.mxu0
      %v1019 = vpop.f32.mrf.mxu0
      %v1020 = vadd.f32 %v607, %v1019
      %v1021 = vpop.f32.mrf.mxu0
      %1022 = vmatprep.mubr.bf16.mxu0 0
      %1023 = vmatmul.mubr.bf16.gmra.mxu0 %v824
      %v1024 = vpop.f32.mrf.mxu0
      %v1025 = vadd.f32 %v607, %v1024
      %v1026 = vpop.f32.mrf.mxu0
      %v1027 = vpop.f32.mrf.mxu0
      %v1028 = vadd.f32 %v607, %v1027
      %v1029 = vpop.f32.mrf.mxu0
      %1030 = vmatprep.mubr.bf16.mxu0 0
      %1031 = vmatmul.mubr.bf16.gmra.mxu0 %v827
      %v1032 = vpop.f32.mrf.mxu0
      %v1033 = vadd.f32 %v607, %v1032
      %v1034 = vpop.f32.mrf.mxu0
      %v1035 = vpop.f32.mrf.mxu0
      %v1036 = vadd.f32 %v607, %v1035
      %v1037 = vpop.f32.mrf.mxu0
      %1038 = vmatprep.mubr.bf16.mxu0 0
      %1039 = vmatmul.mubr.bf16.gmra.mxu0 %v830
      %v1040 = vpop.f32.mrf.mxu0
      %v1041 = vadd.f32 %v607, %v1040
      %v1042 = vpop.f32.mrf.mxu0
      %v1043 = vpop.f32.mrf.mxu0
      %v1044 = vadd.f32 %v607, %v1043
      %v1045 = vpop.f32.mrf.mxu0
      %1046 = vmatprep.mubr.bf16.mxu0 0
      %1047 = vmatmul.mubr.bf16.gmra.mxu0 %v833
      %v1048 = vpop.f32.mrf.mxu0
      %v1049 = vadd.f32 %v607, %v1048
      %v1050 = vpop.f32.mrf.mxu0
      %v1051 = vpop.f32.mrf.mxu0
      %v1052 = vadd.f32 %v607, %v1051
      %v1053 = vpop.f32.mrf.mxu0
      %1054 = vmatprep.mubr.bf16.mxu0 0
      %1055 = vmatmul.mubr.bf16.gmra.mxu0 %v836
      %v1056 = vpop.f32.mrf.mxu0
      %v1057 = vadd.f32 %v607, %v1056
      %v1058 = vpop.f32.mrf.mxu0
      %v1059 = vpop.f32.mrf.mxu0
      %v1060 = vadd.f32 %v607, %v1059
      %v1061 = vpop.f32.mrf.mxu0
      %1062 = vmatprep.mubr.bf16.mxu0 0
      %1063 = vmatmul.mubr.bf16.gmra.mxu0 %v839
      %v1064 = vpop.f32.mrf.mxu0
      %v1065 = vadd.f32 %v607, %v1064
      %v1066 = vpop.f32.mrf.mxu0
      %v1067 = vpop.f32.mrf.mxu0
      %v1068 = vadd.f32 %v607, %v1067
      %v1069 = vpop.f32.mrf.mxu0
      %1070 = vmatprep.mubr.bf16.mxu0 0
      %1071 = vmatmul.mubr.bf16.gmra.mxu0 %v842
      %v1072 = vpop.f32.mrf.mxu0
      %v1073 = vadd.f32 %v607, %v1072
      %v1074 = vpop.f32.mrf.mxu0
      %v1075 = vpop.f32.mrf.mxu0
      %v1076 = vadd.f32 %v607, %v1075
      %v1077 = vpop.f32.mrf.mxu0
      %1078 = vmatprep.mubr.bf16.mxu0 0
      %1079 = vmatmul.mubr.bf16.gmra.mxu0 %v845
      %v1080 = vpop.f32.mrf.mxu0
      %v1081 = vadd.f32 %v607, %v1080
      %v1082 = vpop.f32.mrf.mxu0
      %v1083 = vpop.f32.mrf.mxu0
      %v1084 = vadd.f32 %v607, %v1083
      %v1085 = vpop.f32.mrf.mxu0
      %1086 = vmatprep.mubr.bf16.mxu0 0
      %1087 = vmatmul.mubr.bf16.gmra.mxu0 %v848
      %v1088 = vpop.f32.mrf.mxu0
      %v1089 = vadd.f32 %v607, %v1088
      %v1090 = vpop.f32.mrf.mxu0
      %v1091 = vpop.f32.mrf.mxu0
      %v1092 = vadd.f32 %v607, %v1091
      %v1093 = vpop.f32.mrf.mxu0
      %1094 = vmatprep.mubr.bf16.mxu0 0
      %1095 = vmatmul.mubr.bf16.gmra.mxu0 %v851
      %v1096 = vpop.f32.mrf.mxu0
      %v1097 = vadd.f32 %v607, %v1096
      %v1098 = vpop.f32.mrf.mxu0
      %v1099 = vpop.f32.mrf.mxu0
      %v1100 = vadd.f32 %v607, %v1099
      %v1101 = vpop.f32.mrf.mxu0
      %1102 = vmatprep.mubr.bf16.mxu0 0
      %1103 = vmatmul.mubr.bf16.gmra.mxu0 %v854
      %v1104 = vpop.f32.mrf.mxu0
      %v1105 = vadd.f32 %v607, %v1104
      %v1106 = vpop.f32.mrf.mxu0
      %v1107 = vpop.f32.mrf.mxu0
      %v1108 = vadd.f32 %v607, %v1107
      %v1109 = vpop.f32.mrf.mxu0
      %1110 = vmatprep.mubr.bf16.mxu0 0
      %1111 = vmatmul.mubr.bf16.gmra.mxu0 %v857
      %v1112 = vpop.f32.mrf.mxu0
      %v1113 = vadd.f32 %v607, %v1112
      %v1114 = vpop.f32.mrf.mxu0
      %v1115 = vpop.f32.mrf.mxu0
      %v1116 = vadd.f32 %v607, %v1115
      %v1117 = vpop.f32.mrf.mxu0
      %1118 = vmatprep.mubr.bf16.mxu0 0
      %1119 = vmatmul.mubr.bf16.gmra.mxu0 %v860
      %v1120 = vpop.f32.mrf.mxu0
      %v1121 = vadd.f32 %v607, %v1120
      %v1122 = vpop.f32.mrf.mxu0
      %v1123 = vpop.f32.mrf.mxu0
      %v1124 = vadd.f32 %v607, %v1123
      %v1125 = vpop.f32.mrf.mxu0
      %1126 = vmatprep.mubr.bf16.mxu0 0
      %1127 = vmatmul.mubr.bf16.gmra.mxu0 %v863
      %v1128 = vpop.f32.mrf.mxu0
      %v1129 = vadd.f32 %v607, %v1128
      %v1130 = vpop.f32.mrf.mxu0
      %v1131 = vpop.f32.mrf.mxu0
      %v1132 = vadd.f32 %v607, %v1131
      %v1133 = vpop.f32.mrf.mxu0
      %1134 = vmatprep.mubr.bf16.mxu0 0
      %1135 = vmatmul.mubr.bf16.gmra.mxu0 %v866
      %v1136 = vpop.f32.mrf.mxu0
      %v1137 = vadd.f32 %v607, %v1136
      %v1138 = vpop.f32.mrf.mxu0
      %v1139 = vpop.f32.mrf.mxu0
      %v1140 = vadd.f32 %v607, %v1139
      %v1141 = vpop.f32.mrf.mxu0
      %1142 = vmatprep.mubr.bf16.mxu0 0
      %1143 = vmatmul.mubr.bf16.gmra.mxu0 %v869
      %v1144 = vpop.f32.mrf.mxu0
      %v1145 = vadd.f32 %v607, %v1144
      %v1146 = vpop.f32.mrf.mxu0
      %v1147 = vpop.f32.mrf.mxu0
      %v1148 = vadd.f32 %v607, %v1147
      %v1149 = vpop.f32.mrf.mxu0
      %1150 = vmatprep.mubr.bf16.mxu0 0
      %1151 = vmatmul.mubr.bf16.gmra.mxu0 %v872
      %v1152 = vpop.f32.mrf.mxu0
      %v1153 = vadd.f32 %v607, %v1152
      %v1154 = vpop.f32.mrf.mxu0
      %v1155 = vpop.f32.mrf.mxu0
      %v1156 = vadd.f32 %v607, %v1155
      %v1157 = vpop.f32.mrf.mxu0
      %1158 = vmatprep.mubr.bf16.mxu0 0
      %1159 = vmatmul.mubr.bf16.gmra.mxu0 %v875
      %v1160 = vpop.f32.mrf.mxu0
      %v1161 = vadd.f32 %v607, %v1160
      %v1162 = vpop.f32.mrf.mxu0
      %v1163 = vpop.f32.mrf.mxu0
      %v1164 = vadd.f32 %v607, %v1163
      %v1165 = vpop.f32.mrf.mxu0
      %1166 = vmatprep.mubr.bf16.mxu0 0
      %1167 = vmatmul.mubr.bf16.gmra.mxu0 %v878
      %v1168 = vpop.f32.mrf.mxu0
      %v1169 = vadd.f32 %v607, %v1168
      %v1170 = vpop.f32.mrf.mxu0
      %v1171 = vpop.f32.mrf.mxu0
      %v1172 = vadd.f32 %v607, %v1171
      %v1173 = vpop.f32.mrf.mxu0
      %1174 = vmatprep.mubr.bf16.mxu0 0
      %1175 = vmatmul.mubr.bf16.gmra.mxu0 %v881
      %v1176 = vpop.f32.mrf.mxu0
      %v1177 = vadd.f32 %v607, %v1176
      %v1178 = vpop.f32.mrf.mxu0
      %v1179 = vpop.f32.mrf.mxu0
      %v1180 = vadd.f32 %v607, %v1179
      %v1181 = vpop.f32.mrf.mxu0
      %1182 = vmatprep.mubr.bf16.mxu0 0
      %1183 = vmatmul.mubr.bf16.gmra.mxu0 %v884
      %v1184 = vpop.f32.mrf.mxu0
      %v1185 = vadd.f32 %v607, %v1184
      %v1186 = vpop.f32.mrf.mxu0
      %v1187 = vpop.f32.mrf.mxu0
      %v1188 = vadd.f32 %v607, %v1187
      %v1189 = vpop.f32.mrf.mxu0
      %1190 = vmatprep.mubr.bf16.mxu0 0
      %1191 = vmatmul.mubr.bf16.gmra.mxu0 %v887
      %v1192 = vpop.f32.mrf.mxu0
      %v1193 = vadd.f32 %v607, %v1192
      %v1194 = vpop.f32.mrf.mxu0
      %v1195 = vpop.f32.mrf.mxu0
      %v1196 = vadd.f32 %v607, %v1195
      %v1197 = vpop.f32.mrf.mxu0
      %1198 = vmatprep.mubr.bf16.mxu0 0
      %1199 = vmatmul.mubr.bf16.gmra.mxu0 %v890
      %v1200 = vpop.f32.mrf.mxu0
      %v1201 = vadd.f32 %v607, %v1200
      %v1202 = vpop.f32.mrf.mxu0
      %v1203 = vpop.f32.mrf.mxu0
      %v1204 = vadd.f32 %v607, %v1203
      %v1205 = vpop.f32.mrf.mxu0
      %1206 = vmatprep.mubr.bf16.mxu0 0
      %1207 = vmatmul.mubr.bf16.gmra.mxu0 %v893
      %v1208 = vpop.f32.mrf.mxu0
      %v1209 = vpop.f32.mrf.mxu0
      %v1210 = vpop.f32.mrf.mxu0
      %v1211 = vpop.f32.mrf.mxu0
      %1212 = vmatprep.mubr.bf16.mxu0 0
      %1213 = vmatmul.mubr.bf16.gmra.mxu0 %v896
      %v1214 = vpop.f32.mrf.mxu0
      %v1215 = vpop.f32.mrf.mxu0
      %v1216 = vpop.f32.mrf.mxu0
      %v1217 = vpop.f32.mrf.mxu0
      %1218 = vdwg.mxu0
      %v1219 = vmax.f32 %v937, 0.0
      %v1220 = vmax.f32 %v940, 0.0
      %v1221 = vmax.f32 %v945, 0.0
      %v1222 = vmax.f32 %v948, 0.0
      %v1223 = vmax.f32 %v953, 0.0
      %v1224 = vmax.f32 %v956, 0.0
      %v1225 = vmax.f32 %v961, 0.0
      %v1226 = vmax.f32 %v964, 0.0
      %v1227 = vmax.f32 %v969, 0.0
      %v1228 = vmax.f32 %v972, 0.0
      %v1229 = vmax.f32 %v977, 0.0
      %v1230 = vmax.f32 %v980, 0.0
      %v1231 = vmax.f32 %v985, 0.0
      %v1232 = vmax.f32 %v988, 0.0
      %v1233 = vmax.f32 %v993, 0.0
      %v1234 = vmax.f32 %v996, 0.0
      %v1235 = vmax.f32 %v1001, 0.0
      %v1236 = vmax.f32 %v1004, 0.0
      %v1237 = vmax.f32 %v1009, 0.0
      %v1238 = vmax.f32 %v1012, 0.0
      %v1239 = vmax.f32 %v1017, 0.0
      %v1240 = vmax.f32 %v1020, 0.0
      %v1241 = vmax.f32 %v1025, 0.0
      %v1242 = vmax.f32 %v1028, 0.0
      %v1243 = vmax.f32 %v1033, 0.0
      %v1244 = vmax.f32 %v1036, 0.0
      %v1245 = vmax.f32 %v1041, 0.0
      %v1246 = vmax.f32 %v1044, 0.0
      %v1247 = vmax.f32 %v1049, 0.0
      %v1248 = vmax.f32 %v1052, 0.0
      %v1249 = vmax.f32 %v1057, 0.0
      %v1250 = vmax.f32 %v1060, 0.0
      %v1251 = vmax.f32 %v1065, 0.0
      %v1252 = vmax.f32 %v1068, 0.0
      %v1253 = vmax.f32 %v1073, 0.0
      %v1254 = vmax.f32 %v1076, 0.0
      %v1255 = vmax.f32 %v1081, 0.0
      %v1256 = vmax.f32 %v1084, 0.0
      %v1257 = vmax.f32 %v1089, 0.0
      %v1258 = vmax.f32 %v1092, 0.0
      %v1259 = vmax.f32 %v1097, 0.0
      %v1260 = vmax.f32 %v1100, 0.0
      %v1261 = vmax.f32 %v1105, 0.0
      %v1262 = vmax.f32 %v1108, 0.0
      %v1263 = vmax.f32 %v1113, 0.0
      %v1264 = vmax.f32 %v1116, 0.0
      %v1265 = vmax.f32 %v1121, 0.0
      %v1266 = vmax.f32 %v1124, 0.0
      %v1267 = vmax.f32 %v1129, 0.0
      %v1268 = vmax.f32 %v1132, 0.0
      %v1269 = vmax.f32 %v1137, 0.0
      %v1270 = vmax.f32 %v1140, 0.0
      %v1271 = vmax.f32 %v1145, 0.0
      %v1272 = vmax.f32 %v1148, 0.0
      %v1273 = vmax.f32 %v1153, 0.0
      %v1274 = vmax.f32 %v1156, 0.0
      %v1275 = vmax.f32 %v1161, 0.0
      %v1276 = vmax.f32 %v1164, 0.0
      %v1277 = vmax.f32 %v1169, 0.0
      %v1278 = vmax.f32 %v1172, 0.0
      %v1279 = vmax.f32 %v1177, 0.0
      %v1280 = vmax.f32 %v1180, 0.0
      %v1281 = vmax.f32 %v1185, 0.0
      %v1282 = vmax.f32 %v1188, 0.0
      %v1283 = vmax.f32 %v1193, 0.0
      %v1284 = vmax.f32 %v1196, 0.0
      %v1285 = vmax.f32 %v1201, 0.0
      %v1286 = vmax.f32 %v1204, 0.0
      %s1287 = smul.u32 %s26, 16
      %s1288 = ssub.s32 %s1287, 1
      %v1289 = vstv %s1288
      %v1290 = vadd.s32 %v1289, 1
      %v1291 = vadd.s32 %v1289, 2
      %v1292 = vadd.s32 %v1289, 3
      %v1293 = vadd.s32 %v1289, 4
      %v1294 = vadd.s32 %v1289, 5
      %v1295 = vadd.s32 %v1289, 6
      %v1296 = vadd.s32 %v1289, 7
      %v1297 = vadd.s32 %v1289, 8
      %v1298 = vadd.s32 %v1289, 9
      %v1299 = vadd.s32 %v1289, 10
      %v1300 = vadd.s32 %v1289, 11
      %v1301 = vadd.s32 %v1289, 12
      %v1302 = vadd.s32 %v1289, 13
      %v1303 = vadd.s32 %v1289, 14
      %v1304 = vadd.s32 %v1289, 15
      %v1305 = vadd.s32 %v1289, 16
      %v1306 = vlaneseq
      %v1307 = vshrl.u32 %v1306, 7
      %v1308 = vadd.s32 %v1307, 8
      %v1309 = vmul.u32 %v1307, 2
      %v1310 = vmul.u32 %v1308, 2
      %v1311 = vadd.s32 %v1309, 1
      %v1312 = vadd.s32 %v1310, 1
      %vm1313 = vcmp.ge.s32.totalorder %v1289, 0
      %vm1314 = vcmp.ge.s32.totalorder %v1290, 0
      %vm1315 = vcmp.ge.s32.totalorder %v1291, 0
      %vm1316 = vcmp.ge.s32.totalorder %v1292, 0
      %vm1317 = vcmp.ge.s32.totalorder %v1293, 0
      %vm1318 = vcmp.ge.s32.totalorder %v1294, 0
      %vm1319 = vcmp.ge.s32.totalorder %v1295, 0
      %vm1320 = vcmp.ge.s32.totalorder %v1296, 0
      %vm1321 = vcmp.ge.s32.totalorder %v1297, 0
      %vm1322 = vcmp.ge.s32.totalorder %v1298, 0
      %vm1323 = vcmp.ge.s32.totalorder %v1299, 0
      %vm1324 = vcmp.ge.s32.totalorder %v1300, 0
      %vm1325 = vcmp.ge.s32.totalorder %v1301, 0
      %vm1326 = vcmp.ge.s32.totalorder %v1302, 0
      %vm1327 = vcmp.ge.s32.totalorder %v1303, 0
      %vm1328 = vcmp.ge.s32.totalorder %v1304, 0
      %vm1329 = vcmp.ge.s32.totalorder %v1305, 0
      %vm1330 = vcmp.lt.s32.totalorder %v1289, 16
      %vm1331 = vcmp.lt.s32.totalorder %v1290, 16
      %vm1332 = vcmp.lt.s32.totalorder %v1291, 16
      %vm1333 = vcmp.lt.s32.totalorder %v1292, 16
      %vm1334 = vcmp.lt.s32.totalorder %v1293, 16
      %vm1335 = vcmp.lt.s32.totalorder %v1294, 16
      %vm1336 = vcmp.lt.s32.totalorder %v1295, 16
      %vm1337 = vcmp.lt.s32.totalorder %v1296, 16
      %vm1338 = vcmp.lt.s32.totalorder %v1297, 16
      %vm1339 = vcmp.lt.s32.totalorder %v1298, 16
      %vm1340 = vcmp.lt.s32.totalorder %v1299, 16
      %vm1341 = vcmp.lt.s32.totalorder %v1300, 16
      %vm1342 = vcmp.lt.s32.totalorder %v1301, 16
      %vm1343 = vcmp.lt.s32.totalorder %v1302, 16
      %vm1344 = vcmp.lt.s32.totalorder %v1303, 16
      %vm1345 = vcmp.lt.s32.totalorder %v1304, 16
      %vm1346 = vcmp.lt.s32.totalorder %v1305, 16
      %vm1347 = vmand %vm1313, %vm1330
      %vm1348 = vmand %vm1314, %vm1331
      %vm1349 = vmand %vm1315, %vm1332
      %vm1350 = vmand %vm1316, %vm1333
      %vm1351 = vmand %vm1317, %vm1334
      %vm1352 = vmand %vm1318, %vm1335
      %vm1353 = vmand %vm1319, %vm1336
      %vm1354 = vmand %vm1320, %vm1337
      %vm1355 = vmand %vm1321, %vm1338
      %vm1356 = vmand %vm1322, %vm1339
      %vm1357 = vmand %vm1323, %vm1340
      %vm1358 = vmand %vm1324, %vm1341
      %vm1359 = vmand %vm1325, %vm1342
      %vm1360 = vmand %vm1326, %vm1343
      %vm1361 = vmand %vm1327, %vm1344
      %vm1362 = vmand %vm1328, %vm1345
      %vm1363 = vmand %vm1329, %vm1346
      %vm1364 = vcmp.ge.s32.totalorder %v1309, 1
      %vm1365 = vcmp.ge.s32.totalorder %v1310, 1
      %vm1366 = vcmp.ge.s32.totalorder %v1311, 1
      %vm1367 = vcmp.ge.s32.totalorder %v1312, 1
      %vm1368 = vmand %vm1347, %vm1364
      %vm1369 = vmand %vm1347, %vm1365
      %vm1370 = vmand %vm1347, %vm1366
      %vm1371 = vmand %vm1347, %vm1367
      %vm1372 = vmand %vm1348, %vm1364
      %vm1373 = vmand %vm1348, %vm1365
      %vm1374 = vmand %vm1348, %vm1366
      %vm1375 = vmand %vm1348, %vm1367
      %vm1376 = vmand %vm1349, %vm1364
      %vm1377 = vmand %vm1349, %vm1365
      %vm1378 = vmand %vm1349, %vm1366
      %vm1379 = vmand %vm1349, %vm1367
      %vm1380 = vmand %vm1350, %vm1364
      %vm1381 = vmand %vm1350, %vm1365
      %vm1382 = vmand %vm1350, %vm1366
      %vm1383 = vmand %vm1350, %vm1367
      %vm1384 = vmand %vm1351, %vm1364
      %vm1385 = vmand %vm1351, %vm1365
      %vm1386 = vmand %vm1351, %vm1366
      %vm1387 = vmand %vm1351, %vm1367
      %vm1388 = vmand %vm1352, %vm1364
      %vm1389 = vmand %vm1352, %vm1365
      %vm1390 = vmand %vm1352, %vm1366
      %vm1391 = vmand %vm1352, %vm1367
      %vm1392 = vmand %vm1353, %vm1364
      %vm1393 = vmand %vm1353, %vm1365
      %vm1394 = vmand %vm1353, %vm1366
      %vm1395 = vmand %vm1353, %vm1367
      %vm1396 = vmand %vm1354, %vm1364
      %vm1397 = vmand %vm1354, %vm1365
      %vm1398 = vmand %vm1354, %vm1366
      %vm1399 = vmand %vm1354, %vm1367
      %vm1400 = vmand %vm1355, %vm1364
      %vm1401 = vmand %vm1355, %vm1365
      %vm1402 = vmand %vm1355, %vm1366
      %vm1403 = vmand %vm1355, %vm1367
      %vm1404 = vmand %vm1356, %vm1364
      %vm1405 = vmand %vm1356, %vm1365
      %vm1406 = vmand %vm1356, %vm1366
      %vm1407 = vmand %vm1356, %vm1367
      %vm1408 = vmand %vm1357, %vm1364
      %vm1409 = vmand %vm1357, %vm1365
      %vm1410 = vmand %vm1357, %vm1366
      %vm1411 = vmand %vm1357, %vm1367
      %vm1412 = vmand %vm1358, %vm1364
      %vm1413 = vmand %vm1358, %vm1365
      %vm1414 = vmand %vm1358, %vm1366
      %vm1415 = vmand %vm1358, %vm1367
      %vm1416 = vmand %vm1359, %vm1364
      %vm1417 = vmand %vm1359, %vm1365
      %vm1418 = vmand %vm1359, %vm1366
      %vm1419 = vmand %vm1359, %vm1367
      %vm1420 = vmand %vm1360, %vm1364
      %vm1421 = vmand %vm1360, %vm1365
      %vm1422 = vmand %vm1360, %vm1366
      %vm1423 = vmand %vm1360, %vm1367
      %vm1424 = vmand %vm1361, %vm1364
      %vm1425 = vmand %vm1361, %vm1365
      %vm1426 = vmand %vm1361, %vm1366
      %vm1427 = vmand %vm1361, %vm1367
      %vm1428 = vmand %vm1362, %vm1364
      %vm1429 = vmand %vm1362, %vm1365
      %vm1430 = vmand %vm1362, %vm1366
      %vm1431 = vmand %vm1362, %vm1367
      %vm1432 = vmand %vm1363, %vm1364
      %vm1433 = vmand %vm1363, %vm1365
      %vm1434 = vmand %vm1363, %vm1366
      %vm1435 = vmand %vm1363, %vm1367
      %vm1436 = vcmp.le.s32.totalorder %v1309, 16
      %vm1437 = vcmp.le.s32.totalorder %v1310, 16
      %vm1438 = vcmp.le.s32.totalorder %v1311, 16
      %vm1439 = vcmp.le.s32.totalorder %v1312, 16
      %vm1440 = vmand %vm1368, %vm1436
      %vm1441 = vmand %vm1369, %vm1437
      %vm1442 = vmand %vm1370, %vm1438
      %vm1443 = vmand %vm1371, %vm1439
      %vm1444 = vmand %vm1372, %vm1436
      %vm1445 = vmand %vm1373, %vm1437
      %vm1446 = vmand %vm1374, %vm1438
      %vm1447 = vmand %vm1375, %vm1439
      %vm1448 = vmand %vm1376, %vm1436
      %vm1449 = vmand %vm1377, %vm1437
      %vm1450 = vmand %vm1378, %vm1438
      %vm1451 = vmand %vm1379, %vm1439
      %vm1452 = vmand %vm1380, %vm1436
      %vm1453 = vmand %vm1381, %vm1437
      %vm1454 = vmand %vm1382, %vm1438
      %vm1455 = vmand %vm1383, %vm1439
      %vm1456 = vmand %vm1384, %vm1436
      %vm1457 = vmand %vm1385, %vm1437
      %vm1458 = vmand %vm1386, %vm1438
      %vm1459 = vmand %vm1387, %vm1439
      %vm1460 = vmand %vm1388, %vm1436
      %vm1461 = vmand %vm1389, %vm1437
      %vm1462 = vmand %vm1390, %vm1438
      %vm1463 = vmand %vm1391, %vm1439
      %vm1464 = vmand %vm1392, %vm1436
      %vm1465 = vmand %vm1393, %vm1437
      %vm1466 = vmand %vm1394, %vm1438
      %vm1467 = vmand %vm1395, %vm1439
      %vm1468 = vmand %vm1396, %vm1436
      %vm1469 = vmand %vm1397, %vm1437
      %vm1470 = vmand %vm1398, %vm1438
      %vm1471 = vmand %vm1399, %vm1439
      %vm1472 = vmand %vm1400, %vm1436
      %vm1473 = vmand %vm1401, %vm1437
      %vm1474 = vmand %vm1402, %vm1438
      %vm1475 = vmand %vm1403, %vm1439
      %vm1476 = vmand %vm1404, %vm1436
      %vm1477 = vmand %vm1405, %vm1437
      %vm1478 = vmand %vm1406, %vm1438
      %vm1479 = vmand %vm1407, %vm1439
      %vm1480 = vmand %vm1408, %vm1436
      %vm1481 = vmand %vm1409, %vm1437
      %vm1482 = vmand %vm1410, %vm1438
      %vm1483 = vmand %vm1411, %vm1439
      %vm1484 = vmand %vm1412, %vm1436
      %vm1485 = vmand %vm1413, %vm1437
      %vm1486 = vmand %vm1414, %vm1438
      %vm1487 = vmand %vm1415, %vm1439
      %vm1488 = vmand %vm1416, %vm1436
      %vm1489 = vmand %vm1417, %vm1437
      %vm1490 = vmand %vm1418, %vm1438
      %vm1491 = vmand %vm1419, %vm1439
      %vm1492 = vmand %vm1420, %vm1436
      %vm1493 = vmand %vm1421, %vm1437
      %vm1494 = vmand %vm1422, %vm1438
      %vm1495 = vmand %vm1423, %vm1439
      %vm1496 = vmand %vm1424, %vm1436
      %vm1497 = vmand %vm1425, %vm1437
      %vm1498 = vmand %vm1426, %vm1438
      %vm1499 = vmand %vm1427, %vm1439
      %vm1500 = vmand %vm1428, %vm1436
      %vm1501 = vmand %vm1429, %vm1437
      %vm1502 = vmand %vm1430, %vm1438
      %vm1503 = vmand %vm1431, %vm1439
      %vm1504 = vmand %vm1432, %vm1436
      %vm1505 = vmand %vm1433, %vm1437
      %vm1506 = vmand %vm1434, %vm1438
      %vm1507 = vmand %vm1435, %vm1439
      %v1508 = vsel %vm1440, 1, 0
      %v1509 = vsel %vm1441, 1, 0
      %v1510 = vsel %vm1442, 1, 0
      %v1511 = vsel %vm1443, 1, 0
      %v1512 = vsel %vm1444, 1, 0
      %v1513 = vsel %vm1445, 1, 0
      %v1514 = vsel %vm1446, 1, 0
      %v1515 = vsel %vm1447, 1, 0
      %v1516 = vsel %vm1448, 1, 0
      %v1517 = vsel %vm1449, 1, 0
      %v1518 = vsel %vm1450, 1, 0
      %v1519 = vsel %vm1451, 1, 0
      %v1520 = vsel %vm1452, 1, 0
      %v1521 = vsel %vm1453, 1, 0
      %v1522 = vsel %vm1454, 1, 0
      %v1523 = vsel %vm1455, 1, 0
      %v1524 = vsel %vm1456, 1, 0
      %v1525 = vsel %vm1457, 1, 0
      %v1526 = vsel %vm1458, 1, 0
      %v1527 = vsel %vm1459, 1, 0
      %v1528 = vsel %vm1460, 1, 0
      %v1529 = vsel %vm1461, 1, 0
      %v1530 = vsel %vm1462, 1, 0
      %v1531 = vsel %vm1463, 1, 0
      %v1532 = vsel %vm1464, 1, 0
      %v1533 = vsel %vm1465, 1, 0
      %v1534 = vsel %vm1466, 1, 0
      %v1535 = vsel %vm1467, 1, 0
      %v1536 = vsel %vm1468, 1, 0
      %v1537 = vsel %vm1469, 1, 0
      %v1538 = vsel %vm1470, 1, 0
      %v1539 = vsel %vm1471, 1, 0
      %v1540 = vsel %vm1472, 1, 0
      %v1541 = vsel %vm1473, 1, 0
      %v1542 = vsel %vm1474, 1, 0
      %v1543 = vsel %vm1475, 1, 0
      %v1544 = vsel %vm1476, 1, 0
      %v1545 = vsel %vm1477, 1, 0
      %v1546 = vsel %vm1478, 1, 0
      %v1547 = vsel %vm1479, 1, 0
      %v1548 = vsel %vm1480, 1, 0
      %v1549 = vsel %vm1481, 1, 0
      %v1550 = vsel %vm1482, 1, 0
      %v1551 = vsel %vm1483, 1, 0
      %v1552 = vsel %vm1484, 1, 0
      %v1553 = vsel %vm1485, 1, 0
      %v1554 = vsel %vm1486, 1, 0
      %v1555 = vsel %vm1487, 1, 0
      %v1556 = vsel %vm1488, 1, 0
      %v1557 = vsel %vm1489, 1, 0
      %v1558 = vsel %vm1490, 1, 0
      %v1559 = vsel %vm1491, 1, 0
      %v1560 = vsel %vm1492, 1, 0
      %v1561 = vsel %vm1493, 1, 0
      %v1562 = vsel %vm1494, 1, 0
      %v1563 = vsel %vm1495, 1, 0
      %v1564 = vsel %vm1496, 1, 0
      %v1565 = vsel %vm1497, 1, 0
      %v1566 = vsel %vm1498, 1, 0
      %v1567 = vsel %vm1499, 1, 0
      %v1568 = vsel %vm1500, 1, 0
      %v1569 = vsel %vm1501, 1, 0
      %v1570 = vsel %vm1502, 1, 0
      %v1571 = vsel %vm1503, 1, 0
      %v1572 = vsel %vm1504, 1, 0
      %v1573 = vsel %vm1505, 1, 0
      %v1574 = vsel %vm1506, 1, 0
      %v1575 = vsel %vm1507, 1, 0
      %vm1576 = vcmp.eq.s32.totalorder %v1508, 1
      %vm1577 = vcmp.eq.s32.totalorder %v1509, 1
      %vm1578 = vcmp.eq.s32.totalorder %v1510, 1
      %vm1579 = vcmp.eq.s32.totalorder %v1511, 1
      %vm1580 = vcmp.eq.s32.totalorder %v1512, 1
      %vm1581 = vcmp.eq.s32.totalorder %v1513, 1
      %vm1582 = vcmp.eq.s32.totalorder %v1514, 1
      %vm1583 = vcmp.eq.s32.totalorder %v1515, 1
      %vm1584 = vcmp.eq.s32.totalorder %v1516, 1
      %vm1585 = vcmp.eq.s32.totalorder %v1517, 1
      %vm1586 = vcmp.eq.s32.totalorder %v1518, 1
      %vm1587 = vcmp.eq.s32.totalorder %v1519, 1
      %vm1588 = vcmp.eq.s32.totalorder %v1520, 1
      %vm1589 = vcmp.eq.s32.totalorder %v1521, 1
      %vm1590 = vcmp.eq.s32.totalorder %v1522, 1
      %vm1591 = vcmp.eq.s32.totalorder %v1523, 1
      %vm1592 = vcmp.eq.s32.totalorder %v1524, 1
      %vm1593 = vcmp.eq.s32.totalorder %v1525, 1
      %vm1594 = vcmp.eq.s32.totalorder %v1526, 1
      %vm1595 = vcmp.eq.s32.totalorder %v1527, 1
      %vm1596 = vcmp.eq.s32.totalorder %v1528, 1
      %vm1597 = vcmp.eq.s32.totalorder %v1529, 1
      %vm1598 = vcmp.eq.s32.totalorder %v1530, 1
      %vm1599 = vcmp.eq.s32.totalorder %v1531, 1
      %vm1600 = vcmp.eq.s32.totalorder %v1532, 1
      %vm1601 = vcmp.eq.s32.totalorder %v1533, 1
      %vm1602 = vcmp.eq.s32.totalorder %v1534, 1
      %vm1603 = vcmp.eq.s32.totalorder %v1535, 1
      %vm1604 = vcmp.eq.s32.totalorder %v1536, 1
      %vm1605 = vcmp.eq.s32.totalorder %v1537, 1
      %vm1606 = vcmp.eq.s32.totalorder %v1538, 1
      %vm1607 = vcmp.eq.s32.totalorder %v1539, 1
      %vm1608 = vcmp.eq.s32.totalorder %v1540, 1
      %vm1609 = vcmp.eq.s32.totalorder %v1541, 1
      %vm1610 = vcmp.eq.s32.totalorder %v1542, 1
      %vm1611 = vcmp.eq.s32.totalorder %v1543, 1
      %vm1612 = vcmp.eq.s32.totalorder %v1544, 1
      %vm1613 = vcmp.eq.s32.totalorder %v1545, 1
      %vm1614 = vcmp.eq.s32.totalorder %v1546, 1
      %vm1615 = vcmp.eq.s32.totalorder %v1547, 1
      %vm1616 = vcmp.eq.s32.totalorder %v1548, 1
      %vm1617 = vcmp.eq.s32.totalorder %v1549, 1
      %vm1618 = vcmp.eq.s32.totalorder %v1550, 1
      %vm1619 = vcmp.eq.s32.totalorder %v1551, 1
      %vm1620 = vcmp.eq.s32.totalorder %v1552, 1
      %vm1621 = vcmp.eq.s32.totalorder %v1553, 1
      %vm1622 = vcmp.eq.s32.totalorder %v1554, 1
      %vm1623 = vcmp.eq.s32.totalorder %v1555, 1
      %vm1624 = vcmp.eq.s32.totalorder %v1556, 1
      %vm1625 = vcmp.eq.s32.totalorder %v1557, 1
      %vm1626 = vcmp.eq.s32.totalorder %v1558, 1
      %vm1627 = vcmp.eq.s32.totalorder %v1559, 1
      %vm1628 = vcmp.eq.s32.totalorder %v1560, 1
      %vm1629 = vcmp.eq.s32.totalorder %v1561, 1
      %vm1630 = vcmp.eq.s32.totalorder %v1562, 1
      %vm1631 = vcmp.eq.s32.totalorder %v1563, 1
      %vm1632 = vcmp.eq.s32.totalorder %v1564, 1
      %vm1633 = vcmp.eq.s32.totalorder %v1565, 1
      %vm1634 = vcmp.eq.s32.totalorder %v1566, 1
      %vm1635 = vcmp.eq.s32.totalorder %v1567, 1
      %vm1636 = vcmp.eq.s32.totalorder %v1568, 1
      %vm1637 = vcmp.eq.s32.totalorder %v1569, 1
      %vm1638 = vcmp.eq.s32.totalorder %v1570, 1
      %vm1639 = vcmp.eq.s32.totalorder %v1571, 1
      %vm1640 = vcmp.eq.s32.totalorder %v1572, 1
      %vm1641 = vcmp.eq.s32.totalorder %v1573, 1
      %vm1642 = vcmp.eq.s32.totalorder %v1574, 1
      %vm1643 = vcmp.eq.s32.totalorder %v1575, 1
      %v1644 = vsel %vm1576, %v1219, 0.0
      %v1645 = vsel %vm1577, %v1220, 0.0
      %v1646 = vsel %vm1578, %v1221, 0.0
      %v1647 = vsel %vm1579, %v1222, 0.0
      %v1648 = vsel %vm1580, %v1223, 0.0
      %v1649 = vsel %vm1581, %v1224, 0.0
      %v1650 = vsel %vm1582, %v1225, 0.0
      %v1651 = vsel %vm1583, %v1226, 0.0
      %v1652 = vsel %vm1584, %v1227, 0.0
      %v1653 = vsel %vm1585, %v1228, 0.0
      %v1654 = vsel %vm1586, %v1229, 0.0
      %v1655 = vsel %vm1587, %v1230, 0.0
      %v1656 = vsel %vm1588, %v1231, 0.0
      %v1657 = vsel %vm1589, %v1232, 0.0
      %v1658 = vsel %vm1590, %v1233, 0.0
      %v1659 = vsel %vm1591, %v1234, 0.0
      %v1660 = vsel %vm1592, %v1235, 0.0
      %v1661 = vsel %vm1593, %v1236, 0.0
      %v1662 = vsel %vm1594, %v1237, 0.0
      %v1663 = vsel %vm1595, %v1238, 0.0
      %v1664 = vsel %vm1596, %v1239, 0.0
      %v1665 = vsel %vm1597, %v1240, 0.0
      %v1666 = vsel %vm1598, %v1241, 0.0
      %v1667 = vsel %vm1599, %v1242, 0.0
      %v1668 = vsel %vm1600, %v1243, 0.0
      %v1669 = vsel %vm1601, %v1244, 0.0
      %v1670 = vsel %vm1602, %v1245, 0.0
      %v1671 = vsel %vm1603, %v1246, 0.0
      %v1672 = vsel %vm1604, %v1247, 0.0
      %v1673 = vsel %vm1605, %v1248, 0.0
      %v1674 = vsel %vm1606, %v1249, 0.0
      %v1675 = vsel %vm1607, %v1250, 0.0
      %v1676 = vsel %vm1608, %v1251, 0.0
      %v1677 = vsel %vm1609, %v1252, 0.0
      %v1678 = vsel %vm1610, %v1253, 0.0
      %v1679 = vsel %vm1611, %v1254, 0.0
      %v1680 = vsel %vm1612, %v1255, 0.0
      %v1681 = vsel %vm1613, %v1256, 0.0
      %v1682 = vsel %vm1614, %v1257, 0.0
      %v1683 = vsel %vm1615, %v1258, 0.0
      %v1684 = vsel %vm1616, %v1259, 0.0
      %v1685 = vsel %vm1617, %v1260, 0.0
      %v1686 = vsel %vm1618, %v1261, 0.0
      %v1687 = vsel %vm1619, %v1262, 0.0
      %v1688 = vsel %vm1620, %v1263, 0.0
      %v1689 = vsel %vm1621, %v1264, 0.0
      %v1690 = vsel %vm1622, %v1265, 0.0
      %v1691 = vsel %vm1623, %v1266, 0.0
      %v1692 = vsel %vm1624, %v1267, 0.0
      %v1693 = vsel %vm1625, %v1268, 0.0
      %v1694 = vsel %vm1626, %v1269, 0.0
      %v1695 = vsel %vm1627, %v1270, 0.0
      %v1696 = vsel %vm1628, %v1271, 0.0
      %v1697 = vsel %vm1629, %v1272, 0.0
      %v1698 = vsel %vm1630, %v1273, 0.0
      %v1699 = vsel %vm1631, %v1274, 0.0
      %v1700 = vsel %vm1632, %v1275, 0.0
      %v1701 = vsel %vm1633, %v1276, 0.0
      %v1702 = vsel %vm1634, %v1277, 0.0
      %v1703 = vsel %vm1635, %v1278, 0.0
      %v1704 = vsel %vm1636, %v1279, 0.0
      %v1705 = vsel %vm1637, %v1280, 0.0
      %v1706 = vsel %vm1638, %v1281, 0.0
      %v1707 = vsel %vm1639, %v1282, 0.0
      %v1708 = vsel %vm1640, %v1283, 0.0
      %v1709 = vsel %vm1641, %v1284, 0.0
      %v1710 = vsel %vm1642, %v1285, 0.0
      %v1711 = vsel %vm1643, %v1286, 0.0
      %v1712 = vpack.c.bf16 %v1645, %v1644
      %v1713 = vpack.c.bf16 %v1647, %v1646
      %v1714 = vpack.c.bf16 %v1649, %v1648
      %v1715 = vpack.c.bf16 %v1651, %v1650
      %v1716 = vpack.c.bf16 %v1653, %v1652
      %v1717 = vpack.c.bf16 %v1655, %v1654
      %v1718 = vpack.c.bf16 %v1657, %v1656
      %v1719 = vpack.c.bf16 %v1659, %v1658
      %v1720 = vpack.c.bf16 %v1661, %v1660
      %v1721 = vpack.c.bf16 %v1663, %v1662
      %v1722 = vpack.c.bf16 %v1665, %v1664
      %v1723 = vpack.c.bf16 %v1667, %v1666
      %v1724 = vpack.c.bf16 %v1669, %v1668
      %v1725 = vpack.c.bf16 %v1671, %v1670
      %v1726 = vpack.c.bf16 %v1673, %v1672
      %v1727 = vpack.c.bf16 %v1675, %v1674
      %v1728 = vpack.c.bf16 %v1677, %v1676
      %v1729 = vpack.c.bf16 %v1679, %v1678
      %v1730 = vpack.c.bf16 %v1681, %v1680
      %v1731 = vpack.c.bf16 %v1683, %v1682
      %v1732 = vpack.c.bf16 %v1685, %v1684
      %v1733 = vpack.c.bf16 %v1687, %v1686
      %v1734 = vpack.c.bf16 %v1689, %v1688
      %v1735 = vpack.c.bf16 %v1691, %v1690
      %v1736 = vpack.c.bf16 %v1693, %v1692
      %v1737 = vpack.c.bf16 %v1695, %v1694
      %v1738 = vpack.c.bf16 %v1697, %v1696
      %v1739 = vpack.c.bf16 %v1699, %v1698
      %v1740 = vpack.c.bf16 %v1701, %v1700
      %v1741 = vpack.c.bf16 %v1703, %v1702
      %v1742 = vpack.c.bf16 %v1705, %v1704
      %v1743 = vpack.c.bf16 %v1707, %v1706
      %v1744 = vpack.c.bf16 %v1709, %v1708
      %v1745 = vpack.c.bf16 %v1711, %v1710
      %v1754 = vunpack.c.l.b16 %v1712
      %v1755 = vunpack.c.h.b16 %v1712
      %v1756 = vunpack.c.l.b16 %v1716
      %v1757 = vunpack.c.h.b16 %v1716
      %v1758 = vunpack.c.l.b16 %v1720
      %v1759 = vunpack.c.h.b16 %v1720
      %v1760 = vunpack.c.l.b16 %v1724
      %v1761 = vunpack.c.h.b16 %v1724
      %v1762 = vunpack.c.l.b16 %v1728
      %v1763 = vunpack.c.h.b16 %v1728
      %v1764 = vunpack.c.l.b16 %v1732
      %v1765 = vunpack.c.h.b16 %v1732
      %v1766 = vunpack.c.l.b16 %v1736
      %v1767 = vunpack.c.h.b16 %v1736
      %v1768 = vunpack.c.l.b16 %v1740
      %v1769 = vunpack.c.h.b16 %v1740
      %v1770 = vpack.c.b16 %v1754, %v1754
      %v1771 = vpack.c.b16 %v1755, %v1755
      %v1772 = vpack.c.b16 %v1756, %v1756
      %v1773 = vpack.c.b16 %v1757, %v1757
      %v1774 = vpack.c.b16 %v1758, %v1758
      %v1775 = vpack.c.b16 %v1759, %v1759
      %v1776 = vpack.c.b16 %v1760, %v1760
      %v1777 = vpack.c.b16 %v1761, %v1761
      %v1778 = vpack.c.b16 %v1762, %v1762
      %v1779 = vpack.c.b16 %v1763, %v1763
      %v1780 = vpack.c.b16 %v1764, %v1764
      %v1781 = vpack.c.b16 %v1765, %v1765
      %v1782 = vpack.c.b16 %v1766, %v1766
      %v1783 = vpack.c.b16 %v1767, %v1767
      %v1784 = vpack.c.b16 %v1768, %v1768
      %v1785 = vpack.c.b16 %v1769, %v1769
      %vm1786 = vsmask.f32 3328
      %vm1787 = vsmask.f32 7440
      %vm1788 = vmor %vm1786, %vm1787
      %v1790 = vshrl.u32 %v1770, 16
      %v1792 = vrot.slane %v1790, 4
      %v1793 = vshll.u32 %v1770, 16
      %v1795 = vrot.slane %v1793, 5
      %v1796 = vor.u32 %v1792, %v1795
      %v1797 = vrot.slane %v1796, 4
      %v1799 = vshll.u32 %v1771, 16
      %v1801 = vrot.slane %v1799, 5
      %v1802 = vsel %vm1788, %v1797, %v1801
      %v1804 = vshrl.u32 %v1772, 16
      %v1806 = vrot.slane %v1804, 4
      %v1807 = vshll.u32 %v1772, 16
      %v1809 = vrot.slane %v1807, 5
      %v1810 = vor.u32 %v1806, %v1809
      %v1811 = vrot.slane %v1810, 4
      %v1813 = vshll.u32 %v1773, 16
      %v1815 = vrot.slane %v1813, 5
      %v1816 = vsel %vm1788, %v1811, %v1815
      %v1818 = vshrl.u32 %v1774, 16
      %v1820 = vrot.slane %v1818, 4
      %v1821 = vshll.u32 %v1774, 16
      %v1823 = vrot.slane %v1821, 5
      %v1824 = vor.u32 %v1820, %v1823
      %v1825 = vrot.slane %v1824, 4
      %v1827 = vshll.u32 %v1775, 16
      %v1829 = vrot.slane %v1827, 5
      %v1830 = vsel %vm1788, %v1825, %v1829
      %v1832 = vshrl.u32 %v1776, 16
      %v1834 = vrot.slane %v1832, 4
      %v1835 = vshll.u32 %v1776, 16
      %v1837 = vrot.slane %v1835, 5
      %v1838 = vor.u32 %v1834, %v1837
      %v1839 = vrot.slane %v1838, 4
      %v1841 = vshll.u32 %v1777, 16
      %v1843 = vrot.slane %v1841, 5
      %v1844 = vsel %vm1788, %v1839, %v1843
      %v1846 = vshrl.u32 %v1778, 16
      %v1848 = vrot.slane %v1846, 4
      %v1849 = vshll.u32 %v1778, 16
      %v1851 = vrot.slane %v1849, 5
      %v1852 = vor.u32 %v1848, %v1851
      %v1853 = vrot.slane %v1852, 4
      %v1855 = vshll.u32 %v1779, 16
      %v1857 = vrot.slane %v1855, 5
      %v1858 = vsel %vm1788, %v1853, %v1857
      %v1860 = vshrl.u32 %v1780, 16
      %v1862 = vrot.slane %v1860, 4
      %v1863 = vshll.u32 %v1780, 16
      %v1865 = vrot.slane %v1863, 5
      %v1866 = vor.u32 %v1862, %v1865
      %v1867 = vrot.slane %v1866, 4
      %v1869 = vshll.u32 %v1781, 16
      %v1871 = vrot.slane %v1869, 5
      %v1872 = vsel %vm1788, %v1867, %v1871
      %v1874 = vshrl.u32 %v1782, 16
      %v1876 = vrot.slane %v1874, 4
      %v1877 = vshll.u32 %v1782, 16
      %v1879 = vrot.slane %v1877, 5
      %v1880 = vor.u32 %v1876, %v1879
      %v1881 = vrot.slane %v1880, 4
      %v1883 = vshll.u32 %v1783, 16
      %v1885 = vrot.slane %v1883, 5
      %v1886 = vsel %vm1788, %v1881, %v1885
      %v1888 = vshrl.u32 %v1784, 16
      %v1890 = vrot.slane %v1888, 4
      %v1891 = vshll.u32 %v1784, 16
      %v1893 = vrot.slane %v1891, 5
      %v1894 = vor.u32 %v1890, %v1893
      %v1895 = vrot.slane %v1894, 4
      %v1897 = vshll.u32 %v1785, 16
      %v1899 = vrot.slane %v1897, 5
      %v1900 = vsel %vm1788, %v1895, %v1899
      %v1901 = vpack.c.b16 %v1756, %v1754
      %v1902 = vpack.c.b16 %v1760, %v1758
      %v1903 = vpack.c.b16 %v1764, %v1762
      %v1904 = vpack.c.b16 %v1768, %v1766
      %v1917 = vunpack.c.l.b16 %v1713
      %v1918 = vunpack.c.l.b16 %v1717
      %v1919 = vunpack.c.l.b16 %v1721
      %v1920 = vunpack.c.l.b16 %v1725
      %v1921 = vunpack.c.l.b16 %v1729
      %v1922 = vunpack.c.l.b16 %v1733
      %v1923 = vunpack.c.l.b16 %v1737
      %v1924 = vunpack.c.l.b16 %v1741
      %v1925 = vpack.c.b16 %v1918, %v1917
      %v1926 = vpack.c.b16 %v1920, %v1919
      %v1927 = vpack.c.b16 %v1922, %v1921
      %v1928 = vpack.c.b16 %v1924, %v1923
      %v1933 = vunpack.c.l.b16 %v1802
      %v1934 = vunpack.c.l.b16 %v1816
      %v1935 = vunpack.c.l.b16 %v1830
      %v1936 = vunpack.c.l.b16 %v1844
      %v1937 = vunpack.c.l.b16 %v1858
      %v1938 = vunpack.c.l.b16 %v1872
      %v1939 = vunpack.c.l.b16 %v1886
      %v1940 = vunpack.c.l.b16 %v1900
      %v1941 = vpack.c.b16 %v1934, %v1933
      %v1942 = vpack.c.b16 %v1936, %v1935
      %v1943 = vpack.c.b16 %v1938, %v1937
      %v1944 = vpack.c.b16 %v1940, %v1939
      %v1949 = vld [vmem:[%s5] sm:$0xf]
      %v1950 = vld [vmem:[%s5 + $0x4] sm:$0xf]
      %v1951 = vld [vmem:[%s5 + $0x8] sm:$0xf]
      %v1952 = vld [vmem:[%s5 + $0xc] sm:$0xf]
      %v1953 = vld [vmem:[%s5 + $0x10] sm:$0xf]
      %v1954 = vld [vmem:[%s5 + $0x14] sm:$0xf]
      %v1955 = vld [vmem:[%s5 + $0x18] sm:$0xf]
      %v1956 = vld [vmem:[%s5 + $0x1c] sm:$0xf]
      %v1957 = vld [vmem:[%s5 + $0x20] sm:$0xf]
      %v1958 = vld [vmem:[%s5 + $0x24] sm:$0xf]
      %v1959 = vld [vmem:[%s5 + $0x28] sm:$0xf]
      %v1960 = vld [vmem:[%s5 + $0x2c] sm:$0xf]
      %v1961 = vld [vmem:[%s5 + $0x30] sm:$0xf]
      %v1962 = vld [vmem:[%s5 + $0x34] sm:$0xf]
      %v1963 = vld [vmem:[%s5 + $0x38] sm:$0xf]
      %v1964 = vld [vmem:[%s5 + $0x3c] sm:$0xf]
      %v1965 = vld [vmem:[%s5 + $0x40] sm:$0xf]
      %v1966 = vld [vmem:[%s5 + $0x44] sm:$0xf]
      %v1967 = vld [vmem:[%s5 + $0x48] sm:$0xf]
      %v1968 = vld [vmem:[%s5 + $0x4c] sm:$0xf]
      %v1969 = vld [vmem:[%s5 + $0x50] sm:$0xf]
      %v1970 = vld [vmem:[%s5 + $0x54] sm:$0xf]
      %v1971 = vld [vmem:[%s5 + $0x58] sm:$0xf]
      %v1972 = vld [vmem:[%s5 + $0x5c] sm:$0xf]
      %v1973 = vld [vmem:[%s5 + $0x60] sm:$0xf]
      %v1974 = vld [vmem:[%s5 + $0x64] sm:$0xf]
      %v1975 = vld [vmem:[%s5 + $0x68] sm:$0xf]
      %v1976 = vld [vmem:[%s5 + $0x6c] sm:$0xf]
      %v1977 = vld [vmem:[%s5 + $0x70] sm:$0xf]
      %v1978 = vld [vmem:[%s5 + $0x74] sm:$0xf]
      %v1979 = vld [vmem:[%s5 + $0x78] sm:$0xf]
      %v1980 = vld [vmem:[%s5 + $0x7c] sm:$0xf]
      %v1981 = vld [vmem:[%s5 + $0x80] sm:$0xf]
      %v1982 = vld [vmem:[%s5 + $0x84] sm:$0xf]
      %v1983 = vld [vmem:[%s5 + $0x88] sm:$0xf]
      %v1984 = vld [vmem:[%s5 + $0x8c] sm:$0xf]
      %v1985 = vld [vmem:[%s5 + $0x90] sm:$0xf]
      %v1986 = vld [vmem:[%s5 + $0x94] sm:$0xf]
      %v1987 = vld [vmem:[%s5 + $0x98] sm:$0xf]
      %v1988 = vld [vmem:[%s5 + $0x9c] sm:$0xf]
      %v1989 = vld [vmem:[%s5 + $0xa0] sm:$0xf]
      %v1990 = vld [vmem:[%s5 + $0xa4] sm:$0xf]
      %v1991 = vld [vmem:[%s5 + $0xa8] sm:$0xf]
      %v1992 = vld [vmem:[%s5 + $0xac] sm:$0xf]
      %v1993 = vld [vmem:[%s5 + $0xb0] sm:$0xf]
      %v1994 = vld [vmem:[%s5 + $0xb4] sm:$0xf]
      %v1995 = vld [vmem:[%s5 + $0xb8] sm:$0xf]
      %v1996 = vld [vmem:[%s5 + $0xbc] sm:$0xf]
      %v2005 = vunpack.c.l.b16 %v1714
      %v2006 = vunpack.c.h.b16 %v1714
      %v2007 = vunpack.c.l.b16 %v1718
      %v2008 = vunpack.c.h.b16 %v1718
      %v2009 = vunpack.c.l.b16 %v1722
      %v2010 = vunpack.c.h.b16 %v1722
      %v2011 = vunpack.c.l.b16 %v1726
      %v2012 = vunpack.c.h.b16 %v1726
      %v2013 = vunpack.c.l.b16 %v1730
      %v2014 = vunpack.c.h.b16 %v1730
      %v2015 = vunpack.c.l.b16 %v1734
      %v2016 = vunpack.c.h.b16 %v1734
      %v2017 = vunpack.c.l.b16 %v1738
      %v2018 = vunpack.c.h.b16 %v1738
      %v2019 = vunpack.c.l.b16 %v1742
      %v2020 = vunpack.c.h.b16 %v1742
      %v2021 = vpack.c.b16 %v2005, %v2005
      %v2022 = vpack.c.b16 %v2006, %v2006
      %v2023 = vpack.c.b16 %v2007, %v2007
      %v2024 = vpack.c.b16 %v2008, %v2008
      %v2025 = vpack.c.b16 %v2009, %v2009
      %v2026 = vpack.c.b16 %v2010, %v2010
      %v2027 = vpack.c.b16 %v2011, %v2011
      %v2028 = vpack.c.b16 %v2012, %v2012
      %v2029 = vpack.c.b16 %v2013, %v2013
      %v2030 = vpack.c.b16 %v2014, %v2014
      %v2031 = vpack.c.b16 %v2015, %v2015
      %v2032 = vpack.c.b16 %v2016, %v2016
      %v2033 = vpack.c.b16 %v2017, %v2017
      %v2034 = vpack.c.b16 %v2018, %v2018
      %v2035 = vpack.c.b16 %v2019, %v2019
      %v2036 = vpack.c.b16 %v2020, %v2020
      %v2038 = vshrl.u32 %v2021, 16
      %v2040 = vrot.slane %v2038, 4
      %v2041 = vshll.u32 %v2021, 16
      %v2043 = vrot.slane %v2041, 5
      %v2044 = vor.u32 %v2040, %v2043
      %v2045 = vrot.slane %v2044, 4
      %v2047 = vshll.u32 %v2022, 16
      %v2049 = vrot.slane %v2047, 5
      %v2050 = vsel %vm1788, %v2045, %v2049
      %v2052 = vshrl.u32 %v2023, 16
      %v2054 = vrot.slane %v2052, 4
      %v2055 = vshll.u32 %v2023, 16
      %v2057 = vrot.slane %v2055, 5
      %v2058 = vor.u32 %v2054, %v2057
      %v2059 = vrot.slane %v2058, 4
      %v2061 = vshll.u32 %v2024, 16
      %v2063 = vrot.slane %v2061, 5
      %v2064 = vsel %vm1788, %v2059, %v2063
      %v2066 = vshrl.u32 %v2025, 16
      %v2068 = vrot.slane %v2066, 4
      %v2069 = vshll.u32 %v2025, 16
      %v2071 = vrot.slane %v2069, 5
      %v2072 = vor.u32 %v2068, %v2071
      %v2073 = vrot.slane %v2072, 4
      %v2075 = vshll.u32 %v2026, 16
      %v2077 = vrot.slane %v2075, 5
      %v2078 = vsel %vm1788, %v2073, %v2077
      %v2080 = vshrl.u32 %v2027, 16
      %v2082 = vrot.slane %v2080, 4
      %v2083 = vshll.u32 %v2027, 16
      %v2085 = vrot.slane %v2083, 5
      %v2086 = vor.u32 %v2082, %v2085
      %v2087 = vrot.slane %v2086, 4
      %v2089 = vshll.u32 %v2028, 16
      %v2091 = vrot.slane %v2089, 5
      %v2092 = vsel %vm1788, %v2087, %v2091
      %v2094 = vshrl.u32 %v2029, 16
      %v2096 = vrot.slane %v2094, 4
      %v2097 = vshll.u32 %v2029, 16
      %v2099 = vrot.slane %v2097, 5
      %v2100 = vor.u32 %v2096, %v2099
      %v2101 = vrot.slane %v2100, 4
      %v2103 = vshll.u32 %v2030, 16
      %v2105 = vrot.slane %v2103, 5
      %v2106 = vsel %vm1788, %v2101, %v2105
      %v2108 = vshrl.u32 %v2031, 16
      %v2110 = vrot.slane %v2108, 4
      %v2111 = vshll.u32 %v2031, 16
      %v2113 = vrot.slane %v2111, 5
      %v2114 = vor.u32 %v2110, %v2113
      %v2115 = vrot.slane %v2114, 4
      %v2117 = vshll.u32 %v2032, 16
      %v2119 = vrot.slane %v2117, 5
      %v2120 = vsel %vm1788, %v2115, %v2119
      %v2122 = vshrl.u32 %v2033, 16
      %v2124 = vrot.slane %v2122, 4
      %v2125 = vshll.u32 %v2033, 16
      %v2127 = vrot.slane %v2125, 5
      %v2128 = vor.u32 %v2124, %v2127
      %v2129 = vrot.slane %v2128, 4
      %v2131 = vshll.u32 %v2034, 16
      %v2133 = vrot.slane %v2131, 5
      %v2134 = vsel %vm1788, %v2129, %v2133
      %v2136 = vshrl.u32 %v2035, 16
      %v2138 = vrot.slane %v2136, 4
      %v2139 = vshll.u32 %v2035, 16
      %v2141 = vrot.slane %v2139, 5
      %v2142 = vor.u32 %v2138, %v2141
      %v2143 = vrot.slane %v2142, 4
      %v2145 = vshll.u32 %v2036, 16
      %v2147 = vrot.slane %v2145, 5
      %v2148 = vsel %vm1788, %v2143, %v2147
      %v2149 = vpack.c.b16 %v2007, %v2005
      %v2150 = vpack.c.b16 %v2011, %v2009
      %v2151 = vpack.c.b16 %v2015, %v2013
      %v2152 = vpack.c.b16 %v2019, %v2017
      %v2165 = vunpack.c.l.b16 %v1715
      %v2166 = vunpack.c.l.b16 %v1719
      %v2167 = vunpack.c.l.b16 %v1723
      %v2168 = vunpack.c.l.b16 %v1727
      %v2169 = vunpack.c.l.b16 %v1731
      %v2170 = vunpack.c.l.b16 %v1735
      %v2171 = vunpack.c.l.b16 %v1739
      %v2172 = vunpack.c.l.b16 %v1743
      %v2173 = vpack.c.b16 %v2166, %v2165
      %v2174 = vpack.c.b16 %v2168, %v2167
      %v2175 = vpack.c.b16 %v2170, %v2169
      %v2176 = vpack.c.b16 %v2172, %v2171
      %v2181 = vunpack.c.l.b16 %v2050
      %v2182 = vunpack.c.l.b16 %v2064
      %v2183 = vunpack.c.l.b16 %v2078
      %v2184 = vunpack.c.l.b16 %v2092
      %v2185 = vunpack.c.l.b16 %v2106
      %v2186 = vunpack.c.l.b16 %v2120
      %v2187 = vunpack.c.l.b16 %v2134
      %v2188 = vunpack.c.l.b16 %v2148
      %v2189 = vpack.c.b16 %v2182, %v2181
      %v2190 = vpack.c.b16 %v2184, %v2183
      %v2191 = vpack.c.b16 %v2186, %v2185
      %v2192 = vpack.c.b16 %v2188, %v2187
      %s2197 = scalar_lea.vmem %s5, 192
      %v2198 = vld [vmem:[%s2197] sm:$0xf]
      %v2199 = vld [vmem:[%s2197 + $0x4] sm:$0xf]
      %v2200 = vld [vmem:[%s2197 + $0x8] sm:$0xf]
      %v2201 = vld [vmem:[%s2197 + $0xc] sm:$0xf]
      %v2202 = vld [vmem:[%s2197 + $0x10] sm:$0xf]
      %v2203 = vld [vmem:[%s2197 + $0x14] sm:$0xf]
      %v2204 = vld [vmem:[%s2197 + $0x18] sm:$0xf]
      %v2205 = vld [vmem:[%s2197 + $0x1c] sm:$0xf]
      %v2206 = vld [vmem:[%s2197 + $0x20] sm:$0xf]
      %v2207 = vld [vmem:[%s2197 + $0x24] sm:$0xf]
      %v2208 = vld [vmem:[%s2197 + $0x28] sm:$0xf]
      %v2209 = vld [vmem:[%s2197 + $0x2c] sm:$0xf]
      %v2210 = vld [vmem:[%s2197 + $0x30] sm:$0xf]
      %v2211 = vld [vmem:[%s2197 + $0x34] sm:$0xf]
      %v2212 = vld [vmem:[%s2197 + $0x38] sm:$0xf]
      %v2213 = vld [vmem:[%s2197 + $0x3c] sm:$0xf]
      %v2214 = vld [vmem:[%s2197 + $0x40] sm:$0xf]
      %v2215 = vld [vmem:[%s2197 + $0x44] sm:$0xf]
      %v2216 = vld [vmem:[%s2197 + $0x48] sm:$0xf]
      %v2217 = vld [vmem:[%s2197 + $0x4c] sm:$0xf]
      %v2218 = vld [vmem:[%s2197 + $0x50] sm:$0xf]
      %v2219 = vld [vmem:[%s2197 + $0x54] sm:$0xf]
      %v2220 = vld [vmem:[%s2197 + $0x58] sm:$0xf]
      %v2221 = vld [vmem:[%s2197 + $0x5c] sm:$0xf]
      %v2222 = vld [vmem:[%s2197 + $0x60] sm:$0xf]
      %v2223 = vld [vmem:[%s2197 + $0x64] sm:$0xf]
      %v2224 = vld [vmem:[%s2197 + $0x68] sm:$0xf]
      %v2225 = vld [vmem:[%s2197 + $0x6c] sm:$0xf]
      %v2226 = vld [vmem:[%s2197 + $0x70] sm:$0xf]
      %v2227 = vld [vmem:[%s2197 + $0x74] sm:$0xf]
      %v2228 = vld [vmem:[%s2197 + $0x78] sm:$0xf]
      %v2229 = vld [vmem:[%s2197 + $0x7c] sm:$0xf]
      %v2230 = vld [vmem:[%s2197 + $0x80] sm:$0xf]
      %v2231 = vld [vmem:[%s2197 + $0x84] sm:$0xf]
      %v2232 = vld [vmem:[%s2197 + $0x88] sm:$0xf]
      %v2233 = vld [vmem:[%s2197 + $0x8c] sm:$0xf]
      %v2234 = vld [vmem:[%s2197 + $0x90] sm:$0xf]
      %v2235 = vld [vmem:[%s2197 + $0x94] sm:$0xf]
      %v2236 = vld [vmem:[%s2197 + $0x98] sm:$0xf]
      %v2237 = vld [vmem:[%s2197 + $0x9c] sm:$0xf]
      %v2238 = vld [vmem:[%s2197 + $0xa0] sm:$0xf]
      %v2239 = vld [vmem:[%s2197 + $0xa4] sm:$0xf]
      %v2240 = vld [vmem:[%s2197 + $0xa8] sm:$0xf]
      %v2241 = vld [vmem:[%s2197 + $0xac] sm:$0xf]
      %v2242 = vld [vmem:[%s2197 + $0xb0] sm:$0xf]
      %v2243 = vld [vmem:[%s2197 + $0xb4] sm:$0xf]
      %v2244 = vld [vmem:[%s2197 + $0xb8] sm:$0xf]
      %v2245 = vld [vmem:[%s2197 + $0xbc] sm:$0xf]
      %v2294 = vunpack.c.l.b16 %v2198
      %v2295 = vunpack.c.l.b16 %v2199
      %v2296 = vunpack.c.l.b16 %v2200
      %v2297 = vunpack.c.l.b16 %v2201
      %v2298 = vunpack.c.l.b16 %v2202
      %v2299 = vunpack.c.l.b16 %v2203
      %v2300 = vunpack.c.l.b16 %v2204
      %v2301 = vunpack.c.l.b16 %v2205
      %v2302 = vunpack.c.l.b16 %v2206
      %v2303 = vunpack.c.l.b16 %v2207
      %v2304 = vunpack.c.l.b16 %v2208
      %v2305 = vunpack.c.l.b16 %v2209
      %v2306 = vunpack.c.l.b16 %v2210
      %v2307 = vunpack.c.l.b16 %v2211
      %v2308 = vunpack.c.l.b16 %v2212
      %v2309 = vunpack.c.l.b16 %v2213
      %v2310 = vunpack.c.l.b16 %v2214
      %v2311 = vunpack.c.l.b16 %v2215
      %v2312 = vunpack.c.l.b16 %v2216
      %v2313 = vunpack.c.l.b16 %v2217
      %v2314 = vunpack.c.l.b16 %v2218
      %v2315 = vunpack.c.l.b16 %v2219
      %v2316 = vunpack.c.l.b16 %v2220
      %v2317 = vunpack.c.l.b16 %v2221
      %v2318 = vunpack.c.l.b16 %v2222
      %v2319 = vunpack.c.l.b16 %v2223
      %v2320 = vunpack.c.l.b16 %v2224
      %v2321 = vunpack.c.l.b16 %v2225
      %v2322 = vunpack.c.l.b16 %v2226
      %v2323 = vunpack.c.l.b16 %v2227
      %v2324 = vunpack.c.l.b16 %v2228
      %v2325 = vunpack.c.l.b16 %v2229
      %v2326 = vunpack.c.l.b16 %v2230
      %v2327 = vunpack.c.l.b16 %v2231
      %v2328 = vunpack.c.l.b16 %v2232
      %v2329 = vunpack.c.l.b16 %v2233
      %v2330 = vunpack.c.l.b16 %v2234
      %v2331 = vunpack.c.l.b16 %v2235
      %v2332 = vunpack.c.l.b16 %v2236
      %v2333 = vunpack.c.l.b16 %v2237
      %v2334 = vunpack.c.l.b16 %v2238
      %v2335 = vunpack.c.l.b16 %v2239
      %v2336 = vunpack.c.l.b16 %v2240
      %v2337 = vunpack.c.l.b16 %v2241
      %v2338 = vunpack.c.l.b16 %v2242
      %v2339 = vunpack.c.l.b16 %v2243
      %v2340 = vunpack.c.l.b16 %v2244
      %v2341 = vunpack.c.l.b16 %v2245
      %v2342 = vpack.c.b16 %v2295, %v2294
      %v2343 = vpack.c.b16 %v2297, %v2296
      %v2344 = vpack.c.b16 %v2299, %v2298
      %v2345 = vpack.c.b16 %v2301, %v2300
      %v2346 = vpack.c.b16 %v2303, %v2302
      %v2347 = vpack.c.b16 %v2305, %v2304
      %v2348 = vpack.c.b16 %v2307, %v2306
      %v2349 = vpack.c.b16 %v2309, %v2308
      %v2350 = vpack.c.b16 %v2311, %v2310
      %v2351 = vpack.c.b16 %v2313, %v2312
      %v2352 = vpack.c.b16 %v2315, %v2314
      %v2353 = vpack.c.b16 %v2317, %v2316
      %v2354 = vpack.c.b16 %v2319, %v2318
      %v2355 = vpack.c.b16 %v2321, %v2320
      %v2356 = vpack.c.b16 %v2323, %v2322
      %v2357 = vpack.c.b16 %v2325, %v2324
      %v2358 = vpack.c.b16 %v2327, %v2326
      %v2359 = vpack.c.b16 %v2329, %v2328
      %v2360 = vpack.c.b16 %v2331, %v2330
      %v2361 = vpack.c.b16 %v2333, %v2332
      %v2362 = vpack.c.b16 %v2335, %v2334
      %v2363 = vpack.c.b16 %v2337, %v2336
      %v2364 = vpack.c.b16 %v2339, %v2338
      %v2365 = vpack.c.b16 %v2341, %v2340
      %2390 = vmatprep.subr.bf16.mxu0 0
      %2391 = vmatpush1.bf16.msra.mxu0 %v2349
      %2392 = vmatprep.subr.bf16.mxu0 0
      %2393 = vmatpush1.bf16.msra.mxu0 %v2348
      %2394 = vmatprep.subr.bf16.mxu0 0
      %2395 = vmatpush1.bf16.msra.mxu0 %v2347
      %2396 = vmatprep.subr.bf16.mxu0 0
      %2397 = vmatpush1.bf16.msra.mxu0 %v2346
      %2398 = vmatprep.subr.bf16.mxu0 0
      %2399 = vmatpush1.bf16.msra.mxu0 %v2345
      %2400 = vmatprep.subr.bf16.mxu0 0
      %2401 = vmatpush1.bf16.msra.mxu0 %v2344
      %2402 = vmatprep.subr.bf16.mxu0 0
      %2403 = vmatpush1.bf16.msra.mxu0 %v2343
      %2404 = vmatprep.subr.bf16.mxu0 0
      %2405 = vmatpush1.bf16.msra.mxu0 %v2342
      %2406 = vmatprep.subr.bf16.mxu0 0
      %2407 = vmatpush2.bf16.msra.mxu0 %v2357
      %2408 = vmatprep.subr.bf16.mxu0 0
      %2409 = vmatpush2.bf16.msra.mxu0 %v2356
      %2410 = vmatprep.subr.bf16.mxu0 0
      %2411 = vmatpush2.bf16.msra.mxu0 %v2355
      %2412 = vmatprep.subr.bf16.mxu0 0
      %2413 = vmatpush2.bf16.msra.mxu0 %v2354
      %2414 = vmatprep.subr.bf16.mxu0 0
      %2415 = vmatpush2.bf16.msra.mxu0 %v2353
      %2416 = vmatprep.subr.bf16.mxu0 0
      %2417 = vmatpush2.bf16.msra.mxu0 %v2352
      %2418 = vmatprep.subr.bf16.mxu0 0
      %2419 = vmatpush2.bf16.msra.mxu0 %v2351
      %2420 = vmatprep.subr.bf16.mxu0 0
      %2421 = vmatpush2.bf16.msra.mxu0 %v2350
      %2422 = vmatprep.mubr.bf16.mxu0 %v2173
      %2423 = vmatmul.mubr.bf16.gmra.mxu0 %v2149
      %v2424 = vpop.f32.mrf.mxu0
      %v2425 = vadd.f32 0.0, %v2424
      %v2426 = vpop.f32.mrf.mxu0
      %v2427 = vpop.f32.mrf.mxu0
      %v2428 = vadd.f32 0.0, %v2427
      %v2429 = vpop.f32.mrf.mxu0
      %2430 = vmatprep.mubr.bf16.mxu0 %v2174
      %2431 = vmatmul.mubr.bf16.gmra.mxu0 %v2150
      %v2432 = vpop.f32.mrf.mxu0
      %v2433 = vadd.f32 0.0, %v2432
      %v2434 = vpop.f32.mrf.mxu0
      %v2435 = vpop.f32.mrf.mxu0
      %v2436 = vadd.f32 0.0, %v2435
      %v2437 = vpop.f32.mrf.mxu0
      %2438 = vmatprep.mubr.bf16.mxu0 %v2175
      %2439 = vmatmul.mubr.bf16.gmra.mxu0 %v2151
      %v2440 = vpop.f32.mrf.mxu0
      %v2441 = vadd.f32 0.0, %v2440
      %v2442 = vpop.f32.mrf.mxu0
      %v2443 = vpop.f32.mrf.mxu0
      %v2444 = vadd.f32 0.0, %v2443
      %v2445 = vpop.f32.mrf.mxu0
      %2446 = vmatprep.mubr.bf16.mxu0 %v2176
      %2447 = vmatmul.mubr.bf16.gmra.mxu0 %v2152
      %v2448 = vpop.f32.mrf.mxu0
      %v2449 = vadd.f32 0.0, %v2448
      %v2450 = vpop.f32.mrf.mxu0
      %v2451 = vpop.f32.mrf.mxu0
      %v2452 = vadd.f32 0.0, %v2451
      %v2453 = vpop.f32.mrf.mxu0
      %2454 = vdwg.mxu0
      %2455 = vmatprep.subr.bf16.mxu0 0
      %2456 = vmatpush1.bf16.msra.mxu0 %v2365
      %2457 = vmatprep.subr.bf16.mxu0 0
      %2458 = vmatpush1.bf16.msra.mxu0 %v2364
      %2459 = vmatprep.subr.bf16.mxu0 0
      %2460 = vmatpush1.bf16.msra.mxu0 %v2363
      %2461 = vmatprep.subr.bf16.mxu0 0
      %2462 = vmatpush1.bf16.msra.mxu0 %v2362
      %2463 = vmatprep.subr.bf16.mxu0 0
      %2464 = vmatpush1.bf16.msra.mxu0 %v2361
      %2465 = vmatprep.subr.bf16.mxu0 0
      %2466 = vmatpush1.bf16.msra.mxu0 %v2360
      %2467 = vmatprep.subr.bf16.mxu0 0
      %2468 = vmatpush1.bf16.msra.mxu0 %v2359
      %2469 = vmatprep.subr.bf16.mxu0 0
      %2470 = vmatpush1.bf16.msra.mxu0 %v2358
      %2471 = vmatprep.subr.bf16.mxu0 0
      %2472 = vmatpush2.bf16.msra.mxu0 0
      %2473 = vmatprep.subr.bf16.mxu0 0
      %2474 = vmatpush2.bf16.msra.mxu0 0
      %2475 = vmatprep.subr.bf16.mxu0 0
      %2476 = vmatpush2.bf16.msra.mxu0 0
      %2477 = vmatprep.subr.bf16.mxu0 0
      %2478 = vmatpush2.bf16.msra.mxu0 0
      %2479 = vmatprep.subr.bf16.mxu0 0
      %2480 = vmatpush2.bf16.msra.mxu0 0
      %2481 = vmatprep.subr.bf16.mxu0 0
      %2482 = vmatpush2.bf16.msra.mxu0 0
      %2483 = vmatprep.subr.bf16.mxu0 0
      %2484 = vmatpush2.bf16.msra.mxu0 0
      %2485 = vmatprep.subr.bf16.mxu0 0
      %2486 = vmatpush2.bf16.msra.mxu0 0
      %2487 = vmatprep.mubr.bf16.mxu0 0
      %2488 = vmatmul.mubr.bf16.gmra.mxu0 %v2189
      %v2489 = vpop.f32.mrf.mxu0
      %v2490 = vadd.f32 %v2425, %v2489
      %v2491 = vpop.f32.mrf.mxu0
      %v2492 = vpop.f32.mrf.mxu0
      %v2493 = vadd.f32 %v2428, %v2492
      %v2494 = vpop.f32.mrf.mxu0
      %2495 = vmatprep.mubr.bf16.mxu0 0
      %2496 = vmatmul.mubr.bf16.gmra.mxu0 %v2190
      %v2497 = vpop.f32.mrf.mxu0
      %v2498 = vadd.f32 %v2433, %v2497
      %v2499 = vpop.f32.mrf.mxu0
      %v2500 = vpop.f32.mrf.mxu0
      %v2501 = vadd.f32 %v2436, %v2500
      %v2502 = vpop.f32.mrf.mxu0
      %2503 = vmatprep.mubr.bf16.mxu0 0
      %2504 = vmatmul.mubr.bf16.gmra.mxu0 %v2191
      %v2505 = vpop.f32.mrf.mxu0
      %v2506 = vadd.f32 %v2441, %v2505
      %v2507 = vpop.f32.mrf.mxu0
      %v2508 = vpop.f32.mrf.mxu0
      %v2509 = vadd.f32 %v2444, %v2508
      %v2510 = vpop.f32.mrf.mxu0
      %2511 = vmatprep.mubr.bf16.mxu0 0
      %2512 = vmatmul.mubr.bf16.gmra.mxu0 %v2192
      %v2513 = vpop.f32.mrf.mxu0
      %v2514 = vadd.f32 %v2449, %v2513
      %v2515 = vpop.f32.mrf.mxu0
      %v2516 = vpop.f32.mrf.mxu0
      %v2517 = vadd.f32 %v2452, %v2516
      %v2518 = vpop.f32.mrf.mxu0
      %2519 = vdwg.mxu0
      %v2568 = vunpack.c.l.b16 %v1949
      %v2569 = vunpack.c.l.b16 %v1950
      %v2570 = vunpack.c.l.b16 %v1951
      %v2571 = vunpack.c.l.b16 %v1952
      %v2572 = vunpack.c.l.b16 %v1953
      %v2573 = vunpack.c.l.b16 %v1954
      %v2574 = vunpack.c.l.b16 %v1955
      %v2575 = vunpack.c.l.b16 %v1956
      %v2576 = vunpack.c.l.b16 %v1957
      %v2577 = vunpack.c.l.b16 %v1958
      %v2578 = vunpack.c.l.b16 %v1959
      %v2579 = vunpack.c.l.b16 %v1960
      %v2580 = vunpack.c.l.b16 %v1961
      %v2581 = vunpack.c.l.b16 %v1962
      %v2582 = vunpack.c.l.b16 %v1963
      %v2583 = vunpack.c.l.b16 %v1964
      %v2584 = vunpack.c.l.b16 %v1965
      %v2585 = vunpack.c.l.b16 %v1966
      %v2586 = vunpack.c.l.b16 %v1967
      %v2587 = vunpack.c.l.b16 %v1968
      %v2588 = vunpack.c.l.b16 %v1969
      %v2589 = vunpack.c.l.b16 %v1970
      %v2590 = vunpack.c.l.b16 %v1971
      %v2591 = vunpack.c.l.b16 %v1972
      %v2592 = vunpack.c.l.b16 %v1973
      %v2593 = vunpack.c.l.b16 %v1974
      %v2594 = vunpack.c.l.b16 %v1975
      %v2595 = vunpack.c.l.b16 %v1976
      %v2596 = vunpack.c.l.b16 %v1977
      %v2597 = vunpack.c.l.b16 %v1978
      %v2598 = vunpack.c.l.b16 %v1979
      %v2599 = vunpack.c.l.b16 %v1980
      %v2600 = vunpack.c.l.b16 %v1981
      %v2601 = vunpack.c.l.b16 %v1982
      %v2602 = vunpack.c.l.b16 %v1983
      %v2603 = vunpack.c.l.b16 %v1984
      %v2604 = vunpack.c.l.b16 %v1985
      %v2605 = vunpack.c.l.b16 %v1986
      %v2606 = vunpack.c.l.b16 %v1987
      %v2607 = vunpack.c.l.b16 %v1988
      %v2608 = vunpack.c.l.b16 %v1989
      %v2609 = vunpack.c.l.b16 %v1990
      %v2610 = vunpack.c.l.b16 %v1991
      %v2611 = vunpack.c.l.b16 %v1992
      %v2612 = vunpack.c.l.b16 %v1993
      %v2613 = vunpack.c.l.b16 %v1994
      %v2614 = vunpack.c.l.b16 %v1995
      %v2615 = vunpack.c.l.b16 %v1996
      %v2616 = vpack.c.b16 %v2569, %v2568
      %v2617 = vpack.c.b16 %v2571, %v2570
      %v2618 = vpack.c.b16 %v2573, %v2572
      %v2619 = vpack.c.b16 %v2575, %v2574
      %v2620 = vpack.c.b16 %v2577, %v2576
      %v2621 = vpack.c.b16 %v2579, %v2578
      %v2622 = vpack.c.b16 %v2581, %v2580
      %v2623 = vpack.c.b16 %v2583, %v2582
      %v2624 = vpack.c.b16 %v2585, %v2584
      %v2625 = vpack.c.b16 %v2587, %v2586
      %v2626 = vpack.c.b16 %v2589, %v2588
      %v2627 = vpack.c.b16 %v2591, %v2590
      %v2628 = vpack.c.b16 %v2593, %v2592
      %v2629 = vpack.c.b16 %v2595, %v2594
      %v2630 = vpack.c.b16 %v2597, %v2596
      %v2631 = vpack.c.b16 %v2599, %v2598
      %v2632 = vpack.c.b16 %v2601, %v2600
      %v2633 = vpack.c.b16 %v2603, %v2602
      %v2634 = vpack.c.b16 %v2605, %v2604
      %v2635 = vpack.c.b16 %v2607, %v2606
      %v2636 = vpack.c.b16 %v2609, %v2608
      %v2637 = vpack.c.b16 %v2611, %v2610
      %v2638 = vpack.c.b16 %v2613, %v2612
      %v2639 = vpack.c.b16 %v2615, %v2614
      %2664 = vmatprep.subr.bf16.mxu0 0
      %2665 = vmatpush1.bf16.msra.mxu0 %v2623
      %2666 = vmatprep.subr.bf16.mxu0 0
      %2667 = vmatpush1.bf16.msra.mxu0 %v2622
      %2668 = vmatprep.subr.bf16.mxu0 0
      %2669 = vmatpush1.bf16.msra.mxu0 %v2621
      %2670 = vmatprep.subr.bf16.mxu0 0
      %2671 = vmatpush1.bf16.msra.mxu0 %v2620
      %2672 = vmatprep.subr.bf16.mxu0 0
      %2673 = vmatpush1.bf16.msra.mxu0 %v2619
      %2674 = vmatprep.subr.bf16.mxu0 0
      %2675 = vmatpush1.bf16.msra.mxu0 %v2618
      %2676 = vmatprep.subr.bf16.mxu0 0
      %2677 = vmatpush1.bf16.msra.mxu0 %v2617
      %2678 = vmatprep.subr.bf16.mxu0 0
      %2679 = vmatpush1.bf16.msra.mxu0 %v2616
      %2680 = vmatprep.subr.bf16.mxu0 0
      %2681 = vmatpush2.bf16.msra.mxu0 %v2631
      %2682 = vmatprep.subr.bf16.mxu0 0
      %2683 = vmatpush2.bf16.msra.mxu0 %v2630
      %2684 = vmatprep.subr.bf16.mxu0 0
      %2685 = vmatpush2.bf16.msra.mxu0 %v2629
      %2686 = vmatprep.subr.bf16.mxu0 0
      %2687 = vmatpush2.bf16.msra.mxu0 %v2628
      %2688 = vmatprep.subr.bf16.mxu0 0
      %2689 = vmatpush2.bf16.msra.mxu0 %v2627
      %2690 = vmatprep.subr.bf16.mxu0 0
      %2691 = vmatpush2.bf16.msra.mxu0 %v2626
      %2692 = vmatprep.subr.bf16.mxu0 0
      %2693 = vmatpush2.bf16.msra.mxu0 %v2625
      %2694 = vmatprep.subr.bf16.mxu0 0
      %2695 = vmatpush2.bf16.msra.mxu0 %v2624
      %2696 = vmatprep.mubr.bf16.mxu0 %v1925
      %2697 = vmatmul.mubr.bf16.gmra.mxu0 %v1901
      %v2698 = vpop.f32.mrf.mxu0
      %v2699 = vadd.f32 %v2490, %v2698
      %v2700 = vpop.f32.mrf.mxu0
      %v2701 = vpop.f32.mrf.mxu0
      %v2702 = vadd.f32 %v2493, %v2701
      %v2703 = vpop.f32.mrf.mxu0
      %2704 = vmatprep.mubr.bf16.mxu0 %v1926
      %2705 = vmatmul.mubr.bf16.gmra.mxu0 %v1902
      %v2706 = vpop.f32.mrf.mxu0
      %v2707 = vadd.f32 %v2498, %v2706
      %v2708 = vpop.f32.mrf.mxu0
      %v2709 = vpop.f32.mrf.mxu0
      %v2710 = vadd.f32 %v2501, %v2709
      %v2711 = vpop.f32.mrf.mxu0
      %2712 = vmatprep.mubr.bf16.mxu0 %v1927
      %2713 = vmatmul.mubr.bf16.gmra.mxu0 %v1903
      %v2714 = vpop.f32.mrf.mxu0
      %v2715 = vadd.f32 %v2506, %v2714
      %v2716 = vpop.f32.mrf.mxu0
      %v2717 = vpop.f32.mrf.mxu0
      %v2718 = vadd.f32 %v2509, %v2717
      %v2719 = vpop.f32.mrf.mxu0
      %2720 = vmatprep.mubr.bf16.mxu0 %v1928
      %2721 = vmatmul.mubr.bf16.gmra.mxu0 %v1904
      %v2722 = vpop.f32.mrf.mxu0
      %v2723 = vadd.f32 %v2514, %v2722
      %v2724 = vpop.f32.mrf.mxu0
      %v2725 = vpop.f32.mrf.mxu0
      %v2726 = vadd.f32 %v2517, %v2725
      %v2727 = vpop.f32.mrf.mxu0
      %2728 = vdwg.mxu0
      %2729 = vmatprep.subr.bf16.mxu0 0
      %2730 = vmatpush1.bf16.msra.mxu0 %v2639
      %2731 = vmatprep.subr.bf16.mxu0 0
      %2732 = vmatpush1.bf16.msra.mxu0 %v2638
      %2733 = vmatprep.subr.bf16.mxu0 0
      %2734 = vmatpush1.bf16.msra.mxu0 %v2637
      %2735 = vmatprep.subr.bf16.mxu0 0
      %2736 = vmatpush1.bf16.msra.mxu0 %v2636
      %2737 = vmatprep.subr.bf16.mxu0 0
      %2738 = vmatpush1.bf16.msra.mxu0 %v2635
      %2739 = vmatprep.subr.bf16.mxu0 0
      %2740 = vmatpush1.bf16.msra.mxu0 %v2634
      %2741 = vmatprep.subr.bf16.mxu0 0
      %2742 = vmatpush1.bf16.msra.mxu0 %v2633
      %2743 = vmatprep.subr.bf16.mxu0 0
      %2744 = vmatpush1.bf16.msra.mxu0 %v2632
      %2745 = vmatprep.subr.bf16.mxu0 0
      %2746 = vmatpush2.bf16.msra.mxu0 0
      %2747 = vmatprep.subr.bf16.mxu0 0
      %2748 = vmatpush2.bf16.msra.mxu0 0
      %2749 = vmatprep.subr.bf16.mxu0 0
      %2750 = vmatpush2.bf16.msra.mxu0 0
      %2751 = vmatprep.subr.bf16.mxu0 0
      %2752 = vmatpush2.bf16.msra.mxu0 0
      %2753 = vmatprep.subr.bf16.mxu0 0
      %2754 = vmatpush2.bf16.msra.mxu0 0
      %2755 = vmatprep.subr.bf16.mxu0 0
      %2756 = vmatpush2.bf16.msra.mxu0 0
      %2757 = vmatprep.subr.bf16.mxu0 0
      %2758 = vmatpush2.bf16.msra.mxu0 0
      %2759 = vmatprep.subr.bf16.mxu0 0
      %2760 = vmatpush2.bf16.msra.mxu0 0
      %2761 = vmatprep.mubr.bf16.mxu0 0
      %2762 = vmatmul.mubr.bf16.gmra.mxu0 %v1941
      %v2763 = vpop.f32.mrf.mxu0
      %v2764 = vadd.f32 %v2699, %v2763
      %v2765 = vpop.f32.mrf.mxu0
      %v2766 = vpop.f32.mrf.mxu0
      %v2767 = vadd.f32 %v2702, %v2766
      %v2768 = vpop.f32.mrf.mxu0
      %2769 = vmatprep.mubr.bf16.mxu0 0
      %2770 = vmatmul.mubr.bf16.gmra.mxu0 %v1942
      %v2771 = vpop.f32.mrf.mxu0
      %v2772 = vadd.f32 %v2707, %v2771
      %v2773 = vpop.f32.mrf.mxu0
      %v2774 = vpop.f32.mrf.mxu0
      %v2775 = vadd.f32 %v2710, %v2774
      %v2776 = vpop.f32.mrf.mxu0
      %2777 = vmatprep.mubr.bf16.mxu0 0
      %2778 = vmatmul.mubr.bf16.gmra.mxu0 %v1943
      %v2779 = vpop.f32.mrf.mxu0
      %v2780 = vadd.f32 %v2715, %v2779
      %v2781 = vpop.f32.mrf.mxu0
      %v2782 = vpop.f32.mrf.mxu0
      %v2783 = vadd.f32 %v2718, %v2782
      %v2784 = vpop.f32.mrf.mxu0
      %2785 = vmatprep.mubr.bf16.mxu0 0
      %2786 = vmatmul.mubr.bf16.gmra.mxu0 %v1944
      %v2787 = vpop.f32.mrf.mxu0
      %v2788 = vadd.f32 %v2723, %v2787
      %v2789 = vpop.f32.mrf.mxu0
      %v2790 = vpop.f32.mrf.mxu0
      %v2791 = vadd.f32 %v2726, %v2790
      %v2792 = vpop.f32.mrf.mxu0
      %2793 = vdwg.mxu0
      %v2795 = vunpack.c.l.b16 %v1744
      %v2796 = vunpack.c.h.b16 %v1744
      %v2797 = vpack.c.b16 %v2795, %v2795
      %v2798 = vpack.c.b16 %v2796, %v2796
      %v2800 = vshrl.u32 %v2797, 16
      %v2802 = vrot.slane %v2800, 4
      %v2803 = vshll.u32 %v2797, 16
      %v2805 = vrot.slane %v2803, 5
      %v2806 = vor.u32 %v2802, %v2805
      %v2807 = vrot.slane %v2806, 4
      %v2809 = vshll.u32 %v2798, 16
      %v2811 = vrot.slane %v2809, 5
      %v2812 = vsel %vm1788, %v2807, %v2811
      %v2813 = vpack.c.b16 %v1758, %v1756
      %v2814 = vpack.c.b16 %v1762, %v1760
      %v2815 = vpack.c.b16 %v1766, %v1764
      %v2816 = vpack.c.b16 %v2795, %v1768
      %v2822 = vunpack.c.l.b16 %v1745
      %v2823 = vpack.c.b16 %v1919, %v1918
      %v2824 = vpack.c.b16 %v1921, %v1920
      %v2825 = vpack.c.b16 %v1923, %v1922
      %v2826 = vpack.c.b16 %v2822, %v1924
      %v2831 = vunpack.c.l.b16 %v2812
      %v2832 = vpack.c.b16 %v1935, %v1934
      %v2833 = vpack.c.b16 %v1937, %v1936
      %v2834 = vpack.c.b16 %v1939, %v1938
      %v2835 = vpack.c.b16 %v2831, %v1940
      %s2840 = scalar_lea.vmem %s5, 384
      %v2841 = vld [vmem:[%s2840] sm:$0xf]
      %v2842 = vld [vmem:[%s2840 + $0x4] sm:$0xf]
      %v2843 = vld [vmem:[%s2840 + $0x8] sm:$0xf]
      %v2844 = vld [vmem:[%s2840 + $0xc] sm:$0xf]
      %v2845 = vld [vmem:[%s2840 + $0x10] sm:$0xf]
      %v2846 = vld [vmem:[%s2840 + $0x14] sm:$0xf]
      %v2847 = vld [vmem:[%s2840 + $0x18] sm:$0xf]
      %v2848 = vld [vmem:[%s2840 + $0x1c] sm:$0xf]
      %v2849 = vld [vmem:[%s2840 + $0x20] sm:$0xf]
      %v2850 = vld [vmem:[%s2840 + $0x24] sm:$0xf]
      %v2851 = vld [vmem:[%s2840 + $0x28] sm:$0xf]
      %v2852 = vld [vmem:[%s2840 + $0x2c] sm:$0xf]
      %v2853 = vld [vmem:[%s2840 + $0x30] sm:$0xf]
      %v2854 = vld [vmem:[%s2840 + $0x34] sm:$0xf]
      %v2855 = vld [vmem:[%s2840 + $0x38] sm:$0xf]
      %v2856 = vld [vmem:[%s2840 + $0x3c] sm:$0xf]
      %v2857 = vld [vmem:[%s2840 + $0x40] sm:$0xf]
      %v2858 = vld [vmem:[%s2840 + $0x44] sm:$0xf]
      %v2859 = vld [vmem:[%s2840 + $0x48] sm:$0xf]
      %v2860 = vld [vmem:[%s2840 + $0x4c] sm:$0xf]
      %v2861 = vld [vmem:[%s2840 + $0x50] sm:$0xf]
      %v2862 = vld [vmem:[%s2840 + $0x54] sm:$0xf]
      %v2863 = vld [vmem:[%s2840 + $0x58] sm:$0xf]
      %v2864 = vld [vmem:[%s2840 + $0x5c] sm:$0xf]
      %v2865 = vld [vmem:[%s2840 + $0x60] sm:$0xf]
      %v2866 = vld [vmem:[%s2840 + $0x64] sm:$0xf]
      %v2867 = vld [vmem:[%s2840 + $0x68] sm:$0xf]
      %v2868 = vld [vmem:[%s2840 + $0x6c] sm:$0xf]
      %v2869 = vld [vmem:[%s2840 + $0x70] sm:$0xf]
      %v2870 = vld [vmem:[%s2840 + $0x74] sm:$0xf]
      %v2871 = vld [vmem:[%s2840 + $0x78] sm:$0xf]
      %v2872 = vld [vmem:[%s2840 + $0x7c] sm:$0xf]
      %v2873 = vld [vmem:[%s2840 + $0x80] sm:$0xf]
      %v2874 = vld [vmem:[%s2840 + $0x84] sm:$0xf]
      %v2875 = vld [vmem:[%s2840 + $0x88] sm:$0xf]
      %v2876 = vld [vmem:[%s2840 + $0x8c] sm:$0xf]
      %v2877 = vld [vmem:[%s2840 + $0x90] sm:$0xf]
      %v2878 = vld [vmem:[%s2840 + $0x94] sm:$0xf]
      %v2879 = vld [vmem:[%s2840 + $0x98] sm:$0xf]
      %v2880 = vld [vmem:[%s2840 + $0x9c] sm:$0xf]
      %v2881 = vld [vmem:[%s2840 + $0xa0] sm:$0xf]
      %v2882 = vld [vmem:[%s2840 + $0xa4] sm:$0xf]
      %v2883 = vld [vmem:[%s2840 + $0xa8] sm:$0xf]
      %v2884 = vld [vmem:[%s2840 + $0xac] sm:$0xf]
      %v2885 = vld [vmem:[%s2840 + $0xb0] sm:$0xf]
      %v2886 = vld [vmem:[%s2840 + $0xb4] sm:$0xf]
      %v2887 = vld [vmem:[%s2840 + $0xb8] sm:$0xf]
      %v2888 = vld [vmem:[%s2840 + $0xbc] sm:$0xf]
      %v2937 = vunpack.c.l.b16 %v2841
      %v2938 = vunpack.c.l.b16 %v2842
      %v2939 = vunpack.c.l.b16 %v2843
      %v2940 = vunpack.c.l.b16 %v2844
      %v2941 = vunpack.c.l.b16 %v2845
      %v2942 = vunpack.c.l.b16 %v2846
      %v2943 = vunpack.c.l.b16 %v2847
      %v2944 = vunpack.c.l.b16 %v2848
      %v2945 = vunpack.c.l.b16 %v2849
      %v2946 = vunpack.c.l.b16 %v2850
      %v2947 = vunpack.c.l.b16 %v2851
      %v2948 = vunpack.c.l.b16 %v2852
      %v2949 = vunpack.c.l.b16 %v2853
      %v2950 = vunpack.c.l.b16 %v2854
      %v2951 = vunpack.c.l.b16 %v2855
      %v2952 = vunpack.c.l.b16 %v2856
      %v2953 = vunpack.c.l.b16 %v2857
      %v2954 = vunpack.c.l.b16 %v2858
      %v2955 = vunpack.c.l.b16 %v2859
      %v2956 = vunpack.c.l.b16 %v2860
      %v2957 = vunpack.c.l.b16 %v2861
      %v2958 = vunpack.c.l.b16 %v2862
      %v2959 = vunpack.c.l.b16 %v2863
      %v2960 = vunpack.c.l.b16 %v2864
      %v2961 = vunpack.c.l.b16 %v2865
      %v2962 = vunpack.c.l.b16 %v2866
      %v2963 = vunpack.c.l.b16 %v2867
      %v2964 = vunpack.c.l.b16 %v2868
      %v2965 = vunpack.c.l.b16 %v2869
      %v2966 = vunpack.c.l.b16 %v2870
      %v2967 = vunpack.c.l.b16 %v2871
      %v2968 = vunpack.c.l.b16 %v2872
      %v2969 = vunpack.c.l.b16 %v2873
      %v2970 = vunpack.c.l.b16 %v2874
      %v2971 = vunpack.c.l.b16 %v2875
      %v2972 = vunpack.c.l.b16 %v2876
      %v2973 = vunpack.c.l.b16 %v2877
      %v2974 = vunpack.c.l.b16 %v2878
      %v2975 = vunpack.c.l.b16 %v2879
      %v2976 = vunpack.c.l.b16 %v2880
      %v2977 = vunpack.c.l.b16 %v2881
      %v2978 = vunpack.c.l.b16 %v2882
      %v2979 = vunpack.c.l.b16 %v2883
      %v2980 = vunpack.c.l.b16 %v2884
      %v2981 = vunpack.c.l.b16 %v2885
      %v2982 = vunpack.c.l.b16 %v2886
      %v2983 = vunpack.c.l.b16 %v2887
      %v2984 = vunpack.c.l.b16 %v2888
      %v2985 = vpack.c.b16 %v2938, %v2937
      %v2986 = vpack.c.b16 %v2940, %v2939
      %v2987 = vpack.c.b16 %v2942, %v2941
      %v2988 = vpack.c.b16 %v2944, %v2943
      %v2989 = vpack.c.b16 %v2946, %v2945
      %v2990 = vpack.c.b16 %v2948, %v2947
      %v2991 = vpack.c.b16 %v2950, %v2949
      %v2992 = vpack.c.b16 %v2952, %v2951
      %v2993 = vpack.c.b16 %v2954, %v2953
      %v2994 = vpack.c.b16 %v2956, %v2955
      %v2995 = vpack.c.b16 %v2958, %v2957
      %v2996 = vpack.c.b16 %v2960, %v2959
      %v2997 = vpack.c.b16 %v2962, %v2961
      %v2998 = vpack.c.b16 %v2964, %v2963
      %v2999 = vpack.c.b16 %v2966, %v2965
      %v3000 = vpack.c.b16 %v2968, %v2967
      %v3001 = vpack.c.b16 %v2970, %v2969
      %v3002 = vpack.c.b16 %v2972, %v2971
      %v3003 = vpack.c.b16 %v2974, %v2973
      %v3004 = vpack.c.b16 %v2976, %v2975
      %v3005 = vpack.c.b16 %v2978, %v2977
      %v3006 = vpack.c.b16 %v2980, %v2979
      %v3007 = vpack.c.b16 %v2982, %v2981
      %v3008 = vpack.c.b16 %v2984, %v2983
      %3033 = vmatprep.subr.bf16.mxu0 0
      %3034 = vmatpush1.bf16.msra.mxu0 %v2992
      %3035 = vmatprep.subr.bf16.mxu0 0
      %3036 = vmatpush1.bf16.msra.mxu0 %v2991
      %3037 = vmatprep.subr.bf16.mxu0 0
      %3038 = vmatpush1.bf16.msra.mxu0 %v2990
      %3039 = vmatprep.subr.bf16.mxu0 0
      %3040 = vmatpush1.bf16.msra.mxu0 %v2989
      %3041 = vmatprep.subr.bf16.mxu0 0
      %3042 = vmatpush1.bf16.msra.mxu0 %v2988
      %3043 = vmatprep.subr.bf16.mxu0 0
      %3044 = vmatpush1.bf16.msra.mxu0 %v2987
      %3045 = vmatprep.subr.bf16.mxu0 0
      %3046 = vmatpush1.bf16.msra.mxu0 %v2986
      %3047 = vmatprep.subr.bf16.mxu0 0
      %3048 = vmatpush1.bf16.msra.mxu0 %v2985
      %3049 = vmatprep.subr.bf16.mxu0 0
      %3050 = vmatpush2.bf16.msra.mxu0 %v3000
      %3051 = vmatprep.subr.bf16.mxu0 0
      %3052 = vmatpush2.bf16.msra.mxu0 %v2999
      %3053 = vmatprep.subr.bf16.mxu0 0
      %3054 = vmatpush2.bf16.msra.mxu0 %v2998
      %3055 = vmatprep.subr.bf16.mxu0 0
      %3056 = vmatpush2.bf16.msra.mxu0 %v2997
      %3057 = vmatprep.subr.bf16.mxu0 0
      %3058 = vmatpush2.bf16.msra.mxu0 %v2996
      %3059 = vmatprep.subr.bf16.mxu0 0
      %3060 = vmatpush2.bf16.msra.mxu0 %v2995
      %3061 = vmatprep.subr.bf16.mxu0 0
      %3062 = vmatpush2.bf16.msra.mxu0 %v2994
      %3063 = vmatprep.subr.bf16.mxu0 0
      %3064 = vmatpush2.bf16.msra.mxu0 %v2993
      %3065 = vmatprep.mubr.bf16.mxu0 %v2823
      %3066 = vmatmul.mubr.bf16.gmra.mxu0 %v2813
      %v3067 = vpop.f32.mrf.mxu0
      %v3068 = vadd.f32 0.0, %v3067
      %v3069 = vpop.f32.mrf.mxu0
      %v3070 = vpop.f32.mrf.mxu0
      %v3071 = vadd.f32 0.0, %v3070
      %v3072 = vpop.f32.mrf.mxu0
      %3073 = vmatprep.mubr.bf16.mxu0 %v2824
      %3074 = vmatmul.mubr.bf16.gmra.mxu0 %v2814
      %v3075 = vpop.f32.mrf.mxu0
      %v3076 = vadd.f32 0.0, %v3075
      %v3077 = vpop.f32.mrf.mxu0
      %v3078 = vpop.f32.mrf.mxu0
      %v3079 = vadd.f32 0.0, %v3078
      %v3080 = vpop.f32.mrf.mxu0
      %3081 = vmatprep.mubr.bf16.mxu0 %v2825
      %3082 = vmatmul.mubr.bf16.gmra.mxu0 %v2815
      %v3083 = vpop.f32.mrf.mxu0
      %v3084 = vadd.f32 0.0, %v3083
      %v3085 = vpop.f32.mrf.mxu0
      %v3086 = vpop.f32.mrf.mxu0
      %v3087 = vadd.f32 0.0, %v3086
      %v3088 = vpop.f32.mrf.mxu0
      %3089 = vmatprep.mubr.bf16.mxu0 %v2826
      %3090 = vmatmul.mubr.bf16.gmra.mxu0 %v2816
      %v3091 = vpop.f32.mrf.mxu0
      %v3092 = vadd.f32 0.0, %v3091
      %v3093 = vpop.f32.mrf.mxu0
      %v3094 = vpop.f32.mrf.mxu0
      %v3095 = vadd.f32 0.0, %v3094
      %v3096 = vpop.f32.mrf.mxu0
      %3097 = vdwg.mxu0
      %3098 = vmatprep.subr.bf16.mxu0 0
      %3099 = vmatpush1.bf16.msra.mxu0 %v3008
      %3100 = vmatprep.subr.bf16.mxu0 0
      %3101 = vmatpush1.bf16.msra.mxu0 %v3007
      %3102 = vmatprep.subr.bf16.mxu0 0
      %3103 = vmatpush1.bf16.msra.mxu0 %v3006
      %3104 = vmatprep.subr.bf16.mxu0 0
      %3105 = vmatpush1.bf16.msra.mxu0 %v3005
      %3106 = vmatprep.subr.bf16.mxu0 0
      %3107 = vmatpush1.bf16.msra.mxu0 %v3004
      %3108 = vmatprep.subr.bf16.mxu0 0
      %3109 = vmatpush1.bf16.msra.mxu0 %v3003
      %3110 = vmatprep.subr.bf16.mxu0 0
      %3111 = vmatpush1.bf16.msra.mxu0 %v3002
      %3112 = vmatprep.subr.bf16.mxu0 0
      %3113 = vmatpush1.bf16.msra.mxu0 %v3001
      %3114 = vmatprep.subr.bf16.mxu0 0
      %3115 = vmatpush2.bf16.msra.mxu0 0
      %3116 = vmatprep.subr.bf16.mxu0 0
      %3117 = vmatpush2.bf16.msra.mxu0 0
      %3118 = vmatprep.subr.bf16.mxu0 0
      %3119 = vmatpush2.bf16.msra.mxu0 0
      %3120 = vmatprep.subr.bf16.mxu0 0
      %3121 = vmatpush2.bf16.msra.mxu0 0
      %3122 = vmatprep.subr.bf16.mxu0 0
      %3123 = vmatpush2.bf16.msra.mxu0 0
      %3124 = vmatprep.subr.bf16.mxu0 0
      %3125 = vmatpush2.bf16.msra.mxu0 0
      %3126 = vmatprep.subr.bf16.mxu0 0
      %3127 = vmatpush2.bf16.msra.mxu0 0
      %3128 = vmatprep.subr.bf16.mxu0 0
      %3129 = vmatpush2.bf16.msra.mxu0 0
      %3130 = vmatprep.mubr.bf16.mxu0 0
      %3131 = vmatmul.mubr.bf16.gmra.mxu0 %v2832
      %v3132 = vpop.f32.mrf.mxu0
      %v3133 = vadd.f32 %v3068, %v3132
      %v3134 = vpop.f32.mrf.mxu0
      %v3135 = vpop.f32.mrf.mxu0
      %v3136 = vadd.f32 %v3071, %v3135
      %v3137 = vpop.f32.mrf.mxu0
      %3138 = vmatprep.mubr.bf16.mxu0 0
      %3139 = vmatmul.mubr.bf16.gmra.mxu0 %v2833
      %v3140 = vpop.f32.mrf.mxu0
      %v3141 = vadd.f32 %v3076, %v3140
      %v3142 = vpop.f32.mrf.mxu0
      %v3143 = vpop.f32.mrf.mxu0
      %v3144 = vadd.f32 %v3079, %v3143
      %v3145 = vpop.f32.mrf.mxu0
      %3146 = vmatprep.mubr.bf16.mxu0 0
      %3147 = vmatmul.mubr.bf16.gmra.mxu0 %v2834
      %v3148 = vpop.f32.mrf.mxu0
      %v3149 = vadd.f32 %v3084, %v3148
      %v3150 = vpop.f32.mrf.mxu0
      %v3151 = vpop.f32.mrf.mxu0
      %v3152 = vadd.f32 %v3087, %v3151
      %v3153 = vpop.f32.mrf.mxu0
      %3154 = vmatprep.mubr.bf16.mxu0 0
      %3155 = vmatmul.mubr.bf16.gmra.mxu0 %v2835
      %v3156 = vpop.f32.mrf.mxu0
      %v3157 = vadd.f32 %v3092, %v3156
      %v3158 = vpop.f32.mrf.mxu0
      %v3159 = vpop.f32.mrf.mxu0
      %v3160 = vadd.f32 %v3095, %v3159
      %v3161 = vpop.f32.mrf.mxu0
      %3162 = vdwg.mxu0
      %v3163 = vadd.f32 %v2764, %v3133
      %v3164 = vadd.f32 %v2767, %v3136
      %v3165 = vadd.f32 %v2772, %v3141
      %v3166 = vadd.f32 %v2775, %v3144
      %v3167 = vadd.f32 %v2780, %v3149
      %v3168 = vadd.f32 %v2783, %v3152
      %v3169 = vadd.f32 %v2788, %v3157
      %v3170 = vadd.f32 %v2791, %v3160
      %v3171 = vld [vmem:[%s6] sm:$0x1]
      %v3173 = vlaneseq
      %v3174 = vshrl.u32 %v3173, 7
      %v3175 = vsub.s32 0, %v3174
      %v3176 = vrot.slane %v3171, %v3175
      %v3178 = vadd.f32 %v3163, %v3176
      %v3179 = vadd.f32 %v3164, %v3176
      %v3180 = vadd.f32 %v3165, %v3176
      %v3181 = vadd.f32 %v3166, %v3176
      %v3182 = vadd.f32 %v3167, %v3176
      %v3183 = vadd.f32 %v3168, %v3176
      %v3184 = vadd.f32 %v3169, %v3176
      %v3185 = vadd.f32 %v3170, %v3176
      %v3186 = vpack.c.bf16 %v3179, %v3178
      %v3187 = vpack.c.bf16 %v3181, %v3180
      %v3188 = vpack.c.bf16 %v3183, %v3182
      %v3189 = vpack.c.bf16 %v3185, %v3184
      %v3190 = vld [vmem:[%s7] sm:$0xf]
      %v3191 = vld [vmem:[%s7 + $0x4] sm:$0xf]
      %v3192 = vld [vmem:[%s7 + $0x8] sm:$0xf]
      %v3193 = vld [vmem:[%s7 + $0xc] sm:$0xf]
      %v3194 = vld [vmem:[%s7 + $0x10] sm:$0xf]
      %v3195 = vld [vmem:[%s7 + $0x14] sm:$0xf]
      %v3196 = vld [vmem:[%s7 + $0x18] sm:$0xf]
      %v3197 = vld [vmem:[%s7 + $0x1c] sm:$0xf]
      %v3198 = vld [vmem:[%s7 + $0x20] sm:$0xf]
      %v3199 = vld [vmem:[%s7 + $0x24] sm:$0xf]
      %v3200 = vld [vmem:[%s7 + $0x28] sm:$0xf]
      %v3201 = vld [vmem:[%s7 + $0x2c] sm:$0xf]
      %v3202 = vld [vmem:[%s7 + $0x30] sm:$0xf]
      %v3203 = vld [vmem:[%s7 + $0x34] sm:$0xf]
      %v3204 = vld [vmem:[%s7 + $0x38] sm:$0xf]
      %v3205 = vld [vmem:[%s7 + $0x3c] sm:$0xf]
      %v3206 = vld [vmem:[%s8] sm:$0x3]
      %v3207 = vpack.c.b16 %v695, %v687
      %v3208 = vpack.c.b16 %v711, %v703
      %v3209 = vpack.c.b16 %v727, %v719
      %v3210 = vpack.c.b16 %v743, %v735
      %v3212 = vsel %vm789, %v3207, 0
      %v3215 = vsel %vm789, %v3208, 0
      %v3218 = vsel %vm789, %v3209, 0
      %v3221 = vsel %vm789, %v3210, 0
      %v3224 = vsel %vm898, %v3206, 0
      %3226 = vmatprep.subr.bf16.mxu0 0
      %3227 = vmatpush1.bf16.msra.mxu0 0
      %3228 = vmatprep.subr.bf16.mxu0 0
      %3229 = vmatpush1.bf16.msra.mxu0 0
      %3230 = vmatprep.subr.bf16.mxu0 0
      %3231 = vmatpush1.bf16.msra.mxu0 0
      %3232 = vmatprep.subr.bf16.mxu0 0
      %3233 = vmatpush1.bf16.msra.mxu0 0
      %3234 = vmatprep.subr.bf16.mxu0 0
      %3235 = vmatpush1.bf16.msra.mxu0 0
      %3236 = vmatprep.subr.bf16.mxu0 0
      %3237 = vmatpush1.bf16.msra.mxu0 0
      %3238 = vmatprep.subr.bf16.mxu0 0
      %3239 = vmatpush1.bf16.msra.mxu0 0
      %3240 = vmatprep.subr.bf16.mxu0 0
      %3241 = vmatpush1.bf16.msra.mxu0 %v3224
      %3242 = vmatprep.subr.bf16.mxu0 0
      %3243 = vmatpush2.bf16.msra.mxu0 0
      %3244 = vmatprep.subr.bf16.mxu0 0
      %3245 = vmatpush2.bf16.msra.mxu0 0
      %3246 = vmatprep.subr.bf16.mxu0 0
      %3247 = vmatpush2.bf16.msra.mxu0 0
      %3248 = vmatprep.subr.bf16.mxu0 0
      %3249 = vmatpush2.bf16.msra.mxu0 0
      %3250 = vmatprep.subr.bf16.mxu0 0
      %3251 = vmatpush2.bf16.msra.mxu0 0
      %3252 = vmatprep.subr.bf16.mxu0 0
      %3253 = vmatpush2.bf16.msra.mxu0 0
      %3254 = vmatprep.subr.bf16.mxu0 0
      %3255 = vmatpush2.bf16.msra.mxu0 0
      %3256 = vmatprep.subr.bf16.mxu0 0
      %3257 = vmatpush2.bf16.msra.mxu0 0
      %3258 = vmatprep.mubr.bf16.mxu0 0
      %3259 = vmatmul.mubr.bf16.gmra.mxu0 %v3212
      %v3260 = vpop.f32.mrf.mxu0
      %v3261 = vadd.f32 0.0, %v3260
      %v3262 = vpop.f32.mrf.mxu0
      %v3263 = vpop.f32.mrf.mxu0
      %v3264 = vadd.f32 0.0, %v3263
      %v3265 = vpop.f32.mrf.mxu0
      %3266 = vmatprep.mubr.bf16.mxu0 0
      %3267 = vmatmul.mubr.bf16.gmra.mxu0 %v3215
      %v3268 = vpop.f32.mrf.mxu0
      %v3269 = vadd.f32 0.0, %v3268
      %v3270 = vpop.f32.mrf.mxu0
      %v3271 = vpop.f32.mrf.mxu0
      %v3272 = vadd.f32 0.0, %v3271
      %v3273 = vpop.f32.mrf.mxu0
      %3274 = vmatprep.mubr.bf16.mxu0 0
      %3275 = vmatmul.mubr.bf16.gmra.mxu0 %v3218
      %v3276 = vpop.f32.mrf.mxu0
      %v3277 = vadd.f32 0.0, %v3276
      %v3278 = vpop.f32.mrf.mxu0
      %v3279 = vpop.f32.mrf.mxu0
      %v3280 = vadd.f32 0.0, %v3279
      %v3281 = vpop.f32.mrf.mxu0
      %3282 = vmatprep.mubr.bf16.mxu0 0
      %3283 = vmatmul.mubr.bf16.gmra.mxu0 %v3221
      %v3284 = vpop.f32.mrf.mxu0
      %v3285 = vadd.f32 0.0, %v3284
      %v3286 = vpop.f32.mrf.mxu0
      %v3287 = vpop.f32.mrf.mxu0
      %v3288 = vadd.f32 0.0, %v3287
      %v3289 = vpop.f32.mrf.mxu0
      %3290 = vdwg.mxu0
      %v3307 = vunpack.c.l.b16 %v3190
      %v3308 = vunpack.c.l.b16 %v3191
      %v3309 = vunpack.c.l.b16 %v3192
      %v3310 = vunpack.c.l.b16 %v3193
      %v3311 = vunpack.c.l.b16 %v3194
      %v3312 = vunpack.c.l.b16 %v3195
      %v3313 = vunpack.c.l.b16 %v3196
      %v3314 = vunpack.c.l.b16 %v3197
      %v3315 = vunpack.c.l.b16 %v3198
      %v3316 = vunpack.c.l.b16 %v3199
      %v3317 = vunpack.c.l.b16 %v3200
      %v3318 = vunpack.c.l.b16 %v3201
      %v3319 = vunpack.c.l.b16 %v3202
      %v3320 = vunpack.c.l.b16 %v3203
      %v3321 = vunpack.c.l.b16 %v3204
      %v3322 = vunpack.c.l.b16 %v3205
      %v3323 = vpack.c.b16 %v3308, %v3307
      %v3324 = vpack.c.b16 %v3310, %v3309
      %v3325 = vpack.c.b16 %v3312, %v3311
      %v3326 = vpack.c.b16 %v3314, %v3313
      %v3327 = vpack.c.b16 %v3316, %v3315
      %v3328 = vpack.c.b16 %v3318, %v3317
      %v3329 = vpack.c.b16 %v3320, %v3319
      %v3330 = vpack.c.b16 %v3322, %v3321
      %3339 = vmatprep.subr.bf16.mxu0 0
      %3340 = vmatpush1.bf16.msra.mxu0 %v3330
      %3341 = vmatprep.subr.bf16.mxu0 0
      %3342 = vmatpush1.bf16.msra.mxu0 %v3329
      %3343 = vmatprep.subr.bf16.mxu0 0
      %3344 = vmatpush1.bf16.msra.mxu0 %v3328
      %3345 = vmatprep.subr.bf16.mxu0 0
      %3346 = vmatpush1.bf16.msra.mxu0 %v3327
      %3347 = vmatprep.subr.bf16.mxu0 0
      %3348 = vmatpush1.bf16.msra.mxu0 %v3326
      %3349 = vmatprep.subr.bf16.mxu0 0
      %3350 = vmatpush1.bf16.msra.mxu0 %v3325
      %3351 = vmatprep.subr.bf16.mxu0 0
      %3352 = vmatpush1.bf16.msra.mxu0 %v3324
      %3353 = vmatprep.subr.bf16.mxu0 0
      %3354 = vmatpush1.bf16.msra.mxu0 %v3323
      %3355 = vmatprep.subr.bf16.mxu0 0
      %3356 = vmatpush2.bf16.msra.mxu0 0
      %3357 = vmatprep.subr.bf16.mxu0 0
      %3358 = vmatpush2.bf16.msra.mxu0 0
      %3359 = vmatprep.subr.bf16.mxu0 0
      %3360 = vmatpush2.bf16.msra.mxu0 0
      %3361 = vmatprep.subr.bf16.mxu0 0
      %3362 = vmatpush2.bf16.msra.mxu0 0
      %3363 = vmatprep.subr.bf16.mxu0 0
      %3364 = vmatpush2.bf16.msra.mxu0 0
      %3365 = vmatprep.subr.bf16.mxu0 0
      %3366 = vmatpush2.bf16.msra.mxu0 0
      %3367 = vmatprep.subr.bf16.mxu0 0
      %3368 = vmatpush2.bf16.msra.mxu0 0
      %3369 = vmatprep.subr.bf16.mxu0 0
      %3370 = vmatpush2.bf16.msra.mxu0 0
      %3371 = vmatprep.mubr.bf16.mxu0 0
      %3372 = vmatmul.mubr.bf16.gmra.mxu0 %v3186
      %v3373 = vpop.f32.mrf.mxu0
      %v3374 = vadd.f32 %v3261, %v3373
      %v3375 = vpop.f32.mrf.mxu0
      %v3376 = vpop.f32.mrf.mxu0
      %v3377 = vadd.f32 %v3264, %v3376
      %v3378 = vpop.f32.mrf.mxu0
      %3379 = vmatprep.mubr.bf16.mxu0 0
      %3380 = vmatmul.mubr.bf16.gmra.mxu0 %v3187
      %v3381 = vpop.f32.mrf.mxu0
      %v3382 = vadd.f32 %v3269, %v3381
      %v3383 = vpop.f32.mrf.mxu0
      %v3384 = vpop.f32.mrf.mxu0
      %v3385 = vadd.f32 %v3272, %v3384
      %v3386 = vpop.f32.mrf.mxu0
      %3387 = vmatprep.mubr.bf16.mxu0 0
      %3388 = vmatmul.mubr.bf16.gmra.mxu0 %v3188
      %v3389 = vpop.f32.mrf.mxu0
      %v3390 = vadd.f32 %v3277, %v3389
      %v3391 = vpop.f32.mrf.mxu0
      %v3392 = vpop.f32.mrf.mxu0
      %v3393 = vadd.f32 %v3280, %v3392
      %v3394 = vpop.f32.mrf.mxu0
      %3395 = vmatprep.mubr.bf16.mxu0 0
      %3396 = vmatmul.mubr.bf16.gmra.mxu0 %v3189
      %v3397 = vpop.f32.mrf.mxu0
      %v3398 = vadd.f32 %v3285, %v3397
      %v3399 = vpop.f32.mrf.mxu0
      %v3400 = vpop.f32.mrf.mxu0
      %v3401 = vadd.f32 %v3288, %v3400
      %v3402 = vpop.f32.mrf.mxu0
      %3403 = vdwg.mxu0
      %v3404 = vld [vmem:[%s9] sm:$0x1]
      %v3406 = vlaneseq
      %v3407 = vshrl.u32 %v3406, 7
      %v3408 = vsub.s32 0, %v3407
      %v3409 = vrot.slane %v3404, %v3408
      %v3411 = vadd.f32 %v3374, %v3409
      %v3412 = vadd.f32 %v3377, %v3409
      %v3413 = vadd.f32 %v3382, %v3409
      %v3414 = vadd.f32 %v3385, %v3409
      %v3415 = vadd.f32 %v3390, %v3409
      %v3416 = vadd.f32 %v3393, %v3409
      %v3417 = vadd.f32 %v3398, %v3409
      %v3418 = vadd.f32 %v3401, %v3409
      %v3419 = vmax.f32 %v3411, 0.0
      %v3420 = vmax.f32 %v3412, 0.0
      %v3421 = vmax.f32 %v3413, 0.0
      %v3422 = vmax.f32 %v3414, 0.0
      %v3423 = vmax.f32 %v3415, 0.0
      %v3424 = vmax.f32 %v3416, 0.0
      %v3425 = vmax.f32 %v3417, 0.0
      %v3426 = vmax.f32 %v3418, 0.0
      %v3427 = vpack.c.bf16 %v3419, %v3419
      %v3428 = vpack.c.bf16 %v3420, %v3420
      %v3429 = vpack.c.bf16 %v3421, %v3421
      %v3430 = vpack.c.bf16 %v3422, %v3422
      %v3431 = vpack.c.bf16 %v3423, %v3423
      %v3432 = vpack.c.bf16 %v3424, %v3424
      %v3433 = vpack.c.bf16 %v3425, %v3425
      %v3434 = vpack.c.bf16 %v3426, %v3426
      %3435 = vst [vmem:[%s526] sm:$0xf] %v3427
      %3436 = vst [vmem:[%s526 + $0x4] sm:$0xf] %v3428
      %3437 = vst [vmem:[%s526 + $0x8] sm:$0xf] %v3429
      %3438 = vst [vmem:[%s526 + $0xc] sm:$0xf] %v3430
      %3439 = vst [vmem:[%s526 + $0x10] sm:$0xf] %v3431
      %3440 = vst [vmem:[%s526 + $0x14] sm:$0xf] %v3432
      %3441 = vst [vmem:[%s526 + $0x18] sm:$0xf] %v3433
      %3442 = vst [vmem:[%s526 + $0x1c] sm:$0xf] %v3434
      %s3443 = smul.u32 8, %s26
      %p3444 = scmp.lt.s32.totalorder %s25, 1
      %s3445 = scalar_select %p3444, %s25, 1
      %p3446 = scmp.lt.s32.totalorder %s3443, 7
      %s3447 = scalar_select %p3446, %s3443, 7
      %s3448 = smul.addr %s3445, 8
      %s3449 = sadd.s32 %s3447, %s3448
      %s3450 = smul.addr %s3449, 4
      %s3451 = scalar_lea.vmem %s10, %s3450
      // Predicated region
      $region61: #{residual_block2.1} parent=59 // pred_check
        %p3452 = pneg %p292
      $region62: #{residual_block2.1} parent=59 // pred_check_branch
        %3454 = sbr.rel (%p3452) target = $region64
      $region63: #{residual_block2.1} parent=59 // pred_region
        %s3455 = smul.u32 8, %s26
      $region64: #{residual_block2.1} parent=59 // pred_fallthru
        _
    $region60: #{residual_block2.1} parent=5 // pred_fallthru
      _
    %p3456 = scmp.le.s32.totalorder 2, %s16
    // Predicated region
    $region65: #{residual_block2.1} parent=5 // pred_check
      %p3457 = pneg %p3456
    $region66: #{residual_block2.1} parent=5 // pred_check_branch
      %3459 = sbr.rel (%p3457) target = $region68
    $region67: #{residual_block2.1} parent=5 // pred_region
      %s3460 = ssub.s32 %s16, 2
      // Predicated region
      $region69: #{residual_block2.1} parent=67 // pred_check
        %p3461 = pneg %p298
      $region70: #{residual_block2.1} parent=67 // pred_check_branch
        %3463 = sbr.rel (%p3461) target = $region72
      $region71: #{residual_block2.1} parent=67 // pred_region
        %s3464 = smul.u32 8, %s28
        %p3465 = scmp.lt.s32.totalorder %s27, 1
        %s3466 = scalar_select %p3465, %s27, 1
        %p3467 = scmp.lt.s32.totalorder %s3464, 7
        %s3468 = scalar_select %p3467, %s3464, 7
        %s3469 = smul.addr %s3466, 8
        %s3470 = sadd.s32 %s3468, %s3469
        %s3471 = smul.addr %s3470, 4
        %s3472 = scalar_lea.vmem %s10, %s3471
      $region72: #{residual_block2.1} parent=67 // pred_fallthru
        _
    $region68: #{residual_block2.1} parent=5 // pred_fallthru
      _
  $region6: #{residual_block2.1} parent=0 // loop_footer
    %s20 = sadd.s32 1, %s16
  $region7: #{residual_block2.1} parent=0 // loop_footer_branch
    %15 = sbr.rel target = $region3
  $region8: #{residual_block2.1} parent=0 // loop_exit
    _

</llo_original>
